<compile_context>
chip_gen: v6e
topology: v6e:2x2x1
jax: 0.10.0
libtpu: 0.0.40
codegen_flags: <defaults>
</compile_context>

<pallas_src>
import functools

import jax
import jax.numpy as jnp
from jax.experimental import pallas as pl
from jax.experimental.pallas import tpu as pltpu


def _round_up(x, m):
    return (x + m - 1) // m * m


_CONV_CFG = [("c1", 8, 4), ("c2", 4, 2), ("c3", 3, 1)]   # (name, kernel, stride)


# --------------------------- Pallas conv kernel -----------------------------
def _conv_tap_kernel(x_ref, w_ref, b_ref, o_ref, acc_ref, *, taps, row_stride, rows):
    # x_ref:  (1, L, Cp)       bf16  flattened post-S2D image (+ (k'-1) pad rows)
    # w_ref:  (ntaps, Cp, OC)  bf16  one (Cp, OC) matmul block per kernel tap
    # b_ref:  (1, OC)          f32
    # o_ref:  (1, rows, OC)    bf16  rows = oh * Wp (cols >= ow are junk, sliced off in XLA)
    # acc_ref:(rows, OC)       f32   VMEM scratch accumulator
    for t, (di, dj) in enumerate(taps):
        lhs = x_ref[0, pl.ds(di * row_stride + dj, rows), :]          # contiguous 2-D tap slice
        part = jnp.dot(lhs, w_ref[t], preferred_element_type=jnp.float32)
        if t == 0:
            acc_ref[...] = part
        else:
            acc_ref[...] += part
    o_ref[0] = jnp.maximum(acc_ref[...] + b_ref[...], 0.0).astype(o_ref.dtype)


def conv2d_relu_pallas(x_flat, w_taps, b, geom):
    """Stride-1 (post space-to-depth) valid conv + bias + ReLU.

    Patch extraction happens in-kernel: each grid step DMAs one flattened
    image and accumulates ntaps (rows, Cp) @ (Cp, OC) MXU matmuls into an f32
    VMEM scratch.  The kernel computes the full-width (oh, Wp) grid; the
    (k'-1) junk right-edge columns per row are sliced off by a tiny XLA op.
    """
    oh, ow, Wp, kp = geom
    B, L, Cp = x_flat.shape
    ntaps, Cp_w, OC = w_taps.shape
    assert Cp_w == Cp and ntaps == kp * kp
    rows = oh * Wp
    taps = [(di, dj) for di in range(kp) for dj in range(kp)]
    kernel = functools.partial(_conv_tap_kernel, taps=taps, row_stride=Wp, rows=rows)
    y = pl.pallas_call(
        kernel,
        out_shape=jax.ShapeDtypeStruct((B, rows, OC), jnp.bfloat16),
        grid=(B,),
        in_specs=[
            pl.BlockSpec((1, L, Cp), lambda i: (i, 0, 0)),
            pl.BlockSpec((ntaps, Cp, OC), lambda i: (0, 0, 0)),   # resident across grid
            pl.BlockSpec((1, OC), lambda i: (0, 0)),
        ],
        out_specs=pl.BlockSpec((1, rows, OC), lambda i: (i, 0, 0)),
        scratch_shapes=[pltpu.VMEM((rows, OC), jnp.float32)],
        compiler_params=pltpu.CompilerParams(dimension_semantics=("parallel",)),
    )(x_flat, w_taps, b)
    # TODO(synk): OC (32/64) < 128 lanes means masked stores / lane-padded HBM
    # layout for the conv outputs; emitting (oh, Wp*OC) lane-dense slabs would
    # need an in-kernel minor-dim reshape and is left for a follow-up.
    return y.reshape(B, oh, Wp, OC)[:, :, :ow, :]        # (B, oh, ow, OC) NHWC bf16


# ----------------------------- Pallas MLP head -------------------------------
def _fused_mlp_kernel(*refs, n_layers):
    # refs = (x, w0, b0, w1, b1, ..., o); all linears chained in-VMEM.
    x_ref = refs[0]
    o_ref = refs[-1]
    h = x_ref[...]                                       # bf16
    for li in range(n_layers):
        w_ref = refs[1 + 2 * li]
        b_ref = refs[2 + 2 * li]
        h = jnp.dot(h, w_ref[...], preferred_element_type=jnp.float32) + b_ref[...]
        if li < n_layers - 1:
            h = jnp.maximum(h, 0.0).astype(jnp.bfloat16)   # identity on output layer
    o_ref[...] = h.astype(o_ref.dtype)


def _pick_tm(m, cap=512):
    # Split M into >= 2 tiles when possible so both v7x TensorCores get work;
    # multiples of 16 keep bf16 sublane packing / (8,128) block rules happy.
    if m <= 16:
        return m
    return min(_round_up(pl.cdiv(m, 2), 16), _round_up(cap, 16))


def pallas_mlp_head(x, weights, biases):
    """Entire MLP Q-head fused into a single pallas_call (one launch, the tiny
    (B,32) activations never leave VMEM).  Weights/biases must already be
    kernel-ready: bf16 weights, (1, N) f32 biases (see prepare_params)."""
    x = x.astype(jnp.bfloat16)
    M, K = x.shape
    n_layers = len(weights)
    TM = _pick_tm(M)
    grid = (pl.cdiv(M, TM),)
    in_specs = [pl.BlockSpec((TM, K), lambda i: (i, 0))]
    args = [x]
    for w, b in zip(weights, biases):
        Kl, Nl = w.shape
        in_specs.append(pl.BlockSpec((Kl, Nl), lambda i: (0, 0)))
        in_specs.append(pl.BlockSpec((1, Nl), lambda i: (0, 0)))
        args.append(w)
        args.append(b)
    act_dim = weights[-1].shape[1]
    return pl.pallas_call(
        functools.partial(_fused_mlp_kernel, n_layers=n_layers),
        out_shape=jax.ShapeDtypeStruct((M, act_dim), jnp.float32),
        grid=grid,
        in_specs=in_specs,
        out_specs=pl.BlockSpec((TM, act_dim), lambda i: (i, 0)),
        compiler_params=pltpu.CompilerParams(dimension_semantics=("parallel",)),
    )(*args)


# ------------------------------- XLA layout glue -----------------------------
def _space_to_depth_flatten(x, kernel, stride, *, channels_last):
    """Crop to the window span, space-to-depth by `stride` (turning the conv
    into stride-1 with kernel k' = kernel//stride), flatten the spatial grid
    and right-pad by (k'-1) rows so every in-kernel tap slice is a contiguous,
    in-bounds 2-D window.  Returns ((B, Hp*Wp + k'-1, s*s*C) bf16, geometry).
    Pure layout glue, ~1x activation traffic (no im2col inflation)."""
    x = x.astype(jnp.bfloat16)
    if channels_last:
        B, H, W, C = x.shape
    else:
        B, C, H, W = x.shape
    oh = (H - kernel) // stride + 1
    ow = (W - kernel) // stride + 1
    kp = kernel // stride
    assert kp * stride == kernel, "space-to-depth rewrite needs stride | kernel"
    Hc, Wc = (oh + kp - 1) * stride, (ow + kp - 1) * stride
    Hp, Wp = Hc // stride, Wc // stride
    if channels_last:
        x = x[:, :Hc, :Wc, :]
        x = x.reshape(B, Hp, stride, Wp, stride, C).transpose(0, 1, 3, 2, 4, 5)
    else:
        # TODO(synk): storing observations NHWC upstream (replay buffer) would
        # turn this single NCHW layout pass into a pure reshape.
        x = x[:, :, :Hc, :Wc]
        x = x.reshape(B, C, Hp, stride, Wp, stride).transpose(0, 2, 4, 3, 5, 1)
    x = x.reshape(B, Hp * Wp, stride * stride * C)        # channel order (p, q, c)
    x = jnp.pad(x, ((0, 0), (0, kp - 1), (0, 0)))
    return x, (oh, ow, Wp, kp)


# --------------------------- parameter creation ------------------------------
def init_params(key, in_channels, n_flatten, hidden_sizes, act_dim):
    """Canonical float32 parameters in PyTorch layout (conv OIHW, linear (in,out))."""
    keys = jax.random.split(key, 16)
    scale = 0.05
    p = {}
    p["c1_w"] = scale * jax.random.normal(keys[0], (32, in_channels, 8, 8), jnp.float32)
    p["c2_w"] = scale * jax.random.normal(keys[1], (64, 32, 4, 4), jnp.float32)
    p["c3_w"] = scale * jax.random.normal(keys[2], (64, 64, 3, 3), jnp.float32)
    p["c1_b"] = scale * jax.random.normal(keys[3], (32,), jnp.float32)
    p["c2_b"] = scale * jax.random.normal(keys[4], (64,), jnp.float32)
    p["c3_b"] = scale * jax.random.normal(keys[5], (64,), jnp.float32)
    dims = [n_flatten] + list(hidden_sizes) + [act_dim]
    for li in range(len(dims) - 1):
        p[f"l{li}_w"] = scale * jax.random.normal(keys[6 + li], (dims[li], dims[li + 1]), jnp.float32)
        p[f"l{li}_b"] = scale * jax.random.normal(keys[10 + li], (dims[li + 1],), jnp.float32)
    p["n_layers"] = len(dims) - 1
    return p


def _prep_conv_weight(w_oihw, stride):
    """OIHW conv weight -> (k'*k' taps, stride*stride*IC, OC) bf16 matmul blocks
    matching the space-to-depth (p, q, c) channel order used on activations."""
    OC, IC, KH, KW = w_oihw.shape
    kp = KH // stride
    w = w_oihw.transpose(2, 3, 1, 0).reshape(kp, stride, kp, stride, IC, OC)
    w = w.transpose(0, 2, 1, 3, 4, 5).reshape(kp * kp, stride * stride * IC, OC)
    return w.astype(jnp.bfloat16)


def prepare_params(params, obs_hw):
    """One-time transform of canonical params into kernel-ready form; run
    OUTSIDE the per-step jit so no weight transposes/casts sit on the hot path."""
    h, w = obs_hw
    prep = {}
    for name, k, s in _CONV_CFG:
        prep[f"{name}_taps"] = _prep_conv_weight(params[f"{name}_w"], s)
        prep[f"{name}_b"] = params[f"{name}_b"].reshape(1, -1).astype(jnp.float32)
        h, w = (h - k) // s + 1, (w - k) // s + 1
    oc3 = params["c3_w"].shape[0]
    # Fold PyTorch's NCHW (channel-major) flatten order into l0_w's rows so the
    # kernel can consume the NHWC-flattened conv output directly.
    perm = jnp.transpose(jnp.arange(oc3 * h * w).reshape(oc3, h, w), (1, 2, 0)).reshape(-1)
    for li in range(params["n_layers"]):
        wl = params[f"l{li}_w"]
        if li == 0:
            wl = wl[perm, :]
        prep[f"l{li}_w"] = wl.astype(jnp.bfloat16)
        prep[f"l{li}_b"] = params[f"l{li}_b"].reshape(1, -1).astype(jnp.float32)
    return prep


# ------------------------------ forward pass ---------------------------------
def cnn_q_function_forward(params, obs):
    """obs: (B, C, H, W) float32 NCHW (PyTorch layout).  `params` must come
    from prepare_params.  Returns Q-values, squeezing the last dim iff size 1
    (matches torch.squeeze(q, -1)); torch.cat([obs], dim=-1) is identity."""
    x = obs
    channels_last = False
    for name, k, s in _CONV_CFG:
        x, geom = _space_to_depth_flatten(x, k, s, channels_last=channels_last)
        x = conv2d_relu_pallas(x, params[f"{name}_taps"], params[f"{name}_b"], geom)
        channels_last = True
    B = x.shape[0]
    x = x.reshape(B, -1)     # NHWC flatten; NCHW permutation already folded into l0_w
    n_layers = sum(1 for kname in params if kname.startswith("l") and kname.endswith("_w"))
    weights = [params[f"l{li}_w"] for li in range(n_layers)]
    biases = [params[f"l{li}_b"] for li in range(n_layers)]
    q = pallas_mlp_head(x, weights, biases)
    if q.shape[-1] == 1:
        q = jnp.squeeze(q, -1)
    return q


# ----------------------------- reference check -------------------------------
def _reference_forward(params, obs):
    x = obs
    for name, _, s in _CONV_CFG:
        w, b = params[f"{name}_w"], params[f"{name}_b"]
        x = jax.lax.conv_general_dilated(
            x, w, window_strides=(s, s), padding="VALID",
            dimension_numbers=("NCHW", "OIHW", "NCHW"))
        x = jnp.maximum(x + b[None, :, None, None], 0.0)
    x = x.reshape(x.shape[0], -1)
    n_layers = params["n_layers"]
    for li in range(n_layers):
        x = x @ params[f"l{li}_w"] + params[f"l{li}_b"]
        if li < n_layers - 1:
            x = jnp.maximum(x, 0.0)
    if x.shape[-1] == 1:
        x = jnp.squeeze(x, -1)
    return x


if __name__ == "__main__":
    hidden_sizes = (32, 32)
    act_dim = 6
    keys = jax.random.split(jax.random.PRNGKey(0), 4)
    fwd = jax.jit(cnn_q_function_forward)

    # Case 1: conv3 output is 1x1 (flatten permutation is the identity).
    # Case 2: conv3 output is 3x3 (exercises the folded NCHW-flatten permutation).
    for case, (B, C, H, W) in enumerate([(2, 4, 36, 36), (2, 4, 52, 52)]):
        obs = jax.random.normal(keys[2 * case], (B, C, H, W), jnp.float32)
        oh, ow = H, W
        for _, k, s in _CONV_CFG:
            oh, ow = (oh - k) // s + 1, (ow - k) // s + 1
        n_flatten = 64 * oh * ow
        params = init_params(keys[2 * case + 1], C, n_flatten, hidden_sizes, act_dim)
        prep = prepare_params(params, (H, W))

        q = jax.block_until_ready(fwd(prep, obs))
        q_ref = _reference_forward(params, obs)
        assert q.shape == (B, act_dim), q.shape
        # bf16 MXU inputs -> relaxed tolerance vs. the f32 XLA reference.
        assert jnp.allclose(q, q_ref, atol=2e-2, rtol=2e-2), \
            f"mismatch vs JAX reference for obs shape {(B, C, H, W)}"

    print("KERNEL_OK")
</pallas_src>

<mosaic_0001>
module attributes {stable_mosaic.version = 11 : i64} {
  func.func @_conv_tap_kernel(%arg0: i32, %arg1: memref<1x82x64xbf16, #tpu.memory_space<vmem>>, %arg2: memref<4x64x32xbf16, #tpu.memory_space<vmem>>, %arg3: memref<1x32xf32, #tpu.memory_space<vmem>>, %arg4: memref<1x72x32xbf16, #tpu.memory_space<vmem>>, %arg5: memref<72x32xf32, #tpu.memory_space<vmem>>) attributes {dimension_semantics = [#tpu.dimension_semantics<parallel>], iteration_bounds = array<i64: 2>, scalar_prefetch = 0 : i64, scratch_operands = 1 : i64, tpu.core_type = #tpu.core_type<tc>, window_params = [{transform_indices = @transform_0, window_bounds = array<i64: 1, 82, 64>}, {pipeline_mode = #tpu.pipeline_mode<synchronous>, transform_indices = @transform_1, window_bounds = array<i64: 4, 64, 32>}, {pipeline_mode = #tpu.pipeline_mode<synchronous>, transform_indices = @transform_2, window_bounds = array<i64: 1, 32>}, {transform_indices = @transform_3, window_bounds = array<i64: 1, 72, 32>}]} {
    %c0 = arith.constant 0 : index
    %c0_0 = arith.constant 0 : index
    %c0_1 = arith.constant 0 : index
    %0 = vector.load %arg1[%c0, %c0_0, %c0_1] : memref<1x82x64xbf16, #tpu.memory_space<vmem>>, vector<1x72x64xbf16>
    %1 = vector.shape_cast %0 : vector<1x72x64xbf16> to vector<72x64xbf16>
    %c0_2 = arith.constant 0 : index
    %c0_3 = arith.constant 0 : index
    %c0_4 = arith.constant 0 : index
    %2 = vector.load %arg2[%c0_2, %c0_3, %c0_4] : memref<4x64x32xbf16, #tpu.memory_space<vmem>>, vector<1x64x32xbf16>
    %3 = vector.shape_cast %2 : vector<1x64x32xbf16> to vector<64x32xbf16>
    %cst = arith.constant dense<0.000000e+00> : vector<72x32xf32>
    %4 = tpu.matmul %1, %3, %cst {dimension_numbers = #tpu.dot_dimension_numbers<[1], [0], [0], [1], [0, 0, 1, 1], [], []>} : vector<72x64xbf16>, vector<64x32xbf16>, vector<72x32xf32> -> vector<72x32xf32>
    %c0_5 = arith.constant 0 : index
    %c0_6 = arith.constant 0 : index
    %5 = vector.load %arg5[%c0_5, %c0_6] : memref<72x32xf32, #tpu.memory_space<vmem>>, vector<72x32xf32>
    tpu.vector_store %arg5[%c0_5, %c0_6], %4 {strides = array<i32>} : memref<72x32xf32, #tpu.memory_space<vmem>>, vector<72x32xf32>,
    %c0_7 = arith.constant 0 : index
    %c1 = arith.constant 1 : index
    %c0_8 = arith.constant 0 : index
    %6 = vector.load %arg1[%c0_7, %c1, %c0_8] : memref<1x82x64xbf16, #tpu.memory_space<vmem>>, vector<1x72x64xbf16>
    %7 = vector.shape_cast %6 : vector<1x72x64xbf16> to vector<72x64xbf16>
    %c1_9 = arith.constant 1 : index
    %c0_10 = arith.constant 0 : index
    %c0_11 = arith.constant 0 : index
    %8 = vector.load %arg2[%c1_9, %c0_10, %c0_11] : memref<4x64x32xbf16, #tpu.memory_space<vmem>>, vector<1x64x32xbf16>
    %9 = vector.shape_cast %8 : vector<1x64x32xbf16> to vector<64x32xbf16>
    %cst_12 = arith.constant dense<0.000000e+00> : vector<72x32xf32>
    %10 = tpu.matmul %7, %9, %cst_12 {dimension_numbers = #tpu.dot_dimension_numbers<[1], [0], [0], [1], [0, 0, 1, 1], [], []>} : vector<72x64xbf16>, vector<64x32xbf16>, vector<72x32xf32> -> vector<72x32xf32>
    %c0_13 = arith.constant 0 : index
    %c0_14 = arith.constant 0 : index
    %11 = vector.load %arg5[%c0_13, %c0_14] : memref<72x32xf32, #tpu.memory_space<vmem>>, vector<72x32xf32>
    %12 = arith.addf %11, %10 : vector<72x32xf32>
    %c0_15 = arith.constant 0 : index
    %c0_16 = arith.constant 0 : index
    %13 = vector.load %arg5[%c0_15, %c0_16] : memref<72x32xf32, #tpu.memory_space<vmem>>, vector<72x32xf32>
    tpu.vector_store %arg5[%c0_15, %c0_16], %12 {strides = array<i32>} : memref<72x32xf32, #tpu.memory_space<vmem>>, vector<72x32xf32>,
    %c0_17 = arith.constant 0 : index
    %c9 = arith.constant 9 : index
    %c0_18 = arith.constant 0 : index
    %14 = vector.load %arg1[%c0_17, %c9, %c0_18] : memref<1x82x64xbf16, #tpu.memory_space<vmem>>, vector<1x72x64xbf16>
    %15 = vector.shape_cast %14 : vector<1x72x64xbf16> to vector<72x64xbf16>
    %c2 = arith.constant 2 : index
    %c0_19 = arith.constant 0 : index
    %c0_20 = arith.constant 0 : index
    %16 = vector.load %arg2[%c2, %c0_19, %c0_20] : memref<4x64x32xbf16, #tpu.memory_space<vmem>>, vector<1x64x32xbf16>
    %17 = vector.shape_cast %16 : vector<1x64x32xbf16> to vector<64x32xbf16>
    %cst_21 = arith.constant dense<0.000000e+00> : vector<72x32xf32>
    %18 = tpu.matmul %15, %17, %cst_21 {dimension_numbers = #tpu.dot_dimension_numbers<[1], [0], [0], [1], [0, 0, 1, 1], [], []>} : vector<72x64xbf16>, vector<64x32xbf16>, vector<72x32xf32> -> vector<72x32xf32>
    %c0_22 = arith.constant 0 : index
    %c0_23 = arith.constant 0 : index
    %19 = vector.load %arg5[%c0_22, %c0_23] : memref<72x32xf32, #tpu.memory_space<vmem>>, vector<72x32xf32>
    %20 = arith.addf %19, %18 : vector<72x32xf32>
    %c0_24 = arith.constant 0 : index
    %c0_25 = arith.constant 0 : index
    %21 = vector.load %arg5[%c0_24, %c0_25] : memref<72x32xf32, #tpu.memory_space<vmem>>, vector<72x32xf32>
    tpu.vector_store %arg5[%c0_24, %c0_25], %20 {strides = array<i32>} : memref<72x32xf32, #tpu.memory_space<vmem>>, vector<72x32xf32>,
    %c0_26 = arith.constant 0 : index
    %c10 = arith.constant 10 : index
    %c0_27 = arith.constant 0 : index
    %22 = vector.load %arg1[%c0_26, %c10, %c0_27] : memref<1x82x64xbf16, #tpu.memory_space<vmem>>, vector<1x72x64xbf16>
    %23 = vector.shape_cast %22 : vector<1x72x64xbf16> to vector<72x64xbf16>
    %c3 = arith.constant 3 : index
    %c0_28 = arith.constant 0 : index
    %c0_29 = arith.constant 0 : index
    %24 = vector.load %arg2[%c3, %c0_28, %c0_29] : memref<4x64x32xbf16, #tpu.memory_space<vmem>>, vector<1x64x32xbf16>
    %25 = vector.shape_cast %24 : vector<1x64x32xbf16> to vector<64x32xbf16>
    %cst_30 = arith.constant dense<0.000000e+00> : vector<72x32xf32>
    %26 = tpu.matmul %23, %25, %cst_30 {dimension_numbers = #tpu.dot_dimension_numbers<[1], [0], [0], [1], [0, 0, 1, 1], [], []>} : vector<72x64xbf16>, vector<64x32xbf16>, vector<72x32xf32> -> vector<72x32xf32>
    %c0_31 = arith.constant 0 : index
    %c0_32 = arith.constant 0 : index
    %27 = vector.load %arg5[%c0_31, %c0_32] : memref<72x32xf32, #tpu.memory_space<vmem>>, vector<72x32xf32>
    %28 = arith.addf %27, %26 : vector<72x32xf32>
    %c0_33 = arith.constant 0 : index
    %c0_34 = arith.constant 0 : index
    %29 = vector.load %arg5[%c0_33, %c0_34] : memref<72x32xf32, #tpu.memory_space<vmem>>, vector<72x32xf32>
    tpu.vector_store %arg5[%c0_33, %c0_34], %28 {strides = array<i32>} : memref<72x32xf32, #tpu.memory_space<vmem>>, vector<72x32xf32>,
    %c0_35 = arith.constant 0 : index
    %c0_36 = arith.constant 0 : index
    %30 = vector.load %arg5[%c0_35, %c0_36] : memref<72x32xf32, #tpu.memory_space<vmem>>, vector<72x32xf32>
    %c0_37 = arith.constant 0 : index
    %c0_38 = arith.constant 0 : index
    %31 = vector.load %arg3[%c0_37, %c0_38] : memref<1x32xf32, #tpu.memory_space<vmem>>, vector<1x32xf32>
    %32 = vector.broadcast %31 : vector<1x32xf32> to vector<72x32xf32>
    %33 = arith.addf %30, %32 : vector<72x32xf32>
    %cst_39 = arith.constant 0.000000e+00 : f32
    %34 = vector.broadcast %cst_39 : f32 to vector<72x32xf32>
    %35 = arith.maximumf %33, %34 : vector<72x32xf32>
    %36 = arith.truncf %35 : vector<72x32xf32> to vector<72x32xbf16>
    %c0_40 = arith.constant 0 : index
    %c0_41 = arith.constant 0 : index
    %c0_42 = arith.constant 0 : index
    %37 = vector.load %arg4[%c0_40, %c0_41, %c0_42] : memref<1x72x32xbf16, #tpu.memory_space<vmem>>, vector<1x72x32xbf16>
    %38 = vector.shape_cast %37 : vector<1x72x32xbf16> to vector<72x32xbf16>
    %39 = vector.shape_cast %36 : vector<72x32xbf16> to vector<1x72x32xbf16>
    tpu.vector_store %arg4[%c0_40, %c0_41, %c0_42], %39 {strides = array<i32>} : memref<1x72x32xbf16, #tpu.memory_space<vmem>>, vector<1x72x32xbf16>,
    return
  }
  func.func @transform_0(%arg0: i32) -> (i32, i32, i32) {
    %c0_i32 = arith.constant 0 : i32
    %c0_i32_0 = arith.constant 0 : i32
    %c0_i32_1 = arith.constant 0 : i32
    return %arg0, %c0_i32, %c0_i32_0 : i32, i32, i32
  }
  func.func @transform_1(%arg0: i32) -> (i32, i32, i32) {
    %c0_i32 = arith.constant 0 : i32
    %c0_i32_0 = arith.constant 0 : i32
    %c0_i32_1 = arith.constant 0 : i32
    %c0_i32_2 = arith.constant 0 : i32
    return %c0_i32, %c0_i32_0, %c0_i32_1 : i32, i32, i32
  }
  func.func @transform_2(%arg0: i32) -> (i32, i32) {
    %c0_i32 = arith.constant 0 : i32
    %c0_i32_0 = arith.constant 0 : i32
    %c0_i32_1 = arith.constant 0 : i32
    return %c0_i32, %c0_i32_0 : i32, i32
  }
  func.func @transform_3(%arg0: i32) -> (i32, i32, i32) {
    %c0_i32 = arith.constant 0 : i32
    %c0_i32_0 = arith.constant 0 : i32
    %c0_i32_1 = arith.constant 0 : i32
    return %arg0, %c0_i32, %c0_i32_0 : i32, i32, i32
  }
}

module attributes {stable_mosaic.version = 11 : i64} {
  func.func @_conv_tap_kernel(%arg0: i32, %arg1: memref<1x17x128xbf16, #tpu.memory_space<vmem>>, %arg2: memref<4x128x64xbf16, #tpu.memory_space<vmem>>, %arg3: memref<1x64xf32, #tpu.memory_space<vmem>>, %arg4: memref<1x12x64xbf16, #tpu.memory_space<vmem>>, %arg5: memref<12x64xf32, #tpu.memory_space<vmem>>) attributes {dimension_semantics = [#tpu.dimension_semantics<parallel>], iteration_bounds = array<i64: 2>, scalar_prefetch = 0 : i64, scratch_operands = 1 : i64, tpu.core_type = #tpu.core_type<tc>, window_params = [{transform_indices = @transform_0, window_bounds = array<i64: 1, 17, 128>}, {pipeline_mode = #tpu.pipeline_mode<synchronous>, transform_indices = @transform_1, window_bounds = array<i64: 4, 128, 64>}, {pipeline_mode = #tpu.pipeline_mode<synchronous>, transform_indices = @transform_2, window_bounds = array<i64: 1, 64>}, {transform_indices = @transform_3, window_bounds = array<i64: 1, 12, 64>}]} {
    %c0 = arith.constant 0 : index
    %c0_0 = arith.constant 0 : index
    %c0_1 = arith.constant 0 : index
    %0 = vector.load %arg1[%c0, %c0_0, %c0_1] : memref<1x17x128xbf16, #tpu.memory_space<vmem>>, vector<1x12x128xbf16>
    %1 = vector.shape_cast %0 : vector<1x12x128xbf16> to vector<12x128xbf16>
    %c0_2 = arith.constant 0 : index
    %c0_3 = arith.constant 0 : index
    %c0_4 = arith.constant 0 : index
    %2 = vector.load %arg2[%c0_2, %c0_3, %c0_4] : memref<4x128x64xbf16, #tpu.memory_space<vmem>>, vector<1x128x64xbf16>
    %3 = vector.shape_cast %2 : vector<1x128x64xbf16> to vector<128x64xbf16>
    %cst = arith.constant dense<0.000000e+00> : vector<12x64xf32>
    %4 = tpu.matmul %1, %3, %cst {dimension_numbers = #tpu.dot_dimension_numbers<[1], [0], [0], [1], [0, 0, 1, 1], [], []>} : vector<12x128xbf16>, vector<128x64xbf16>, vector<12x64xf32> -> vector<12x64xf32>
    %c0_5 = arith.constant 0 : index
    %c0_6 = arith.constant 0 : index
    %5 = vector.load %arg5[%c0_5, %c0_6] : memref<12x64xf32, #tpu.memory_space<vmem>>, vector<12x64xf32>
    tpu.vector_store %arg5[%c0_5, %c0_6], %4 {strides = array<i32>} : memref<12x64xf32, #tpu.memory_space<vmem>>, vector<12x64xf32>,
    %c0_7 = arith.constant 0 : index
    %c1 = arith.constant 1 : index
    %c0_8 = arith.constant 0 : index
    %6 = vector.load %arg1[%c0_7, %c1, %c0_8] : memref<1x17x128xbf16, #tpu.memory_space<vmem>>, vector<1x12x128xbf16>
    %7 = vector.shape_cast %6 : vector<1x12x128xbf16> to vector<12x128xbf16>
    %c1_9 = arith.constant 1 : index
    %c0_10 = arith.constant 0 : index
    %c0_11 = arith.constant 0 : index
    %8 = vector.load %arg2[%c1_9, %c0_10, %c0_11] : memref<4x128x64xbf16, #tpu.memory_space<vmem>>, vector<1x128x64xbf16>
    %9 = vector.shape_cast %8 : vector<1x128x64xbf16> to vector<128x64xbf16>
    %cst_12 = arith.constant dense<0.000000e+00> : vector<12x64xf32>
    %10 = tpu.matmul %7, %9, %cst_12 {dimension_numbers = #tpu.dot_dimension_numbers<[1], [0], [0], [1], [0, 0, 1, 1], [], []>} : vector<12x128xbf16>, vector<128x64xbf16>, vector<12x64xf32> -> vector<12x64xf32>
    %c0_13 = arith.constant 0 : index
    %c0_14 = arith.constant 0 : index
    %11 = vector.load %arg5[%c0_13, %c0_14] : memref<12x64xf32, #tpu.memory_space<vmem>>, vector<12x64xf32>
    %12 = arith.addf %11, %10 : vector<12x64xf32>
    %c0_15 = arith.constant 0 : index
    %c0_16 = arith.constant 0 : index
    %13 = vector.load %arg5[%c0_15, %c0_16] : memref<12x64xf32, #tpu.memory_space<vmem>>, vector<12x64xf32>
    tpu.vector_store %arg5[%c0_15, %c0_16], %12 {strides = array<i32>} : memref<12x64xf32, #tpu.memory_space<vmem>>, vector<12x64xf32>,
    %c0_17 = arith.constant 0 : index
    %c4 = arith.constant 4 : index
    %c0_18 = arith.constant 0 : index
    %14 = vector.load %arg1[%c0_17, %c4, %c0_18] : memref<1x17x128xbf16, #tpu.memory_space<vmem>>, vector<1x12x128xbf16>
    %15 = vector.shape_cast %14 : vector<1x12x128xbf16> to vector<12x128xbf16>
    %c2 = arith.constant 2 : index
    %c0_19 = arith.constant 0 : index
    %c0_20 = arith.constant 0 : index
    %16 = vector.load %arg2[%c2, %c0_19, %c0_20] : memref<4x128x64xbf16, #tpu.memory_space<vmem>>, vector<1x128x64xbf16>
    %17 = vector.shape_cast %16 : vector<1x128x64xbf16> to vector<128x64xbf16>
    %cst_21 = arith.constant dense<0.000000e+00> : vector<12x64xf32>
    %18 = tpu.matmul %15, %17, %cst_21 {dimension_numbers = #tpu.dot_dimension_numbers<[1], [0], [0], [1], [0, 0, 1, 1], [], []>} : vector<12x128xbf16>, vector<128x64xbf16>, vector<12x64xf32> -> vector<12x64xf32>
    %c0_22 = arith.constant 0 : index
    %c0_23 = arith.constant 0 : index
    %19 = vector.load %arg5[%c0_22, %c0_23] : memref<12x64xf32, #tpu.memory_space<vmem>>, vector<12x64xf32>
    %20 = arith.addf %19, %18 : vector<12x64xf32>
    %c0_24 = arith.constant 0 : index
    %c0_25 = arith.constant 0 : index
    %21 = vector.load %arg5[%c0_24, %c0_25] : memref<12x64xf32, #tpu.memory_space<vmem>>, vector<12x64xf32>
    tpu.vector_store %arg5[%c0_24, %c0_25], %20 {strides = array<i32>} : memref<12x64xf32, #tpu.memory_space<vmem>>, vector<12x64xf32>,
    %c0_26 = arith.constant 0 : index
    %c5 = arith.constant 5 : index
    %c0_27 = arith.constant 0 : index
    %22 = vector.load %arg1[%c0_26, %c5, %c0_27] : memref<1x17x128xbf16, #tpu.memory_space<vmem>>, vector<1x12x128xbf16>
    %23 = vector.shape_cast %22 : vector<1x12x128xbf16> to vector<12x128xbf16>
    %c3 = arith.constant 3 : index
    %c0_28 = arith.constant 0 : index
    %c0_29 = arith.constant 0 : index
    %24 = vector.load %arg2[%c3, %c0_28, %c0_29] : memref<4x128x64xbf16, #tpu.memory_space<vmem>>, vector<1x128x64xbf16>
    %25 = vector.shape_cast %24 : vector<1x128x64xbf16> to vector<128x64xbf16>
    %cst_30 = arith.constant dense<0.000000e+00> : vector<12x64xf32>
    %26 = tpu.matmul %23, %25, %cst_30 {dimension_numbers = #tpu.dot_dimension_numbers<[1], [0], [0], [1], [0, 0, 1, 1], [], []>} : vector<12x128xbf16>, vector<128x64xbf16>, vector<12x64xf32> -> vector<12x64xf32>
    %c0_31 = arith.constant 0 : index
    %c0_32 = arith.constant 0 : index
    %27 = vector.load %arg5[%c0_31, %c0_32] : memref<12x64xf32, #tpu.memory_space<vmem>>, vector<12x64xf32>
    %28 = arith.addf %27, %26 : vector<12x64xf32>
    %c0_33 = arith.constant 0 : index
    %c0_34 = arith.constant 0 : index
    %29 = vector.load %arg5[%c0_33, %c0_34] : memref<12x64xf32, #tpu.memory_space<vmem>>, vector<12x64xf32>
    tpu.vector_store %arg5[%c0_33, %c0_34], %28 {strides = array<i32>} : memref<12x64xf32, #tpu.memory_space<vmem>>, vector<12x64xf32>,
    %c0_35 = arith.constant 0 : index
    %c0_36 = arith.constant 0 : index
    %30 = vector.load %arg5[%c0_35, %c0_36] : memref<12x64xf32, #tpu.memory_space<vmem>>, vector<12x64xf32>
    %c0_37 = arith.constant 0 : index
    %c0_38 = arith.constant 0 : index
    %31 = vector.load %arg3[%c0_37, %c0_38] : memref<1x64xf32, #tpu.memory_space<vmem>>, vector<1x64xf32>
    %32 = vector.broadcast %31 : vector<1x64xf32> to vector<12x64xf32>
    %33 = arith.addf %30, %32 : vector<12x64xf32>
    %cst_39 = arith.constant 0.000000e+00 : f32
    %34 = vector.broadcast %cst_39 : f32 to vector<12x64xf32>
    %35 = arith.maximumf %33, %34 : vector<12x64xf32>
    %36 = arith.truncf %35 : vector<12x64xf32> to vector<12x64xbf16>
    %c0_40 = arith.constant 0 : index
    %c0_41 = arith.constant 0 : index
    %c0_42 = arith.constant 0 : index
    %37 = vector.load %arg4[%c0_40, %c0_41, %c0_42] : memref<1x12x64xbf16, #tpu.memory_space<vmem>>, vector<1x12x64xbf16>
    %38 = vector.shape_cast %37 : vector<1x12x64xbf16> to vector<12x64xbf16>
    %39 = vector.shape_cast %36 : vector<12x64xbf16> to vector<1x12x64xbf16>
    tpu.vector_store %arg4[%c0_40, %c0_41, %c0_42], %39 {strides = array<i32>} : memref<1x12x64xbf16, #tpu.memory_space<vmem>>, vector<1x12x64xbf16>,
    return
  }
  func.func @transform_0(%arg0: i32) -> (i32, i32, i32) {
    %c0_i32 = arith.constant 0 : i32
    %c0_i32_0 = arith.constant 0 : i32
    %c0_i32_1 = arith.constant 0 : i32
    return %arg0, %c0_i32, %c0_i32_0 : i32, i32, i32
  }
  func.func @transform_1(%arg0: i32) -> (i32, i32, i32) {
    %c0_i32 = arith.constant 0 : i32
    %c0_i32_0 = arith.constant 0 : i32
    %c0_i32_1 = arith.constant 0 : i32
    %c0_i32_2 = arith.constant 0 : i32
    return %c0_i32, %c0_i32_0, %c0_i32_1 : i32, i32, i32
  }
  func.func @transform_2(%arg0: i32) -> (i32, i32) {
    %c0_i32 = arith.constant 0 : i32
    %c0_i32_0 = arith.constant 0 : i32
    %c0_i32_1 = arith.constant 0 : i32
    return %c0_i32, %c0_i32_0 : i32, i32
  }
  func.func @transform_3(%arg0: i32) -> (i32, i32, i32) {
    %c0_i32 = arith.constant 0 : i32
    %c0_i32_0 = arith.constant 0 : i32
    %c0_i32_1 = arith.constant 0 : i32
    return %arg0, %c0_i32, %c0_i32_0 : i32, i32, i32
  }
}

module attributes {stable_mosaic.version = 11 : i64} {
  func.func @_conv_tap_kernel(%arg0: i32, %arg1: memref<1x11x64xbf16, #tpu.memory_space<vmem>>, %arg2: memref<9x64x64xbf16, #tpu.memory_space<vmem>>, %arg3: memref<1x64xf32, #tpu.memory_space<vmem>>, %arg4: memref<1x3x64xbf16, #tpu.memory_space<vmem>>, %arg5: memref<3x64xf32, #tpu.memory_space<vmem>>) attributes {dimension_semantics = [#tpu.dimension_semantics<parallel>], iteration_bounds = array<i64: 2>, scalar_prefetch = 0 : i64, scratch_operands = 1 : i64, tpu.core_type = #tpu.core_type<tc>, window_params = [{transform_indices = @transform_0, window_bounds = array<i64: 1, 11, 64>}, {pipeline_mode = #tpu.pipeline_mode<synchronous>, transform_indices = @transform_1, window_bounds = array<i64: 9, 64, 64>}, {pipeline_mode = #tpu.pipeline_mode<synchronous>, transform_indices = @transform_2, window_bounds = array<i64: 1, 64>}, {transform_indices = @transform_3, window_bounds = array<i64: 1, 3, 64>}]} {
    %c0 = arith.constant 0 : index
    %c0_0 = arith.constant 0 : index
    %c0_1 = arith.constant 0 : index
    %0 = vector.load %arg1[%c0, %c0_0, %c0_1] : memref<1x11x64xbf16, #tpu.memory_space<vmem>>, vector<1x3x64xbf16>
    %1 = vector.shape_cast %0 : vector<1x3x64xbf16> to vector<3x64xbf16>
    %c0_2 = arith.constant 0 : index
    %c0_3 = arith.constant 0 : index
    %c0_4 = arith.constant 0 : index
    %2 = vector.load %arg2[%c0_2, %c0_3, %c0_4] : memref<9x64x64xbf16, #tpu.memory_space<vmem>>, vector<1x64x64xbf16>
    %3 = vector.shape_cast %2 : vector<1x64x64xbf16> to vector<64x64xbf16>
    %cst = arith.constant dense<0.000000e+00> : vector<3x64xf32>
    %4 = tpu.matmul %1, %3, %cst {dimension_numbers = #tpu.dot_dimension_numbers<[1], [0], [0], [1], [0, 0, 1, 1], [], []>} : vector<3x64xbf16>, vector<64x64xbf16>, vector<3x64xf32> -> vector<3x64xf32>
    %c0_5 = arith.constant 0 : index
    %c0_6 = arith.constant 0 : index
    %5 = vector.load %arg5[%c0_5, %c0_6] : memref<3x64xf32, #tpu.memory_space<vmem>>, vector<3x64xf32>
    tpu.vector_store %arg5[%c0_5, %c0_6], %4 {strides = array<i32>} : memref<3x64xf32, #tpu.memory_space<vmem>>, vector<3x64xf32>,
    %c0_7 = arith.constant 0 : index
    %c1 = arith.constant 1 : index
    %c0_8 = arith.constant 0 : index
    %6 = vector.load %arg1[%c0_7, %c1, %c0_8] : memref<1x11x64xbf16, #tpu.memory_space<vmem>>, vector<1x3x64xbf16>
    %7 = vector.shape_cast %6 : vector<1x3x64xbf16> to vector<3x64xbf16>
    %c1_9 = arith.constant 1 : index
    %c0_10 = arith.constant 0 : index
    %c0_11 = arith.constant 0 : index
    %8 = vector.load %arg2[%c1_9, %c0_10, %c0_11] : memref<9x64x64xbf16, #tpu.memory_space<vmem>>, vector<1x64x64xbf16>
    %9 = vector.shape_cast %8 : vector<1x64x64xbf16> to vector<64x64xbf16>
    %cst_12 = arith.constant dense<0.000000e+00> : vector<3x64xf32>
    %10 = tpu.matmul %7, %9, %cst_12 {dimension_numbers = #tpu.dot_dimension_numbers<[1], [0], [0], [1], [0, 0, 1, 1], [], []>} : vector<3x64xbf16>, vector<64x64xbf16>, vector<3x64xf32> -> vector<3x64xf32>
    %c0_13 = arith.constant 0 : index
    %c0_14 = arith.constant 0 : index
    %11 = vector.load %arg5[%c0_13, %c0_14] : memref<3x64xf32, #tpu.memory_space<vmem>>, vector<3x64xf32>
    %12 = arith.addf %11, %10 : vector<3x64xf32>
    %c0_15 = arith.constant 0 : index
    %c0_16 = arith.constant 0 : index
    %13 = vector.load %arg5[%c0_15, %c0_16] : memref<3x64xf32, #tpu.memory_space<vmem>>, vector<3x64xf32>
    tpu.vector_store %arg5[%c0_15, %c0_16], %12 {strides = array<i32>} : memref<3x64xf32, #tpu.memory_space<vmem>>, vector<3x64xf32>,
    %c0_17 = arith.constant 0 : index
    %c2 = arith.constant 2 : index
    %c0_18 = arith.constant 0 : index
    %14 = vector.load %arg1[%c0_17, %c2, %c0_18] : memref<1x11x64xbf16, #tpu.memory_space<vmem>>, vector<1x3x64xbf16>
    %15 = vector.shape_cast %14 : vector<1x3x64xbf16> to vector<3x64xbf16>
    %c2_19 = arith.constant 2 : index
    %c0_20 = arith.constant 0 : index
    %c0_21 = arith.constant 0 : index
    %16 = vector.load %arg2[%c2_19, %c0_20, %c0_21] : memref<9x64x64xbf16, #tpu.memory_space<vmem>>, vector<1x64x64xbf16>
    %17 = vector.shape_cast %16 : vector<1x64x64xbf16> to vector<64x64xbf16>
    %cst_22 = arith.constant dense<0.000000e+00> : vector<3x64xf32>
    %18 = tpu.matmul %15, %17, %cst_22 {dimension_numbers = #tpu.dot_dimension_numbers<[1], [0], [0], [1], [0, 0, 1, 1], [], []>} : vector<3x64xbf16>, vector<64x64xbf16>, vector<3x64xf32> -> vector<3x64xf32>
    %c0_23 = arith.constant 0 : index
    %c0_24 = arith.constant 0 : index
    %19 = vector.load %arg5[%c0_23, %c0_24] : memref<3x64xf32, #tpu.memory_space<vmem>>, vector<3x64xf32>
    %20 = arith.addf %19, %18 : vector<3x64xf32>
    %c0_25 = arith.constant 0 : index
    %c0_26 = arith.constant 0 : index
    %21 = vector.load %arg5[%c0_25, %c0_26] : memref<3x64xf32, #tpu.memory_space<vmem>>, vector<3x64xf32>
    tpu.vector_store %arg5[%c0_25, %c0_26], %20 {strides = array<i32>} : memref<3x64xf32, #tpu.memory_space<vmem>>, vector<3x64xf32>,
    %c0_27 = arith.constant 0 : index
    %c3 = arith.constant 3 : index
    %c0_28 = arith.constant 0 : index
    %22 = vector.load %arg1[%c0_27, %c3, %c0_28] : memref<1x11x64xbf16, #tpu.memory_space<vmem>>, vector<1x3x64xbf16>
    %23 = vector.shape_cast %22 : vector<1x3x64xbf16> to vector<3x64xbf16>
    %c3_29 = arith.constant 3 : index
    %c0_30 = arith.constant 0 : index
    %c0_31 = arith.constant 0 : index
    %24 = vector.load %arg2[%c3_29, %c0_30, %c0_31] : memref<9x64x64xbf16, #tpu.memory_space<vmem>>, vector<1x64x64xbf16>
    %25 = vector.shape_cast %24 : vector<1x64x64xbf16> to vector<64x64xbf16>
    %cst_32 = arith.constant dense<0.000000e+00> : vector<3x64xf32>
    %26 = tpu.matmul %23, %25, %cst_32 {dimension_numbers = #tpu.dot_dimension_numbers<[1], [0], [0], [1], [0, 0, 1, 1], [], []>} : vector<3x64xbf16>, vector<64x64xbf16>, vector<3x64xf32> -> vector<3x64xf32>
    %c0_33 = arith.constant 0 : index
    %c0_34 = arith.constant 0 : index
    %27 = vector.load %arg5[%c0_33, %c0_34] : memref<3x64xf32, #tpu.memory_space<vmem>>, vector<3x64xf32>
    %28 = arith.addf %27, %26 : vector<3x64xf32>
    %c0_35 = arith.constant 0 : index
    %c0_36 = arith.constant 0 : index
    %29 = vector.load %arg5[%c0_35, %c0_36] : memref<3x64xf32, #tpu.memory_space<vmem>>, vector<3x64xf32>
    tpu.vector_store %arg5[%c0_35, %c0_36], %28 {strides = array<i32>} : memref<3x64xf32, #tpu.memory_space<vmem>>, vector<3x64xf32>,
    %c0_37 = arith.constant 0 : index
    %c4 = arith.constant 4 : index
    %c0_38 = arith.constant 0 : index
    %30 = vector.load %arg1[%c0_37, %c4, %c0_38] : memref<1x11x64xbf16, #tpu.memory_space<vmem>>, vector<1x3x64xbf16>
    %31 = vector.shape_cast %30 : vector<1x3x64xbf16> to vector<3x64xbf16>
    %c4_39 = arith.constant 4 : index
    %c0_40 = arith.constant 0 : index
    %c0_41 = arith.constant 0 : index
    %32 = vector.load %arg2[%c4_39, %c0_40, %c0_41] : memref<9x64x64xbf16, #tpu.memory_space<vmem>>, vector<1x64x64xbf16>
    %33 = vector.shape_cast %32 : vector<1x64x64xbf16> to vector<64x64xbf16>
    %cst_42 = arith.constant dense<0.000000e+00> : vector<3x64xf32>
    %34 = tpu.matmul %31, %33, %cst_42 {dimension_numbers = #tpu.dot_dimension_numbers<[1], [0], [0], [1], [0, 0, 1, 1], [], []>} : vector<3x64xbf16>, vector<64x64xbf16>, vector<3x64xf32> -> vector<3x64xf32>
    %c0_43 = arith.constant 0 : index
    %c0_44 = arith.constant 0 : index
    %35 = vector.load %arg5[%c0_43, %c0_44] : memref<3x64xf32, #tpu.memory_space<vmem>>, vector<3x64xf32>
    %36 = arith.addf %35, %34 : vector<3x64xf32>
    %c0_45 = arith.constant 0 : index
    %c0_46 = arith.constant 0 : index
    %37 = vector.load %arg5[%c0_45, %c0_46] : memref<3x64xf32, #tpu.memory_space<vmem>>, vector<3x64xf32>
    tpu.vector_store %arg5[%c0_45, %c0_46], %36 {strides = array<i32>} : memref<3x64xf32, #tpu.memory_space<vmem>>, vector<3x64xf32>,
    %c0_47 = arith.constant 0 : index
    %c5 = arith.constant 5 : index
    %c0_48 = arith.constant 0 : index
    %38 = vector.load %arg1[%c0_47, %c5, %c0_48] : memref<1x11x64xbf16, #tpu.memory_space<vmem>>, vector<1x3x64xbf16>
    %39 = vector.shape_cast %38 : vector<1x3x64xbf16> to vector<3x64xbf16>
    %c5_49 = arith.constant 5 : index
    %c0_50 = arith.constant 0 : index
    %c0_51 = arith.constant 0 : index
    %40 = vector.load %arg2[%c5_49, %c0_50, %c0_51] : memref<9x64x64xbf16, #tpu.memory_space<vmem>>, vector<1x64x64xbf16>
    %41 = vector.shape_cast %40 : vector<1x64x64xbf16> to vector<64x64xbf16>
    %cst_52 = arith.constant dense<0.000000e+00> : vector<3x64xf32>
    %42 = tpu.matmul %39, %41, %cst_52 {dimension_numbers = #tpu.dot_dimension_numbers<[1], [0], [0], [1], [0, 0, 1, 1], [], []>} : vector<3x64xbf16>, vector<64x64xbf16>, vector<3x64xf32> -> vector<3x64xf32>
    %c0_53 = arith.constant 0 : index
    %c0_54 = arith.constant 0 : index
    %43 = vector.load %arg5[%c0_53, %c0_54] : memref<3x64xf32, #tpu.memory_space<vmem>>, vector<3x64xf32>
    %44 = arith.addf %43, %42 : vector<3x64xf32>
    %c0_55 = arith.constant 0 : index
    %c0_56 = arith.constant 0 : index
    %45 = vector.load %arg5[%c0_55, %c0_56] : memref<3x64xf32, #tpu.memory_space<vmem>>, vector<3x64xf32>
    tpu.vector_store %arg5[%c0_55, %c0_56], %44 {strides = array<i32>} : memref<3x64xf32, #tpu.memory_space<vmem>>, vector<3x64xf32>,
    %c0_57 = arith.constant 0 : index
    %c6 = arith.constant 6 : index
    %c0_58 = arith.constant 0 : index
    %46 = vector.load %arg1[%c0_57, %c6, %c0_58] : memref<1x11x64xbf16, #tpu.memory_space<vmem>>, vector<1x3x64xbf16>
    %47 = vector.shape_cast %46 : vector<1x3x64xbf16> to vector<3x64xbf16>
    %c6_59 = arith.constant 6 : index
    %c0_60 = arith.constant 0 : index
    %c0_61 = arith.constant 0 : index
    %48 = vector.load %arg2[%c6_59, %c0_60, %c0_61] : memref<9x64x64xbf16, #tpu.memory_space<vmem>>, vector<1x64x64xbf16>
    %49 = vector.shape_cast %48 : vector<1x64x64xbf16> to vector<64x64xbf16>
    %cst_62 = arith.constant dense<0.000000e+00> : vector<3x64xf32>
    %50 = tpu.matmul %47, %49, %cst_62 {dimension_numbers = #tpu.dot_dimension_numbers<[1], [0], [0], [1], [0, 0, 1, 1], [], []>} : vector<3x64xbf16>, vector<64x64xbf16>, vector<3x64xf32> -> vector<3x64xf32>
    %c0_63 = arith.constant 0 : index
    %c0_64 = arith.constant 0 : index
    %51 = vector.load %arg5[%c0_63, %c0_64] : memref<3x64xf32, #tpu.memory_space<vmem>>, vector<3x64xf32>
    %52 = arith.addf %51, %50 : vector<3x64xf32>
    %c0_65 = arith.constant 0 : index
    %c0_66 = arith.constant 0 : index
    %53 = vector.load %arg5[%c0_65, %c0_66] : memref<3x64xf32, #tpu.memory_space<vmem>>, vector<3x64xf32>
    tpu.vector_store %arg5[%c0_65, %c0_66], %52 {strides = array<i32>} : memref<3x64xf32, #tpu.memory_space<vmem>>, vector<3x64xf32>,
    %c0_67 = arith.constant 0 : index
    %c7 = arith.constant 7 : index
    %c0_68 = arith.constant 0 : index
    %54 = vector.load %arg1[%c0_67, %c7, %c0_68] : memref<1x11x64xbf16, #tpu.memory_space<vmem>>, vector<1x3x64xbf16>
    %55 = vector.shape_cast %54 : vector<1x3x64xbf16> to vector<3x64xbf16>
    %c7_69 = arith.constant 7 : index
    %c0_70 = arith.constant 0 : index
    %c0_71 = arith.constant 0 : index
    %56 = vector.load %arg2[%c7_69, %c0_70, %c0_71] : memref<9x64x64xbf16, #tpu.memory_space<vmem>>, vector<1x64x64xbf16>
    %57 = vector.shape_cast %56 : vector<1x64x64xbf16> to vector<64x64xbf16>
    %cst_72 = arith.constant dense<0.000000e+00> : vector<3x64xf32>
    %58 = tpu.matmul %55, %57, %cst_72 {dimension_numbers = #tpu.dot_dimension_numbers<[1], [0], [0], [1], [0, 0, 1, 1], [], []>} : vector<3x64xbf16>, vector<64x64xbf16>, vector<3x64xf32> -> vector<3x64xf32>
    %c0_73 = arith.constant 0 : index
    %c0_74 = arith.constant 0 : index
    %59 = vector.load %arg5[%c0_73, %c0_74] : memref<3x64xf32, #tpu.memory_space<vmem>>, vector<3x64xf32>
    %60 = arith.addf %59, %58 : vector<3x64xf32>
    %c0_75 = arith.constant 0 : index
    %c0_76 = arith.constant 0 : index
    %61 = vector.load %arg5[%c0_75, %c0_76] : memref<3x64xf32, #tpu.memory_space<vmem>>, vector<3x64xf32>
    tpu.vector_store %arg5[%c0_75, %c0_76], %60 {strides = array<i32>} : memref<3x64xf32, #tpu.memory_space<vmem>>, vector<3x64xf32>,
    %c0_77 = arith.constant 0 : index
    %c8 = arith.constant 8 : index
    %c0_78 = arith.constant 0 : index
    %62 = vector.load %arg1[%c0_77, %c8, %c0_78] : memref<1x11x64xbf16, #tpu.memory_space<vmem>>, vector<1x3x64xbf16>
    %63 = vector.shape_cast %62 : vector<1x3x64xbf16> to vector<3x64xbf16>
    %c8_79 = arith.constant 8 : index
    %c0_80 = arith.constant 0 : index
    %c0_81 = arith.constant 0 : index
    %64 = vector.load %arg2[%c8_79, %c0_80, %c0_81] : memref<9x64x64xbf16, #tpu.memory_space<vmem>>, vector<1x64x64xbf16>
    %65 = vector.shape_cast %64 : vector<1x64x64xbf16> to vector<64x64xbf16>
    %cst_82 = arith.constant dense<0.000000e+00> : vector<3x64xf32>
    %66 = tpu.matmul %63, %65, %cst_82 {dimension_numbers = #tpu.dot_dimension_numbers<[1], [0], [0], [1], [0, 0, 1, 1], [], []>} : vector<3x64xbf16>, vector<64x64xbf16>, vector<3x64xf32> -> vector<3x64xf32>
    %c0_83 = arith.constant 0 : index
    %c0_84 = arith.constant 0 : index
    %67 = vector.load %arg5[%c0_83, %c0_84] : memref<3x64xf32, #tpu.memory_space<vmem>>, vector<3x64xf32>
    %68 = arith.addf %67, %66 : vector<3x64xf32>
    %c0_85 = arith.constant 0 : index
    %c0_86 = arith.constant 0 : index
    %69 = vector.load %arg5[%c0_85, %c0_86] : memref<3x64xf32, #tpu.memory_space<vmem>>, vector<3x64xf32>
    tpu.vector_store %arg5[%c0_85, %c0_86], %68 {strides = array<i32>} : memref<3x64xf32, #tpu.memory_space<vmem>>, vector<3x64xf32>,
    %c0_87 = arith.constant 0 : index
    %c0_88 = arith.constant 0 : index
    %70 = vector.load %arg5[%c0_87, %c0_88] : memref<3x64xf32, #tpu.memory_space<vmem>>, vector<3x64xf32>
    %c0_89 = arith.constant 0 : index
    %c0_90 = arith.constant 0 : index
    %71 = vector.load %arg3[%c0_89, %c0_90] : memref<1x64xf32, #tpu.memory_space<vmem>>, vector<1x64xf32>
    %72 = vector.broadcast %71 : vector<1x64xf32> to vector<3x64xf32>
    %73 = arith.addf %70, %72 : vector<3x64xf32>
    %cst_91 = arith.constant 0.000000e+00 : f32
    %74 = vector.broadcast %cst_91 : f32 to vector<3x64xf32>
    %75 = arith.maximumf %73, %74 : vector<3x64xf32>
    %76 = arith.truncf %75 : vector<3x64xf32> to vector<3x64xbf16>
    %c0_92 = arith.constant 0 : index
    %c0_93 = arith.constant 0 : index
    %c0_94 = arith.constant 0 : index
    %77 = vector.load %arg4[%c0_92, %c0_93, %c0_94] : memref<1x3x64xbf16, #tpu.memory_space<vmem>>, vector<1x3x64xbf16>
    %78 = vector.shape_cast %77 : vector<1x3x64xbf16> to vector<3x64xbf16>
    %79 = vector.shape_cast %76 : vector<3x64xbf16> to vector<1x3x64xbf16>
    tpu.vector_store %arg4[%c0_92, %c0_93, %c0_94], %79 {strides = array<i32>} : memref<1x3x64xbf16, #tpu.memory_space<vmem>>, vector<1x3x64xbf16>,
    return
  }
  func.func @transform_0(%arg0: i32) -> (i32, i32, i32) {
    %c0_i32 = arith.constant 0 : i32
    %c0_i32_0 = arith.constant 0 : i32
    %c0_i32_1 = arith.constant 0 : i32
    return %arg0, %c0_i32, %c0_i32_0 : i32, i32, i32
  }
  func.func @transform_1(%arg0: i32) -> (i32, i32, i32) {
    %c0_i32 = arith.constant 0 : i32
    %c0_i32_0 = arith.constant 0 : i32
    %c0_i32_1 = arith.constant 0 : i32
    %c0_i32_2 = arith.constant 0 : i32
    return %c0_i32, %c0_i32_0, %c0_i32_1 : i32, i32, i32
  }
  func.func @transform_2(%arg0: i32) -> (i32, i32) {
    %c0_i32 = arith.constant 0 : i32
    %c0_i32_0 = arith.constant 0 : i32
    %c0_i32_1 = arith.constant 0 : i32
    return %c0_i32, %c0_i32_0 : i32, i32
  }
  func.func @transform_3(%arg0: i32) -> (i32, i32, i32) {
    %c0_i32 = arith.constant 0 : i32
    %c0_i32_0 = arith.constant 0 : i32
    %c0_i32_1 = arith.constant 0 : i32
    return %arg0, %c0_i32, %c0_i32_0 : i32, i32, i32
  }
}

module attributes {stable_mosaic.version = 11 : i64} {
  func.func @_fused_mlp_kernel(%arg0: i32, %arg1: memref<2x64xbf16, #tpu.memory_space<vmem>>, %arg2: memref<64x32xbf16, #tpu.memory_space<vmem>>, %arg3: memref<1x32xf32, #tpu.memory_space<vmem>>, %arg4: memref<32x32xbf16, #tpu.memory_space<vmem>>, %arg5: memref<1x32xf32, #tpu.memory_space<vmem>>, %arg6: memref<32x6xbf16, #tpu.memory_space<vmem>>, %arg7: memref<1x6xf32, #tpu.memory_space<vmem>>, %arg8: memref<2x6xf32, #tpu.memory_space<vmem>>) attributes {dimension_semantics = [#tpu.dimension_semantics<parallel>], iteration_bounds = array<i64: 1>, scalar_prefetch = 0 : i64, scratch_operands = 0 : i64, tpu.core_type = #tpu.core_type<tc>, window_params = [{transform_indices = @transform_0, window_bounds = array<i64: 2, 64>}, {pipeline_mode = #tpu.pipeline_mode<synchronous>, transform_indices = @transform_1, window_bounds = array<i64: 64, 32>}, {pipeline_mode = #tpu.pipeline_mode<synchronous>, transform_indices = @transform_2, window_bounds = array<i64: 1, 32>}, {pipeline_mode = #tpu.pipeline_mode<synchronous>, transform_indices = @transform_3, window_bounds = array<i64: 32, 32>}, {pipeline_mode = #tpu.pipeline_mode<synchronous>, transform_indices = @transform_4, window_bounds = array<i64: 1, 32>}, {pipeline_mode = #tpu.pipeline_mode<synchronous>, transform_indices = @transform_5, window_bounds = array<i64: 32, 6>}, {pipeline_mode = #tpu.pipeline_mode<synchronous>, transform_indices = @transform_6, window_bounds = array<i64: 1, 6>}, {transform_indices = @transform_7, window_bounds = array<i64: 2, 6>}]} {
    %c0 = arith.constant 0 : index
    %c0_0 = arith.constant 0 : index
    %0 = vector.load %arg1[%c0, %c0_0] : memref<2x64xbf16, #tpu.memory_space<vmem>>, vector<2x64xbf16>
    %c0_1 = arith.constant 0 : index
    %c0_2 = arith.constant 0 : index
    %1 = vector.load %arg2[%c0_1, %c0_2] : memref<64x32xbf16, #tpu.memory_space<vmem>>, vector<64x32xbf16>
    %cst = arith.constant dense<0.000000e+00> : vector<2x32xf32>
    %2 = tpu.matmul %0, %1, %cst {dimension_numbers = #tpu.dot_dimension_numbers<[1], [0], [0], [1], [0, 0, 1, 1], [], []>} : vector<2x64xbf16>, vector<64x32xbf16>, vector<2x32xf32> -> vector<2x32xf32>
    %c0_3 = arith.constant 0 : index
    %c0_4 = arith.constant 0 : index
    %3 = vector.load %arg3[%c0_3, %c0_4] : memref<1x32xf32, #tpu.memory_space<vmem>>, vector<1x32xf32>
    %4 = vector.broadcast %3 : vector<1x32xf32> to vector<2x32xf32>
    %5 = arith.addf %2, %4 : vector<2x32xf32>
    %cst_5 = arith.constant 0.000000e+00 : f32
    %6 = vector.broadcast %cst_5 : f32 to vector<2x32xf32>
    %7 = arith.maximumf %5, %6 : vector<2x32xf32>
    %8 = arith.truncf %7 : vector<2x32xf32> to vector<2x32xbf16>
    %c0_6 = arith.constant 0 : index
    %c0_7 = arith.constant 0 : index
    %9 = vector.load %arg4[%c0_6, %c0_7] : memref<32x32xbf16, #tpu.memory_space<vmem>>, vector<32x32xbf16>
    %cst_8 = arith.constant dense<0.000000e+00> : vector<2x32xf32>
    %10 = tpu.matmul %8, %9, %cst_8 {dimension_numbers = #tpu.dot_dimension_numbers<[1], [0], [0], [1], [0, 0, 1, 1], [], []>} : vector<2x32xbf16>, vector<32x32xbf16>, vector<2x32xf32> -> vector<2x32xf32>
    %c0_9 = arith.constant 0 : index
    %c0_10 = arith.constant 0 : index
    %11 = vector.load %arg5[%c0_9, %c0_10] : memref<1x32xf32, #tpu.memory_space<vmem>>, vector<1x32xf32>
    %12 = vector.broadcast %11 : vector<1x32xf32> to vector<2x32xf32>
    %13 = arith.addf %10, %12 : vector<2x32xf32>
    %cst_11 = arith.constant 0.000000e+00 : f32
    %14 = vector.broadcast %cst_11 : f32 to vector<2x32xf32>
    %15 = arith.maximumf %13, %14 : vector<2x32xf32>
    %16 = arith.truncf %15 : vector<2x32xf32> to vector<2x32xbf16>
    %c0_12 = arith.constant 0 : index
    %c0_13 = arith.constant 0 : index
    %17 = vector.load %arg6[%c0_12, %c0_13] : memref<32x6xbf16, #tpu.memory_space<vmem>>, vector<32x6xbf16>
    %cst_14 = arith.constant dense<0.000000e+00> : vector<2x6xf32>
    %18 = tpu.matmul %16, %17, %cst_14 {dimension_numbers = #tpu.dot_dimension_numbers<[1], [0], [0], [1], [0, 0, 1, 1], [], []>} : vector<2x32xbf16>, vector<32x6xbf16>, vector<2x6xf32> -> vector<2x6xf32>
    %c0_15 = arith.constant 0 : index
    %c0_16 = arith.constant 0 : index
    %19 = vector.load %arg7[%c0_15, %c0_16] : memref<1x6xf32, #tpu.memory_space<vmem>>, vector<1x6xf32>
    %20 = vector.broadcast %19 : vector<1x6xf32> to vector<2x6xf32>
    %21 = arith.addf %18, %20 : vector<2x6xf32>
    %c0_17 = arith.constant 0 : index
    %c0_18 = arith.constant 0 : index
    %22 = vector.load %arg8[%c0_17, %c0_18] : memref<2x6xf32, #tpu.memory_space<vmem>>, vector<2x6xf32>
    tpu.vector_store %arg8[%c0_17, %c0_18], %21 {strides = array<i32>} : memref<2x6xf32, #tpu.memory_space<vmem>>, vector<2x6xf32>,
    return
  }
  func.func @transform_0(%arg0: i32) -> (i32, i32) {
    %c0_i32 = arith.constant 0 : i32
    %c0_i32_0 = arith.constant 0 : i32
    return %arg0, %c0_i32 : i32, i32
  }
  func.func @transform_1(%arg0: i32) -> (i32, i32) {
    %c0_i32 = arith.constant 0 : i32
    %c0_i32_0 = arith.constant 0 : i32
    %c0_i32_1 = arith.constant 0 : i32
    return %c0_i32, %c0_i32_0 : i32, i32
  }
  func.func @transform_2(%arg0: i32) -> (i32, i32) {
    %c0_i32 = arith.constant 0 : i32
    %c0_i32_0 = arith.constant 0 : i32
    %c0_i32_1 = arith.constant 0 : i32
    return %c0_i32, %c0_i32_0 : i32, i32
  }
  func.func @transform_3(%arg0: i32) -> (i32, i32) {
    %c0_i32 = arith.constant 0 : i32
    %c0_i32_0 = arith.constant 0 : i32
    %c0_i32_1 = arith.constant 0 : i32
    return %c0_i32, %c0_i32_0 : i32, i32
  }
  func.func @transform_4(%arg0: i32) -> (i32, i32) {
    %c0_i32 = arith.constant 0 : i32
    %c0_i32_0 = arith.constant 0 : i32
    %c0_i32_1 = arith.constant 0 : i32
    return %c0_i32, %c0_i32_0 : i32, i32
  }
  func.func @transform_5(%arg0: i32) -> (i32, i32) {
    %c0_i32 = arith.constant 0 : i32
    %c0_i32_0 = arith.constant 0 : i32
    %c0_i32_1 = arith.constant 0 : i32
    return %c0_i32, %c0_i32_0 : i32, i32
  }
  func.func @transform_6(%arg0: i32) -> (i32, i32) {
    %c0_i32 = arith.constant 0 : i32
    %c0_i32_0 = arith.constant 0 : i32
    %c0_i32_1 = arith.constant 0 : i32
    return %c0_i32, %c0_i32_0 : i32, i32
  }
  func.func @transform_7(%arg0: i32) -> (i32, i32) {
    %c0_i32 = arith.constant 0 : i32
    %c0_i32_0 = arith.constant 0 : i32
    return %arg0, %c0_i32 : i32, i32
  }
}

</mosaic_0001>

<llo_original>
// kernel: cnn_q_function_forward.4
$region0: #{cnn_q_function_forward.4}
  #allocation0 [shape = 'u32[]', space=smem, size = 0x4, offset = 0x4, fixed_abs, tag = 'smem constant byte address 0x4 - core index']
  #allocation1 [shape = 'u32[144,128]{1,0:T(1,128)}', space=vmem, size = 0x12000, scoped, tag = 'internal scratch']
  #allocation2 [shape = 'f32[72,32]{1,0:T(8,128)}', space=vmem, size = 0x9000, scoped, tag = 'scratch operand']
  %s0 = inlined_call_operand.vmem [shape: bf16[2,82,64], index: 0, kind: input, shape index: {}]
  %s1 = inlined_call_operand.vmem [shape: bf16[4,64,32], index: 1, kind: input, shape index: {}]
  %s2 = inlined_call_operand.vmem [shape: f32[1,32], index: 2, kind: input, shape index: {}]
  %s3 = inlined_call_operand.vmem [shape: bf16[2,72,32], index: 3, kind: output, shape index: {}]
  %s4 = sld [smem:[#allocation0]]
  $region45: #{cnn_q_function_forward.4} parent=0
    _
  %s6 = ssub.s32 1, %s4
  %s7 = scalar_select 0, %s6, %s4
  loop: start=0, step=1, limit=4
  $region2: #{cnn_q_function_forward.4} parent=0 // loop_pre_header
    _
  $region3: #{cnn_q_function_forward.4} parent=0 // loop_header
    %s9 = sphi 0, %s13
    %p10 = scmp.ge.s32.totalorder %s9, 4
    %s19 = sphi 0, %s21
    %s22 = sphi 0, %s19
    %s23 = sphi 0, %s22
    %s39 = sphi 0, %s23
    %s43 = sphi 0, %s43
    %s45 = sphi 0, %s43
    %s46 = sphi 0, %s45
    %s60 = sphi 0, %s46
    %s64 = sphi 0, %s64
    %s66 = sphi 0, %s64
    %s67 = sphi 0, %s66
    %s81 = sphi 0, %s67
    %s87 = sphi 0, %s89
    %s90 = sphi 0, %s87
    %s91 = sphi 0, %s90
    %s107 = sphi 0, %s91
  $region4: #{cnn_q_function_forward.4} parent=0 // loop_header_branch
    %12 = sbr.rel (%p10) target = $region8
  $region5: #{cnn_q_function_forward.4} parent=0 // loop_body
    %s14 = ssub.s32 %s9, 1
    %s15 = ssub.s32 %s9, 2
    %s16 = sadd.s32 %s9, 1
    %s17 = ssub.s32 %s9, %s16
    %p18 = scmp.eq.s32.totalorder %s17, 0
    %s20 = sadd.s32 %s19, 1
    %s21 = scalar_select %p18, %s19, %s20
    %p24 = pneg %p18
    %p25 = scmp.eq.s32.totalorder %s9, 1
    %p26 = por %p24, %p25
    %p27 = scmp.ne.s32.totalorder %s19, %s22
    %p28 = scmp.eq.s32.totalorder %s9, 0
    %p29 = por %p27, %p28
    %p30 = scmp.ne.s32.totalorder %s19, %s22
    %p31 = scmp.eq.s32.totalorder %s14, 1
    %p32 = por %p30, %p31
    %p33 = scmp.ne.s32.totalorder %s22, %s23
    %p34 = scmp.eq.s32.totalorder %s14, 0
    %p35 = por %p33, %p34
    %p36 = scmp.ne.s32.totalorder %s22, %s23
    %p37 = scmp.eq.s32.totalorder %s15, 1
    %p38 = por %p36, %p37
    %p40 = scmp.ne.s32.totalorder %s23, %s39
    %p41 = scmp.eq.s32.totalorder %s15, 0
    %p42 = por %p40, %p41
    %s44 = sadd.s32 %s43, 1
    %p47 = scmp.eq.s32.totalorder %s9, 1
    %p48 = scmp.ne.s32.totalorder %s43, %s45
    %p49 = scmp.eq.s32.totalorder %s9, 0
    %p50 = por %p48, %p49
    %p51 = scmp.ne.s32.totalorder %s43, %s45
    %p52 = scmp.eq.s32.totalorder %s14, 1
    %p53 = por %p51, %p52
    %p54 = scmp.ne.s32.totalorder %s45, %s46
    %p55 = scmp.eq.s32.totalorder %s14, 0
    %p56 = por %p54, %p55
    %p57 = scmp.ne.s32.totalorder %s45, %s46
    %p58 = scmp.eq.s32.totalorder %s15, 1
    %p59 = por %p57, %p58
    %p61 = scmp.ne.s32.totalorder %s46, %s60
    %p62 = scmp.eq.s32.totalorder %s15, 0
    %p63 = por %p61, %p62
    %s65 = sadd.s32 %s64, 1
    %p68 = scmp.eq.s32.totalorder %s9, 1
    %p69 = scmp.ne.s32.totalorder %s64, %s66
    %p70 = scmp.eq.s32.totalorder %s9, 0
    %p71 = por %p69, %p70
    %p72 = scmp.ne.s32.totalorder %s64, %s66
    %p73 = scmp.eq.s32.totalorder %s14, 1
    %p74 = por %p72, %p73
    %p75 = scmp.ne.s32.totalorder %s66, %s67
    %p76 = scmp.eq.s32.totalorder %s14, 0
    %p77 = por %p75, %p76
    %p78 = scmp.ne.s32.totalorder %s66, %s67
    %p79 = scmp.eq.s32.totalorder %s15, 1
    %p80 = por %p78, %p79
    %p82 = scmp.ne.s32.totalorder %s67, %s81
    %p83 = scmp.eq.s32.totalorder %s15, 0
    %p84 = por %p82, %p83
    %s85 = ssub.s32 %s9, %s16
    %p86 = scmp.eq.s32.totalorder %s85, 0
    %s88 = sadd.s32 %s87, 1
    %s89 = scalar_select %p86, %s87, %s88
    %p92 = pneg %p86
    %p93 = scmp.eq.s32.totalorder %s9, 1
    %p94 = por %p92, %p93
    %p95 = scmp.ne.s32.totalorder %s87, %s90
    %p96 = scmp.eq.s32.totalorder %s9, 0
    %p97 = por %p95, %p96
    %p98 = scmp.ne.s32.totalorder %s87, %s90
    %p99 = scmp.eq.s32.totalorder %s14, 1
    %p100 = por %p98, %p99
    %p101 = scmp.ne.s32.totalorder %s90, %s91
    %p102 = scmp.eq.s32.totalorder %s14, 0
    %p103 = por %p101, %p102
    %p104 = scmp.ne.s32.totalorder %s90, %s91
    %p105 = scmp.eq.s32.totalorder %s15, 1
    %p106 = por %p104, %p105
    %p108 = scmp.ne.s32.totalorder %s91, %s107
    %p109 = scmp.eq.s32.totalorder %s15, 0
    %p110 = por %p108, %p109
    %p111 = scmp.le.s32.totalorder 1, %s9
    %p112 = scmp.lt.s32.totalorder %s9, 3
    %p113 = pnand %p111, %p112
    %p114 = pneg %p113
    // Predicated region
    $region9: #{cnn_q_function_forward.4} parent=5 // pred_check
      _
    $region10: #{cnn_q_function_forward.4} parent=5 // pred_check_branch
      %116 = sbr.rel (%p113) target = $region12
    $region11: #{cnn_q_function_forward.4} parent=5 // pred_region
      %s117 = ssub.s32 %s9, 1
      // Predicated region
      $region13: #{cnn_q_function_forward.4} parent=11 // pred_check
        %p118 = pneg %p56
      $region14: #{cnn_q_function_forward.4} parent=11 // pred_check_branch
        %120 = sbr.rel (%p118) target = $region16
      $region15: #{cnn_q_function_forward.4} parent=11 // pred_region
        _
      $region16: #{cnn_q_function_forward.4} parent=11 // pred_fallthru
        _
      // Predicated region
      $region17: #{cnn_q_function_forward.4} parent=11 // pred_check
        %p121 = pneg %p77
      $region18: #{cnn_q_function_forward.4} parent=11 // pred_check_branch
        %123 = sbr.rel (%p121) target = $region20
      $region19: #{cnn_q_function_forward.4} parent=11 // pred_region
        _
      $region20: #{cnn_q_function_forward.4} parent=11 // pred_fallthru
        _
    $region12: #{cnn_q_function_forward.4} parent=5 // pred_fallthru
      _
    %p124 = scmp.lt.s32.totalorder %s9, 2
    // Predicated region
    $region21: #{cnn_q_function_forward.4} parent=5 // pred_check
      %p125 = pneg %p124
    $region22: #{cnn_q_function_forward.4} parent=5 // pred_check_branch
      %127 = sbr.rel (%p125) target = $region24
    $region23: #{cnn_q_function_forward.4} parent=5 // pred_region
      // Predicated region
      $region25: #{cnn_q_function_forward.4} parent=23 // pred_check
        %p128 = pneg %p29
      $region26: #{cnn_q_function_forward.4} parent=23 // pred_check_branch
        %130 = sbr.rel (%p128) target = $region28
      $region27: #{cnn_q_function_forward.4} parent=23 // pred_region
        %p131 = scmp.lt.s32.totalorder %s9, 1
        %s132 = scalar_select %p131, %s9, 1
        %s133 = smul.addr %s132, 11
        %s134 = smul.addr %s133, 4
        %s135 = scalar_lea.vmem %s0, %s134
      $region28: #{cnn_q_function_forward.4} parent=23 // pred_fallthru
        _
    $region24: #{cnn_q_function_forward.4} parent=5 // pred_fallthru
      _
    %p136 = scmp.le.s32.totalorder 1, %s9
    %p137 = scmp.lt.s32.totalorder %s9, 3
    %p138 = pnand %p136, %p137
    %p139 = pneg %p138
    // Predicated region
    $region29: #{cnn_q_function_forward.4} parent=5 // pred_check
      _
    $region30: #{cnn_q_function_forward.4} parent=5 // pred_check_branch
      %141 = sbr.rel (%p138) target = $region32
    $region31: #{cnn_q_function_forward.4} parent=5 // pred_region
      %s142 = ssub.s32 %s9, 1
      %p143 = scmp.lt.s32.totalorder %s14, 1
      %s144 = scalar_select %p143, %s14, 1
      %s145 = smul.addr %s144, 11
      %s146 = smul.addr %s145, 4
      %s147 = scalar_lea.vmem %s0, %s146
      %p148 = pneg %p35
      %p149 = pneg %p32
      %p150 = pneg %p56
      %p151 = pneg %p53
      %p152 = pneg %p77
      %p153 = pneg %p74
      %p154 = pneg %p103
      %p155 = pneg %p100
      %p156 = scmp.lt.s32.totalorder %s14, 1
      %s157 = scalar_select %p156, %s14, 1
      %s158 = smul.addr %s157, 9
      %s159 = smul.addr %s158, 4
      %s160 = scalar_lea.vmem %s3, %s159
      %p161 = scmp.lt.s32.totalorder %s14, 1
      %s162 = scalar_select %p161, %s14, 1
      %s163 = smul.addr %s162, 11
      %s164 = smul.addr %s163, 4
      %s165 = scalar_lea.vmem %s0, %s164
      %p166 = scmp.lt.s32.totalorder %s14, 1
      %s167 = scalar_select %p166, %s14, 1
      %s168 = smul.addr %s167, 9
      %s169 = smul.addr %s168, 4
      %s170 = scalar_lea.vmem %s3, %s169
      %v172 = vld [vmem:[%s165] sm:$0xf]
      %v173 = vld [vmem:[%s165 + $0x4] sm:$0xf]
      %v174 = vld [vmem:[%s165 + $0x8] sm:$0xf]
      %v175 = vld [vmem:[%s165 + $0xc] sm:$0xf]
      %v176 = vld [vmem:[%s165 + $0x10] sm:$0xf]
      %v177 = vld [vmem:[%s165 + $0x14] sm:$0xf]
      %v178 = vld [vmem:[%s165 + $0x18] sm:$0xf]
      %v179 = vld [vmem:[%s165 + $0x1c] sm:$0xf]
      %v180 = vld [vmem:[%s165 + $0x20] sm:$0xf]
      %v181 = vld [vmem:[%s1] sm:$0xf]
      %v182 = vld [vmem:[%s1 + $0x4] sm:$0xf]
      %v183 = vld [vmem:[%s1 + $0x8] sm:$0xf]
      %v184 = vld [vmem:[%s1 + $0xc] sm:$0xf]
      %v185 = vld [vmem:[%s1 + $0x10] sm:$0xf]
      %v186 = vld [vmem:[%s1 + $0x14] sm:$0xf]
      %v187 = vld [vmem:[%s1 + $0x18] sm:$0xf]
      %v188 = vld [vmem:[%s1 + $0x1c] sm:$0xf]
      %v198 = vunpack.c.l.b16 %v172
      %v199 = vunpack.c.l.b16 %v173
      %v200 = vunpack.c.l.b16 %v174
      %v201 = vunpack.c.l.b16 %v175
      %v202 = vunpack.c.l.b16 %v176
      %v203 = vunpack.c.l.b16 %v177
      %v204 = vunpack.c.l.b16 %v178
      %v205 = vunpack.c.l.b16 %v179
      %v206 = vunpack.c.l.b16 %v180
      %v207 = vpack.c.b16 %v199, %v198
      %v208 = vpack.c.b16 %v201, %v200
      %v209 = vpack.c.b16 %v203, %v202
      %v210 = vpack.c.b16 %v205, %v204
      %v211 = vpack.c.b16 %v206, %v206
      %v220 = vunpack.c.l.b16 %v181
      %v221 = vunpack.c.l.b16 %v182
      %v222 = vunpack.c.l.b16 %v183
      %v223 = vunpack.c.l.b16 %v184
      %v224 = vunpack.c.l.b16 %v185
      %v225 = vunpack.c.l.b16 %v186
      %v226 = vunpack.c.l.b16 %v187
      %v227 = vunpack.c.l.b16 %v188
      %v228 = vpack.c.b16 %v221, %v220
      %v229 = vpack.c.b16 %v223, %v222
      %v230 = vpack.c.b16 %v225, %v224
      %v231 = vpack.c.b16 %v227, %v226
      %vm236 = vcmask 523264
      %v238 = vsel %vm236, %v207, 0
      %v241 = vsel %vm236, %v208, 0
      %v244 = vsel %vm236, %v209, 0
      %v247 = vsel %vm236, %v210, 0
      %v250 = vsel %vm236, %v211, 0
      %252 = vmatprep.subr.bf16.mxu0 0
      %253 = vmatpush1.bf16.msra.mxu0 0
      %254 = vmatprep.subr.bf16.mxu0 0
      %255 = vmatpush1.bf16.msra.mxu0 0
      %256 = vmatprep.subr.bf16.mxu0 0
      %257 = vmatpush1.bf16.msra.mxu0 0
      %258 = vmatprep.subr.bf16.mxu0 0
      %259 = vmatpush1.bf16.msra.mxu0 0
      %260 = vmatprep.subr.bf16.mxu0 0
      %261 = vmatpush1.bf16.msra.mxu0 %v231
      %262 = vmatprep.subr.bf16.mxu0 0
      %263 = vmatpush1.bf16.msra.mxu0 %v230
      %264 = vmatprep.subr.bf16.mxu0 0
      %265 = vmatpush1.bf16.msra.mxu0 %v229
      %266 = vmatprep.subr.bf16.mxu0 0
      %267 = vmatpush1.bf16.msra.mxu0 %v228
      %268 = vmatprep.subr.bf16.mxu0 0
      %269 = vmatpush2.bf16.msra.mxu0 0
      %270 = vmatprep.subr.bf16.mxu0 0
      %271 = vmatpush2.bf16.msra.mxu0 0
      %272 = vmatprep.subr.bf16.mxu0 0
      %273 = vmatpush2.bf16.msra.mxu0 0
      %274 = vmatprep.subr.bf16.mxu0 0
      %275 = vmatpush2.bf16.msra.mxu0 0
      %276 = vmatprep.subr.bf16.mxu0 0
      %277 = vmatpush2.bf16.msra.mxu0 0
      %278 = vmatprep.subr.bf16.mxu0 0
      %279 = vmatpush2.bf16.msra.mxu0 0
      %280 = vmatprep.subr.bf16.mxu0 0
      %281 = vmatpush2.bf16.msra.mxu0 0
      %282 = vmatprep.subr.bf16.mxu0 0
      %283 = vmatpush2.bf16.msra.mxu0 0
      %284 = vmatprep.mubr.bf16.mxu0 0
      %285 = vmatmul.mubr.bf16.gmra.mxu0 %v238
      %v286 = vpop.f32.mrf.mxu0
      %v287 = vadd.f32 0.0, %v286
      %v288 = vpop.f32.mrf.mxu0
      %v289 = vpop.f32.mrf.mxu0
      %v290 = vadd.f32 0.0, %v289
      %v291 = vpop.f32.mrf.mxu0
      %292 = vmatprep.mubr.bf16.mxu0 0
      %293 = vmatmul.mubr.bf16.gmra.mxu0 %v241
      %v294 = vpop.f32.mrf.mxu0
      %v295 = vadd.f32 0.0, %v294
      %v296 = vpop.f32.mrf.mxu0
      %v297 = vpop.f32.mrf.mxu0
      %v298 = vadd.f32 0.0, %v297
      %v299 = vpop.f32.mrf.mxu0
      %300 = vmatprep.mubr.bf16.mxu0 0
      %301 = vmatmul.mubr.bf16.gmra.mxu0 %v244
      %v302 = vpop.f32.mrf.mxu0
      %v303 = vadd.f32 0.0, %v302
      %v304 = vpop.f32.mrf.mxu0
      %v305 = vpop.f32.mrf.mxu0
      %v306 = vadd.f32 0.0, %v305
      %v307 = vpop.f32.mrf.mxu0
      %308 = vmatprep.mubr.bf16.mxu0 0
      %309 = vmatmul.mubr.bf16.gmra.mxu0 %v247
      %v310 = vpop.f32.mrf.mxu0
      %v311 = vadd.f32 0.0, %v310
      %v312 = vpop.f32.mrf.mxu0
      %v313 = vpop.f32.mrf.mxu0
      %v314 = vadd.f32 0.0, %v313
      %v315 = vpop.f32.mrf.mxu0
      %316 = vmatprep.mubr.bf16.mxu0 0
      %317 = vmatmul.mubr.bf16.gmra.mxu0 %v250
      %v318 = vpop.f32.mrf.mxu0
      %v319 = vadd.f32 0.0, %v318
      %v320 = vpop.f32.mrf.mxu0
      %v321 = vpop.f32.mrf.mxu0
      %v322 = vpop.f32.mrf.mxu0
      %323 = vdwg.mxu0
      %vm324 = vcmask 261120
      %325 = vst.msk [vmem:[#allocation2] sm:$0xff] %vm324, %v287
      %326 = vst.msk [vmem:[#allocation2 + $0x8] sm:$0xff] %vm324, %v290
      %327 = vst.msk [vmem:[#allocation2 + $0x10] sm:$0xff] %vm324, %v295
      %328 = vst.msk [vmem:[#allocation2 + $0x18] sm:$0xff] %vm324, %v298
      %329 = vst.msk [vmem:[#allocation2 + $0x20] sm:$0xff] %vm324, %v303
      %330 = vst.msk [vmem:[#allocation2 + $0x28] sm:$0xff] %vm324, %v306
      %331 = vst.msk [vmem:[#allocation2 + $0x30] sm:$0xff] %vm324, %v311
      %332 = vst.msk [vmem:[#allocation2 + $0x38] sm:$0xff] %vm324, %v314
      %333 = vst.msk [vmem:[#allocation2 + $0x40] sm:$0xff] %vm324, %v319
      %v334 = vld [vmem:[%s165] sm:$0xf]
      %v335 = vld [vmem:[%s165 + $0x4] sm:$0xf]
      %v336 = vld [vmem:[%s165 + $0x8] sm:$0xf]
      %v337 = vld [vmem:[%s165 + $0xc] sm:$0xf]
      %v338 = vld [vmem:[%s165 + $0x10] sm:$0xf]
      %v339 = vld [vmem:[%s165 + $0x14] sm:$0xf]
      %v340 = vld [vmem:[%s165 + $0x18] sm:$0xf]
      %v341 = vld [vmem:[%s165 + $0x1c] sm:$0xf]
      %v342 = vld [vmem:[%s165 + $0x20] sm:$0xf]
      %v343 = vld [vmem:[%s165 + $0x24] sm:$0x1]
      %s344 = scalar_lea.vmem %s1, 32
      %v345 = vld [vmem:[%s344] sm:$0xf]
      %v346 = vld [vmem:[%s344 + $0x4] sm:$0xf]
      %v347 = vld [vmem:[%s344 + $0x8] sm:$0xf]
      %v348 = vld [vmem:[%s344 + $0xc] sm:$0xf]
      %v349 = vld [vmem:[%s344 + $0x10] sm:$0xf]
      %v350 = vld [vmem:[%s344 + $0x14] sm:$0xf]
      %v351 = vld [vmem:[%s344 + $0x18] sm:$0xf]
      %v352 = vld [vmem:[%s344 + $0x1c] sm:$0xf]
      %v363 = vunpack.c.l.b16 %v334
      %v364 = vunpack.c.l.b16 %v335
      %v365 = vunpack.c.l.b16 %v336
      %v366 = vunpack.c.l.b16 %v337
      %v367 = vunpack.c.l.b16 %v338
      %v368 = vunpack.c.l.b16 %v339
      %v369 = vunpack.c.l.b16 %v340
      %v370 = vunpack.c.l.b16 %v341
      %v371 = vunpack.c.l.b16 %v342
      %v372 = vunpack.c.l.b16 %v343
      %v373 = vpack.c.b16 %v364, %v363
      %v374 = vpack.c.b16 %v366, %v365
      %v375 = vpack.c.b16 %v368, %v367
      %v376 = vpack.c.b16 %v370, %v369
      %v377 = vpack.c.b16 %v372, %v371
      %vm378 = vsmask.f32 7424
      %v380 = vshrl.u32 %v373, 16
      %v382 = vshll.u32 %v373, 16
      %v384 = vrot.slane %v382, 1
      %v385 = vor.u32 %v380, %v384
      %v387 = vshll.u32 %v374, 16
      %v389 = vrot.slane %v387, 1
      %v390 = vsel %vm378, %v385, %v389
      %v391 = vshrl.u32 %v374, 16
      %v393 = vor.u32 %v391, %v389
      %v395 = vshll.u32 %v375, 16
      %v397 = vrot.slane %v395, 1
      %v398 = vsel %vm378, %v393, %v397
      %v399 = vshrl.u32 %v375, 16
      %v401 = vor.u32 %v399, %v397
      %v403 = vshll.u32 %v376, 16
      %v405 = vrot.slane %v403, 1
      %v406 = vsel %vm378, %v401, %v405
      %v407 = vshrl.u32 %v376, 16
      %v409 = vor.u32 %v407, %v405
      %v411 = vshll.u32 %v377, 16
      %v413 = vrot.slane %v411, 1
      %v414 = vsel %vm378, %v409, %v413
      %v415 = vshrl.u32 %v377, 16
      %v417 = vor.u32 %v415, %v413
      %v426 = vunpack.c.l.b16 %v345
      %v427 = vunpack.c.l.b16 %v346
      %v428 = vunpack.c.l.b16 %v347
      %v429 = vunpack.c.l.b16 %v348
      %v430 = vunpack.c.l.b16 %v349
      %v431 = vunpack.c.l.b16 %v350
      %v432 = vunpack.c.l.b16 %v351
      %v433 = vunpack.c.l.b16 %v352
      %v434 = vpack.c.b16 %v427, %v426
      %v435 = vpack.c.b16 %v429, %v428
      %v436 = vpack.c.b16 %v431, %v430
      %v437 = vpack.c.b16 %v433, %v432
      %v443 = vsel %vm236, %v390, 0
      %v446 = vsel %vm236, %v398, 0
      %v449 = vsel %vm236, %v406, 0
      %v452 = vsel %vm236, %v414, 0
      %v455 = vsel %vm236, %v417, 0
      %457 = vmatprep.subr.bf16.mxu0 0
      %458 = vmatpush1.bf16.msra.mxu0 0
      %459 = vmatprep.subr.bf16.mxu0 0
      %460 = vmatpush1.bf16.msra.mxu0 0
      %461 = vmatprep.subr.bf16.mxu0 0
      %462 = vmatpush1.bf16.msra.mxu0 0
      %463 = vmatprep.subr.bf16.mxu0 0
      %464 = vmatpush1.bf16.msra.mxu0 0
      %465 = vmatprep.subr.bf16.mxu0 0
      %466 = vmatpush1.bf16.msra.mxu0 %v437
      %467 = vmatprep.subr.bf16.mxu0 0
      %468 = vmatpush1.bf16.msra.mxu0 %v436
      %469 = vmatprep.subr.bf16.mxu0 0
      %470 = vmatpush1.bf16.msra.mxu0 %v435
      %471 = vmatprep.subr.bf16.mxu0 0
      %472 = vmatpush1.bf16.msra.mxu0 %v434
      %473 = vmatprep.subr.bf16.mxu0 0
      %474 = vmatpush2.bf16.msra.mxu0 0
      %475 = vmatprep.subr.bf16.mxu0 0
      %476 = vmatpush2.bf16.msra.mxu0 0
      %477 = vmatprep.subr.bf16.mxu0 0
      %478 = vmatpush2.bf16.msra.mxu0 0
      %479 = vmatprep.subr.bf16.mxu0 0
      %480 = vmatpush2.bf16.msra.mxu0 0
      %481 = vmatprep.subr.bf16.mxu0 0
      %482 = vmatpush2.bf16.msra.mxu0 0
      %483 = vmatprep.subr.bf16.mxu0 0
      %484 = vmatpush2.bf16.msra.mxu0 0
      %485 = vmatprep.subr.bf16.mxu0 0
      %486 = vmatpush2.bf16.msra.mxu0 0
      %487 = vmatprep.subr.bf16.mxu0 0
      %488 = vmatpush2.bf16.msra.mxu0 0
      %489 = vmatprep.mubr.bf16.mxu0 0
      %490 = vmatmul.mubr.bf16.gmra.mxu0 %v443
      %v491 = vpop.f32.mrf.mxu0
      %v492 = vadd.f32 0.0, %v491
      %v493 = vpop.f32.mrf.mxu0
      %v494 = vpop.f32.mrf.mxu0
      %v495 = vadd.f32 0.0, %v494
      %v496 = vpop.f32.mrf.mxu0
      %497 = vmatprep.mubr.bf16.mxu0 0
      %498 = vmatmul.mubr.bf16.gmra.mxu0 %v446
      %v499 = vpop.f32.mrf.mxu0
      %v500 = vadd.f32 0.0, %v499
      %v501 = vpop.f32.mrf.mxu0
      %v502 = vpop.f32.mrf.mxu0
      %v503 = vadd.f32 0.0, %v502
      %v504 = vpop.f32.mrf.mxu0
      %505 = vmatprep.mubr.bf16.mxu0 0
      %506 = vmatmul.mubr.bf16.gmra.mxu0 %v449
      %v507 = vpop.f32.mrf.mxu0
      %v508 = vadd.f32 0.0, %v507
      %v509 = vpop.f32.mrf.mxu0
      %v510 = vpop.f32.mrf.mxu0
      %v511 = vadd.f32 0.0, %v510
      %v512 = vpop.f32.mrf.mxu0
      %513 = vmatprep.mubr.bf16.mxu0 0
      %514 = vmatmul.mubr.bf16.gmra.mxu0 %v452
      %v515 = vpop.f32.mrf.mxu0
      %v516 = vadd.f32 0.0, %v515
      %v517 = vpop.f32.mrf.mxu0
      %v518 = vpop.f32.mrf.mxu0
      %v519 = vadd.f32 0.0, %v518
      %v520 = vpop.f32.mrf.mxu0
      %521 = vmatprep.mubr.bf16.mxu0 0
      %522 = vmatmul.mubr.bf16.gmra.mxu0 %v455
      %v523 = vpop.f32.mrf.mxu0
      %v524 = vadd.f32 0.0, %v523
      %v525 = vpop.f32.mrf.mxu0
      %v526 = vpop.f32.mrf.mxu0
      %v527 = vpop.f32.mrf.mxu0
      %528 = vdwg.mxu0
      %v529 = vld [vmem:[#allocation2] sm:$0xff]
      %v530 = vld [vmem:[#allocation2 + $0x8] sm:$0xff]
      %v531 = vld [vmem:[#allocation2 + $0x10] sm:$0xff]
      %v532 = vld [vmem:[#allocation2 + $0x18] sm:$0xff]
      %v533 = vld [vmem:[#allocation2 + $0x20] sm:$0xff]
      %v534 = vld [vmem:[#allocation2 + $0x28] sm:$0xff]
      %v535 = vld [vmem:[#allocation2 + $0x30] sm:$0xff]
      %v536 = vld [vmem:[#allocation2 + $0x38] sm:$0xff]
      %v537 = vld [vmem:[#allocation2 + $0x40] sm:$0xff]
      %v538 = vadd.f32 %v529, %v492
      %v539 = vadd.f32 %v530, %v495
      %v540 = vadd.f32 %v531, %v500
      %v541 = vadd.f32 %v532, %v503
      %v542 = vadd.f32 %v533, %v508
      %v543 = vadd.f32 %v534, %v511
      %v544 = vadd.f32 %v535, %v516
      %v545 = vadd.f32 %v536, %v519
      %v546 = vadd.f32 %v537, %v524
      %547 = vst.msk [vmem:[#allocation2] sm:$0xff] %vm324, %v538
      %548 = vst.msk [vmem:[#allocation2 + $0x8] sm:$0xff] %vm324, %v539
      %549 = vst.msk [vmem:[#allocation2 + $0x10] sm:$0xff] %vm324, %v540
      %550 = vst.msk [vmem:[#allocation2 + $0x18] sm:$0xff] %vm324, %v541
      %551 = vst.msk [vmem:[#allocation2 + $0x20] sm:$0xff] %vm324, %v542
      %552 = vst.msk [vmem:[#allocation2 + $0x28] sm:$0xff] %vm324, %v543
      %553 = vst.msk [vmem:[#allocation2 + $0x30] sm:$0xff] %vm324, %v544
      %554 = vst.msk [vmem:[#allocation2 + $0x38] sm:$0xff] %vm324, %v545
      %555 = vst.msk [vmem:[#allocation2 + $0x40] sm:$0xff] %vm324, %v546
      %v556 = vld [vmem:[%s165 + $0x4] sm:$0xf]
      %v557 = vld [vmem:[%s165 + $0x8] sm:$0xf]
      %v558 = vld [vmem:[%s165 + $0xc] sm:$0xf]
      %v559 = vld [vmem:[%s165 + $0x10] sm:$0xf]
      %v560 = vld [vmem:[%s165 + $0x14] sm:$0xf]
      %v561 = vld [vmem:[%s165 + $0x18] sm:$0xf]
      %v562 = vld [vmem:[%s165 + $0x1c] sm:$0xf]
      %v563 = vld [vmem:[%s165 + $0x20] sm:$0xf]
      %v564 = vld [vmem:[%s165 + $0x24] sm:$0xf]
      %v565 = vld [vmem:[%s165 + $0x28] sm:$0x1]
      %s566 = scalar_lea.vmem %s1, 64
      %v567 = vld [vmem:[%s566] sm:$0xf]
      %v568 = vld [vmem:[%s566 + $0x4] sm:$0xf]
      %v569 = vld [vmem:[%s566 + $0x8] sm:$0xf]
      %v570 = vld [vmem:[%s566 + $0xc] sm:$0xf]
      %v571 = vld [vmem:[%s566 + $0x10] sm:$0xf]
      %v572 = vld [vmem:[%s566 + $0x14] sm:$0xf]
      %v573 = vld [vmem:[%s566 + $0x18] sm:$0xf]
      %v574 = vld [vmem:[%s566 + $0x1c] sm:$0xf]
      %v585 = vunpack.c.l.b16 %v556
      %v586 = vunpack.c.l.b16 %v557
      %v587 = vunpack.c.l.b16 %v558
      %v588 = vunpack.c.l.b16 %v559
      %v589 = vunpack.c.l.b16 %v560
      %v590 = vunpack.c.l.b16 %v561
      %v591 = vunpack.c.l.b16 %v562
      %v592 = vunpack.c.l.b16 %v563
      %v593 = vunpack.c.l.b16 %v564
      %v594 = vunpack.c.l.b16 %v565
      %v595 = vpack.c.b16 %v586, %v585
      %v596 = vpack.c.b16 %v588, %v587
      %v597 = vpack.c.b16 %v590, %v589
      %v598 = vpack.c.b16 %v592, %v591
      %v599 = vpack.c.b16 %v594, %v593
      %v601 = vshrl.u32 %v595, 16
      %v603 = vshll.u32 %v595, 16
      %v605 = vrot.slane %v603, 1
      %v606 = vor.u32 %v601, %v605
      %v608 = vshll.u32 %v596, 16
      %v610 = vrot.slane %v608, 1
      %v611 = vsel %vm378, %v606, %v610
      %v612 = vshrl.u32 %v596, 16
      %v614 = vor.u32 %v612, %v610
      %v616 = vshll.u32 %v597, 16
      %v618 = vrot.slane %v616, 1
      %v619 = vsel %vm378, %v614, %v618
      %v620 = vshrl.u32 %v597, 16
      %v622 = vor.u32 %v620, %v618
      %v624 = vshll.u32 %v598, 16
      %v626 = vrot.slane %v624, 1
      %v627 = vsel %vm378, %v622, %v626
      %v628 = vshrl.u32 %v598, 16
      %v630 = vor.u32 %v628, %v626
      %v632 = vshll.u32 %v599, 16
      %v634 = vrot.slane %v632, 1
      %v635 = vsel %vm378, %v630, %v634
      %v636 = vshrl.u32 %v599, 16
      %v638 = vor.u32 %v636, %v634
      %v647 = vunpack.c.l.b16 %v567
      %v648 = vunpack.c.l.b16 %v568
      %v649 = vunpack.c.l.b16 %v569
      %v650 = vunpack.c.l.b16 %v570
      %v651 = vunpack.c.l.b16 %v571
      %v652 = vunpack.c.l.b16 %v572
      %v653 = vunpack.c.l.b16 %v573
      %v654 = vunpack.c.l.b16 %v574
      %v655 = vpack.c.b16 %v648, %v647
      %v656 = vpack.c.b16 %v650, %v649
      %v657 = vpack.c.b16 %v652, %v651
      %v658 = vpack.c.b16 %v654, %v653
      %v664 = vsel %vm236, %v611, 0
      %v667 = vsel %vm236, %v619, 0
      %v670 = vsel %vm236, %v627, 0
      %v673 = vsel %vm236, %v635, 0
      %v676 = vsel %vm236, %v638, 0
      %678 = vmatprep.subr.bf16.mxu0 0
      %679 = vmatpush1.bf16.msra.mxu0 0
      %680 = vmatprep.subr.bf16.mxu0 0
      %681 = vmatpush1.bf16.msra.mxu0 0
      %682 = vmatprep.subr.bf16.mxu0 0
      %683 = vmatpush1.bf16.msra.mxu0 0
      %684 = vmatprep.subr.bf16.mxu0 0
      %685 = vmatpush1.bf16.msra.mxu0 0
      %686 = vmatprep.subr.bf16.mxu0 0
      %687 = vmatpush1.bf16.msra.mxu0 %v658
      %688 = vmatprep.subr.bf16.mxu0 0
      %689 = vmatpush1.bf16.msra.mxu0 %v657
      %690 = vmatprep.subr.bf16.mxu0 0
      %691 = vmatpush1.bf16.msra.mxu0 %v656
      %692 = vmatprep.subr.bf16.mxu0 0
      %693 = vmatpush1.bf16.msra.mxu0 %v655
      %694 = vmatprep.subr.bf16.mxu0 0
      %695 = vmatpush2.bf16.msra.mxu0 0
      %696 = vmatprep.subr.bf16.mxu0 0
      %697 = vmatpush2.bf16.msra.mxu0 0
      %698 = vmatprep.subr.bf16.mxu0 0
      %699 = vmatpush2.bf16.msra.mxu0 0
      %700 = vmatprep.subr.bf16.mxu0 0
      %701 = vmatpush2.bf16.msra.mxu0 0
      %702 = vmatprep.subr.bf16.mxu0 0
      %703 = vmatpush2.bf16.msra.mxu0 0
      %704 = vmatprep.subr.bf16.mxu0 0
      %705 = vmatpush2.bf16.msra.mxu0 0
      %706 = vmatprep.subr.bf16.mxu0 0
      %707 = vmatpush2.bf16.msra.mxu0 0
      %708 = vmatprep.subr.bf16.mxu0 0
      %709 = vmatpush2.bf16.msra.mxu0 0
      %710 = vmatprep.mubr.bf16.mxu0 0
      %711 = vmatmul.mubr.bf16.gmra.mxu0 %v664
      %v712 = vpop.f32.mrf.mxu0
      %v713 = vadd.f32 0.0, %v712
      %v714 = vpop.f32.mrf.mxu0
      %v715 = vpop.f32.mrf.mxu0
      %v716 = vadd.f32 0.0, %v715
      %v717 = vpop.f32.mrf.mxu0
      %718 = vmatprep.mubr.bf16.mxu0 0
      %719 = vmatmul.mubr.bf16.gmra.mxu0 %v667
      %v720 = vpop.f32.mrf.mxu0
      %v721 = vadd.f32 0.0, %v720
      %v722 = vpop.f32.mrf.mxu0
      %v723 = vpop.f32.mrf.mxu0
      %v724 = vadd.f32 0.0, %v723
      %v725 = vpop.f32.mrf.mxu0
      %726 = vmatprep.mubr.bf16.mxu0 0
      %727 = vmatmul.mubr.bf16.gmra.mxu0 %v670
      %v728 = vpop.f32.mrf.mxu0
      %v729 = vadd.f32 0.0, %v728
      %v730 = vpop.f32.mrf.mxu0
      %v731 = vpop.f32.mrf.mxu0
      %v732 = vadd.f32 0.0, %v731
      %v733 = vpop.f32.mrf.mxu0
      %734 = vmatprep.mubr.bf16.mxu0 0
      %735 = vmatmul.mubr.bf16.gmra.mxu0 %v673
      %v736 = vpop.f32.mrf.mxu0
      %v737 = vadd.f32 0.0, %v736
      %v738 = vpop.f32.mrf.mxu0
      %v739 = vpop.f32.mrf.mxu0
      %v740 = vadd.f32 0.0, %v739
      %v741 = vpop.f32.mrf.mxu0
      %742 = vmatprep.mubr.bf16.mxu0 0
      %743 = vmatmul.mubr.bf16.gmra.mxu0 %v676
      %v744 = vpop.f32.mrf.mxu0
      %v745 = vadd.f32 0.0, %v744
      %v746 = vpop.f32.mrf.mxu0
      %v747 = vpop.f32.mrf.mxu0
      %v748 = vpop.f32.mrf.mxu0
      %749 = vdwg.mxu0
      %v750 = vld [vmem:[#allocation2] sm:$0xff]
      %v751 = vld [vmem:[#allocation2 + $0x8] sm:$0xff]
      %v752 = vld [vmem:[#allocation2 + $0x10] sm:$0xff]
      %v753 = vld [vmem:[#allocation2 + $0x18] sm:$0xff]
      %v754 = vld [vmem:[#allocation2 + $0x20] sm:$0xff]
      %v755 = vld [vmem:[#allocation2 + $0x28] sm:$0xff]
      %v756 = vld [vmem:[#allocation2 + $0x30] sm:$0xff]
      %v757 = vld [vmem:[#allocation2 + $0x38] sm:$0xff]
      %v758 = vld [vmem:[#allocation2 + $0x40] sm:$0xff]
      %v759 = vadd.f32 %v750, %v713
      %v760 = vadd.f32 %v751, %v716
      %v761 = vadd.f32 %v752, %v721
      %v762 = vadd.f32 %v753, %v724
      %v763 = vadd.f32 %v754, %v729
      %v764 = vadd.f32 %v755, %v732
      %v765 = vadd.f32 %v756, %v737
      %v766 = vadd.f32 %v757, %v740
      %v767 = vadd.f32 %v758, %v745
      %768 = vst.msk [vmem:[#allocation2] sm:$0xff] %vm324, %v759
      %769 = vst.msk [vmem:[#allocation2 + $0x8] sm:$0xff] %vm324, %v760
      %770 = vst.msk [vmem:[#allocation2 + $0x10] sm:$0xff] %vm324, %v761
      %771 = vst.msk [vmem:[#allocation2 + $0x18] sm:$0xff] %vm324, %v762
      %772 = vst.msk [vmem:[#allocation2 + $0x20] sm:$0xff] %vm324, %v763
      %773 = vst.msk [vmem:[#allocation2 + $0x28] sm:$0xff] %vm324, %v764
      %774 = vst.msk [vmem:[#allocation2 + $0x30] sm:$0xff] %vm324, %v765
      %775 = vst.msk [vmem:[#allocation2 + $0x38] sm:$0xff] %vm324, %v766
      %776 = vst.msk [vmem:[#allocation2 + $0x40] sm:$0xff] %vm324, %v767
      %v777 = vld [vmem:[%s165 + $0x4] sm:$0xe]
      %v778 = vld [vmem:[%s165 + $0x8] sm:$0xf]
      %v779 = vld [vmem:[%s165 + $0xc] sm:$0xf]
      %v780 = vld [vmem:[%s165 + $0x10] sm:$0xf]
      %v781 = vld [vmem:[%s165 + $0x14] sm:$0xf]
      %v782 = vld [vmem:[%s165 + $0x18] sm:$0xf]
      %v783 = vld [vmem:[%s165 + $0x1c] sm:$0xf]
      %v784 = vld [vmem:[%s165 + $0x20] sm:$0xf]
      %v785 = vld [vmem:[%s165 + $0x24] sm:$0xf]
      %v786 = vld [vmem:[%s165 + $0x28] sm:$0x1]
      %s787 = scalar_lea.vmem %s1, 96
      %v788 = vld [vmem:[%s787] sm:$0xf]
      %v789 = vld [vmem:[%s787 + $0x4] sm:$0xf]
      %v790 = vld [vmem:[%s787 + $0x8] sm:$0xf]
      %v791 = vld [vmem:[%s787 + $0xc] sm:$0xf]
      %v792 = vld [vmem:[%s787 + $0x10] sm:$0xf]
      %v793 = vld [vmem:[%s787 + $0x14] sm:$0xf]
      %v794 = vld [vmem:[%s787 + $0x18] sm:$0xf]
      %v795 = vld [vmem:[%s787 + $0x1c] sm:$0xf]
      %v806 = vunpack.c.l.b16 %v777
      %v807 = vunpack.c.l.b16 %v778
      %v808 = vunpack.c.l.b16 %v779
      %v809 = vunpack.c.l.b16 %v780
      %v810 = vunpack.c.l.b16 %v781
      %v811 = vunpack.c.l.b16 %v782
      %v812 = vunpack.c.l.b16 %v783
      %v813 = vunpack.c.l.b16 %v784
      %v814 = vunpack.c.l.b16 %v785
      %v815 = vunpack.c.l.b16 %v786
      %v816 = vpack.c.b16 %v807, %v806
      %v817 = vpack.c.b16 %v809, %v808
      %v818 = vpack.c.b16 %v811, %v810
      %v819 = vpack.c.b16 %v813, %v812
      %v820 = vpack.c.b16 %v815, %v814
      %vm821 = vcmask 1046528
      %v822 = vrot.slane %v816, 1
      %v823 = vrot.slane %v817, 1
      %v824 = vsel %vm821, %v822, %v823
      %v825 = vrot.slane %v818, 1
      %v826 = vsel %vm821, %v823, %v825
      %v827 = vrot.slane %v819, 1
      %v828 = vsel %vm821, %v825, %v827
      %v829 = vrot.slane %v820, 1
      %v830 = vsel %vm821, %v827, %v829
      %v839 = vunpack.c.l.b16 %v788
      %v840 = vunpack.c.l.b16 %v789
      %v841 = vunpack.c.l.b16 %v790
      %v842 = vunpack.c.l.b16 %v791
      %v843 = vunpack.c.l.b16 %v792
      %v844 = vunpack.c.l.b16 %v793
      %v845 = vunpack.c.l.b16 %v794
      %v846 = vunpack.c.l.b16 %v795
      %v847 = vpack.c.b16 %v840, %v839
      %v848 = vpack.c.b16 %v842, %v841
      %v849 = vpack.c.b16 %v844, %v843
      %v850 = vpack.c.b16 %v846, %v845
      %v856 = vsel %vm236, %v824, 0
      %v859 = vsel %vm236, %v826, 0
      %v862 = vsel %vm236, %v828, 0
      %v865 = vsel %vm236, %v830, 0
      %v868 = vsel %vm236, %v829, 0
      %870 = vmatprep.subr.bf16.mxu0 0
      %871 = vmatpush1.bf16.msra.mxu0 0
      %872 = vmatprep.subr.bf16.mxu0 0
      %873 = vmatpush1.bf16.msra.mxu0 0
      %874 = vmatprep.subr.bf16.mxu0 0
      %875 = vmatpush1.bf16.msra.mxu0 0
      %876 = vmatprep.subr.bf16.mxu0 0
      %877 = vmatpush1.bf16.msra.mxu0 0
      %878 = vmatprep.subr.bf16.mxu0 0
      %879 = vmatpush1.bf16.msra.mxu0 %v850
      %880 = vmatprep.subr.bf16.mxu0 0
      %881 = vmatpush1.bf16.msra.mxu0 %v849
      %882 = vmatprep.subr.bf16.mxu0 0
      %883 = vmatpush1.bf16.msra.mxu0 %v848
      %884 = vmatprep.subr.bf16.mxu0 0
      %885 = vmatpush1.bf16.msra.mxu0 %v847
      %886 = vmatprep.subr.bf16.mxu0 0
      %887 = vmatpush2.bf16.msra.mxu0 0
      %888 = vmatprep.subr.bf16.mxu0 0
      %889 = vmatpush2.bf16.msra.mxu0 0
      %890 = vmatprep.subr.bf16.mxu0 0
      %891 = vmatpush2.bf16.msra.mxu0 0
      %892 = vmatprep.subr.bf16.mxu0 0
      %893 = vmatpush2.bf16.msra.mxu0 0
      %894 = vmatprep.subr.bf16.mxu0 0
      %895 = vmatpush2.bf16.msra.mxu0 0
      %896 = vmatprep.subr.bf16.mxu0 0
      %897 = vmatpush2.bf16.msra.mxu0 0
      %898 = vmatprep.subr.bf16.mxu0 0
      %899 = vmatpush2.bf16.msra.mxu0 0
      %900 = vmatprep.subr.bf16.mxu0 0
      %901 = vmatpush2.bf16.msra.mxu0 0
      %902 = vmatprep.mubr.bf16.mxu0 0
      %903 = vmatmul.mubr.bf16.gmra.mxu0 %v856
      %v904 = vpop.f32.mrf.mxu0
      %v905 = vadd.f32 0.0, %v904
      %v906 = vpop.f32.mrf.mxu0
      %v907 = vpop.f32.mrf.mxu0
      %v908 = vadd.f32 0.0, %v907
      %v909 = vpop.f32.mrf.mxu0
      %910 = vmatprep.mubr.bf16.mxu0 0
      %911 = vmatmul.mubr.bf16.gmra.mxu0 %v859
      %v912 = vpop.f32.mrf.mxu0
      %v913 = vadd.f32 0.0, %v912
      %v914 = vpop.f32.mrf.mxu0
      %v915 = vpop.f32.mrf.mxu0
      %v916 = vadd.f32 0.0, %v915
      %v917 = vpop.f32.mrf.mxu0
      %918 = vmatprep.mubr.bf16.mxu0 0
      %919 = vmatmul.mubr.bf16.gmra.mxu0 %v862
      %v920 = vpop.f32.mrf.mxu0
      %v921 = vadd.f32 0.0, %v920
      %v922 = vpop.f32.mrf.mxu0
      %v923 = vpop.f32.mrf.mxu0
      %v924 = vadd.f32 0.0, %v923
      %v925 = vpop.f32.mrf.mxu0
      %926 = vmatprep.mubr.bf16.mxu0 0
      %927 = vmatmul.mubr.bf16.gmra.mxu0 %v865
      %v928 = vpop.f32.mrf.mxu0
      %v929 = vadd.f32 0.0, %v928
      %v930 = vpop.f32.mrf.mxu0
      %v931 = vpop.f32.mrf.mxu0
      %v932 = vadd.f32 0.0, %v931
      %v933 = vpop.f32.mrf.mxu0
      %934 = vmatprep.mubr.bf16.mxu0 0
      %935 = vmatmul.mubr.bf16.gmra.mxu0 %v868
      %v936 = vpop.f32.mrf.mxu0
      %v937 = vadd.f32 0.0, %v936
      %v938 = vpop.f32.mrf.mxu0
      %v939 = vpop.f32.mrf.mxu0
      %v940 = vpop.f32.mrf.mxu0
      %941 = vdwg.mxu0
      %v942 = vld [vmem:[#allocation2] sm:$0xff]
      %v943 = vld [vmem:[#allocation2 + $0x8] sm:$0xff]
      %v944 = vld [vmem:[#allocation2 + $0x10] sm:$0xff]
      %v945 = vld [vmem:[#allocation2 + $0x18] sm:$0xff]
      %v946 = vld [vmem:[#allocation2 + $0x20] sm:$0xff]
      %v947 = vld [vmem:[#allocation2 + $0x28] sm:$0xff]
      %v948 = vld [vmem:[#allocation2 + $0x30] sm:$0xff]
      %v949 = vld [vmem:[#allocation2 + $0x38] sm:$0xff]
      %v950 = vld [vmem:[#allocation2 + $0x40] sm:$0xff]
      %v951 = vadd.f32 %v942, %v905
      %v952 = vadd.f32 %v943, %v908
      %v953 = vadd.f32 %v944, %v913
      %v954 = vadd.f32 %v945, %v916
      %v955 = vadd.f32 %v946, %v921
      %v956 = vadd.f32 %v947, %v924
      %v957 = vadd.f32 %v948, %v929
      %v958 = vadd.f32 %v949, %v932
      %v959 = vadd.f32 %v950, %v937
      %960 = vst.msk [vmem:[#allocation2] sm:$0xff] %vm324, %v951
      %961 = vst.msk [vmem:[#allocation2 + $0x8] sm:$0xff] %vm324, %v952
      %962 = vst.msk [vmem:[#allocation2 + $0x10] sm:$0xff] %vm324, %v953
      %963 = vst.msk [vmem:[#allocation2 + $0x18] sm:$0xff] %vm324, %v954
      %964 = vst.msk [vmem:[#allocation2 + $0x20] sm:$0xff] %vm324, %v955
      %965 = vst.msk [vmem:[#allocation2 + $0x28] sm:$0xff] %vm324, %v956
      %966 = vst.msk [vmem:[#allocation2 + $0x30] sm:$0xff] %vm324, %v957
      %967 = vst.msk [vmem:[#allocation2 + $0x38] sm:$0xff] %vm324, %v958
      %968 = vst.msk [vmem:[#allocation2 + $0x40] sm:$0xff] %vm324, %v959
      %v969 = vld [vmem:[#allocation2] sm:$0xff]
      %v970 = vld [vmem:[#allocation2 + $0x8] sm:$0xff]
      %v971 = vld [vmem:[#allocation2 + $0x10] sm:$0xff]
      %v972 = vld [vmem:[#allocation2 + $0x18] sm:$0xff]
      %v973 = vld [vmem:[#allocation2 + $0x20] sm:$0xff]
      %v974 = vld [vmem:[#allocation2 + $0x28] sm:$0xff]
      %v975 = vld [vmem:[#allocation2 + $0x30] sm:$0xff]
      %v976 = vld [vmem:[#allocation2 + $0x38] sm:$0xff]
      %v977 = vld [vmem:[#allocation2 + $0x40] sm:$0xff]
      %v978 = vld [vmem:[%s2] sm:$0x1]
      %v980 = vlaneseq
      %v981 = vshrl.u32 %v980, 7
      %v982 = vsub.s32 0, %v981
      %v983 = vrot.slane %v978, %v982
      %v985 = vadd.f32 %v969, %v983
      %v986 = vadd.f32 %v970, %v983
      %v987 = vadd.f32 %v971, %v983
      %v988 = vadd.f32 %v972, %v983
      %v989 = vadd.f32 %v973, %v983
      %v990 = vadd.f32 %v974, %v983
      %v991 = vadd.f32 %v975, %v983
      %v992 = vadd.f32 %v976, %v983
      %v993 = vadd.f32 %v977, %v983
      %v994 = vmax.f32 %v985, 0.0
      %v995 = vmax.f32 %v986, 0.0
      %v996 = vmax.f32 %v987, 0.0
      %v997 = vmax.f32 %v988, 0.0
      %v998 = vmax.f32 %v989, 0.0
      %v999 = vmax.f32 %v990, 0.0
      %v1000 = vmax.f32 %v991, 0.0
      %v1001 = vmax.f32 %v992, 0.0
      %v1002 = vmax.f32 %v993, 0.0
      %v1003 = vpack.c.bf16 %v995, %v994
      %v1004 = vpack.c.bf16 %v997, %v996
      %v1005 = vpack.c.bf16 %v999, %v998
      %v1006 = vpack.c.bf16 %v1001, %v1000
      %v1007 = vpack.c.bf16 %v1002, %v1002
      %v1013 = vunpack.c.l.b16 %v1003
      %v1014 = vunpack.c.h.b16 %v1003
      %v1015 = vunpack.c.l.b16 %v1004
      %v1016 = vunpack.c.h.b16 %v1004
      %v1017 = vunpack.c.l.b16 %v1005
      %v1018 = vunpack.c.h.b16 %v1005
      %v1019 = vunpack.c.l.b16 %v1006
      %v1020 = vunpack.c.h.b16 %v1006
      %v1021 = vunpack.c.l.b16 %v1007
      %v1022 = vpack.c.b16 %v1013, %v1013
      %v1023 = vpack.c.b16 %v1014, %v1014
      %v1024 = vpack.c.b16 %v1015, %v1015
      %v1025 = vpack.c.b16 %v1016, %v1016
      %v1026 = vpack.c.b16 %v1017, %v1017
      %v1027 = vpack.c.b16 %v1018, %v1018
      %v1028 = vpack.c.b16 %v1019, %v1019
      %v1029 = vpack.c.b16 %v1020, %v1020
      %v1030 = vpack.c.b16 %v1021, %v1021
      %vm1040 = vcmask 257024
      %1041 = vst.msk [vmem:[%s170] sm:$0xf] %vm1040, %v1022
      %1042 = vst.msk [vmem:[%s170 + $0x4] sm:$0xf] %vm1040, %v1023
      %1043 = vst.msk [vmem:[%s170 + $0x8] sm:$0xf] %vm1040, %v1024
      %1044 = vst.msk [vmem:[%s170 + $0xc] sm:$0xf] %vm1040, %v1025
      %1045 = vst.msk [vmem:[%s170 + $0x10] sm:$0xf] %vm1040, %v1026
      %1046 = vst.msk [vmem:[%s170 + $0x14] sm:$0xf] %vm1040, %v1027
      %1047 = vst.msk [vmem:[%s170 + $0x18] sm:$0xf] %vm1040, %v1028
      %1048 = vst.msk [vmem:[%s170 + $0x1c] sm:$0xf] %vm1040, %v1029
      %1049 = vst.msk [vmem:[%s170 + $0x20] sm:$0xf] %vm1040, %v1030
      %p1050 = scmp.lt.s32.totalorder %s14, 1
      %s1051 = scalar_select %p1050, %s14, 1
      %s1052 = smul.addr %s1051, 9
      %s1053 = smul.addr %s1052, 4
      %s1054 = scalar_lea.vmem %s3, %s1053
      // Predicated region
      $region33: #{cnn_q_function_forward.4} parent=31 // pred_check
        %p1055 = pneg %p100
      $region34: #{cnn_q_function_forward.4} parent=31 // pred_check_branch
        %1057 = sbr.rel (%p1055) target = $region36
      $region35: #{cnn_q_function_forward.4} parent=31 // pred_region
        _
      $region36: #{cnn_q_function_forward.4} parent=31 // pred_fallthru
        _
    $region32: #{cnn_q_function_forward.4} parent=5 // pred_fallthru
      _
    %p1058 = scmp.le.s32.totalorder 2, %s9
    // Predicated region
    $region37: #{cnn_q_function_forward.4} parent=5 // pred_check
      %p1059 = pneg %p1058
    $region38: #{cnn_q_function_forward.4} parent=5 // pred_check_branch
      %1061 = sbr.rel (%p1059) target = $region40
    $region39: #{cnn_q_function_forward.4} parent=5 // pred_region
      %s1062 = ssub.s32 %s9, 2
      // Predicated region
      $region41: #{cnn_q_function_forward.4} parent=39 // pred_check
        %p1063 = pneg %p106
      $region42: #{cnn_q_function_forward.4} parent=39 // pred_check_branch
        %1065 = sbr.rel (%p1063) target = $region44
      $region43: #{cnn_q_function_forward.4} parent=39 // pred_region
        %p1066 = scmp.lt.s32.totalorder %s15, 1
        %s1067 = scalar_select %p1066, %s15, 1
        %s1068 = smul.addr %s1067, 9
        %s1069 = smul.addr %s1068, 4
        %s1070 = scalar_lea.vmem %s3, %s1069
      $region44: #{cnn_q_function_forward.4} parent=39 // pred_fallthru
        _
    $region40: #{cnn_q_function_forward.4} parent=5 // pred_fallthru
      _
  $region6: #{cnn_q_function_forward.4} parent=0 // loop_footer
    %s13 = sadd.s32 1, %s9
  $region7: #{cnn_q_function_forward.4} parent=0 // loop_footer_branch
    %8 = sbr.rel target = $region3
  $region8: #{cnn_q_function_forward.4} parent=0 // loop_exit
    _

// kernel: cnn_q_function_forward.5
$region0: #{cnn_q_function_forward.5}
  #allocation0 [shape = 'u32[]', space=smem, size = 0x4, offset = 0x4, fixed_abs, tag = 'smem constant byte address 0x4 - core index']
  #allocation1 [shape = 'u32[144,128]{1,0:T(1,128)}', space=vmem, size = 0x12000, scoped, tag = 'internal scratch']
  #allocation2 [shape = 'f32[12,64]{1,0:T(8,128)}', space=vmem, size = 0x2000, scoped, tag = 'scratch operand']
  %s0 = inlined_call_operand.vmem [shape: bf16[2,17,128], index: 0, kind: input, shape index: {}]
  %s1 = inlined_call_operand.vmem [shape: bf16[4,128,64], index: 1, kind: input, shape index: {}]
  %s2 = inlined_call_operand.vmem [shape: f32[1,64], index: 2, kind: input, shape index: {}]
  %s3 = inlined_call_operand.vmem [shape: bf16[2,12,64], index: 3, kind: output, shape index: {}]
  %s4 = sld [smem:[#allocation0]]
  $region45: #{cnn_q_function_forward.5} parent=0
    _
  %s6 = ssub.s32 1, %s4
  %s7 = scalar_select 0, %s6, %s4
  loop: start=0, step=1, limit=4
  $region2: #{cnn_q_function_forward.5} parent=0 // loop_pre_header
    _
  $region3: #{cnn_q_function_forward.5} parent=0 // loop_header
    %s9 = sphi 0, %s13
    %p10 = scmp.ge.s32.totalorder %s9, 4
    %s19 = sphi 0, %s21
    %s22 = sphi 0, %s19
    %s23 = sphi 0, %s22
    %s39 = sphi 0, %s23
    %s43 = sphi 0, %s43
    %s45 = sphi 0, %s43
    %s46 = sphi 0, %s45
    %s60 = sphi 0, %s46
    %s64 = sphi 0, %s64
    %s66 = sphi 0, %s64
    %s67 = sphi 0, %s66
    %s81 = sphi 0, %s67
    %s87 = sphi 0, %s89
    %s90 = sphi 0, %s87
    %s91 = sphi 0, %s90
    %s107 = sphi 0, %s91
  $region4: #{cnn_q_function_forward.5} parent=0 // loop_header_branch
    %12 = sbr.rel (%p10) target = $region8
  $region5: #{cnn_q_function_forward.5} parent=0 // loop_body
    %s14 = ssub.s32 %s9, 1
    %s15 = ssub.s32 %s9, 2
    %s16 = sadd.s32 %s9, 1
    %s17 = ssub.s32 %s9, %s16
    %p18 = scmp.eq.s32.totalorder %s17, 0
    %s20 = sadd.s32 %s19, 1
    %s21 = scalar_select %p18, %s19, %s20
    %p24 = pneg %p18
    %p25 = scmp.eq.s32.totalorder %s9, 1
    %p26 = por %p24, %p25
    %p27 = scmp.ne.s32.totalorder %s19, %s22
    %p28 = scmp.eq.s32.totalorder %s9, 0
    %p29 = por %p27, %p28
    %p30 = scmp.ne.s32.totalorder %s19, %s22
    %p31 = scmp.eq.s32.totalorder %s14, 1
    %p32 = por %p30, %p31
    %p33 = scmp.ne.s32.totalorder %s22, %s23
    %p34 = scmp.eq.s32.totalorder %s14, 0
    %p35 = por %p33, %p34
    %p36 = scmp.ne.s32.totalorder %s22, %s23
    %p37 = scmp.eq.s32.totalorder %s15, 1
    %p38 = por %p36, %p37
    %p40 = scmp.ne.s32.totalorder %s23, %s39
    %p41 = scmp.eq.s32.totalorder %s15, 0
    %p42 = por %p40, %p41
    %s44 = sadd.s32 %s43, 1
    %p47 = scmp.eq.s32.totalorder %s9, 1
    %p48 = scmp.ne.s32.totalorder %s43, %s45
    %p49 = scmp.eq.s32.totalorder %s9, 0
    %p50 = por %p48, %p49
    %p51 = scmp.ne.s32.totalorder %s43, %s45
    %p52 = scmp.eq.s32.totalorder %s14, 1
    %p53 = por %p51, %p52
    %p54 = scmp.ne.s32.totalorder %s45, %s46
    %p55 = scmp.eq.s32.totalorder %s14, 0
    %p56 = por %p54, %p55
    %p57 = scmp.ne.s32.totalorder %s45, %s46
    %p58 = scmp.eq.s32.totalorder %s15, 1
    %p59 = por %p57, %p58
    %p61 = scmp.ne.s32.totalorder %s46, %s60
    %p62 = scmp.eq.s32.totalorder %s15, 0
    %p63 = por %p61, %p62
    %s65 = sadd.s32 %s64, 1
    %p68 = scmp.eq.s32.totalorder %s9, 1
    %p69 = scmp.ne.s32.totalorder %s64, %s66
    %p70 = scmp.eq.s32.totalorder %s9, 0
    %p71 = por %p69, %p70
    %p72 = scmp.ne.s32.totalorder %s64, %s66
    %p73 = scmp.eq.s32.totalorder %s14, 1
    %p74 = por %p72, %p73
    %p75 = scmp.ne.s32.totalorder %s66, %s67
    %p76 = scmp.eq.s32.totalorder %s14, 0
    %p77 = por %p75, %p76
    %p78 = scmp.ne.s32.totalorder %s66, %s67
    %p79 = scmp.eq.s32.totalorder %s15, 1
    %p80 = por %p78, %p79
    %p82 = scmp.ne.s32.totalorder %s67, %s81
    %p83 = scmp.eq.s32.totalorder %s15, 0
    %p84 = por %p82, %p83
    %s85 = ssub.s32 %s9, %s16
    %p86 = scmp.eq.s32.totalorder %s85, 0
    %s88 = sadd.s32 %s87, 1
    %s89 = scalar_select %p86, %s87, %s88
    %p92 = pneg %p86
    %p93 = scmp.eq.s32.totalorder %s9, 1
    %p94 = por %p92, %p93
    %p95 = scmp.ne.s32.totalorder %s87, %s90
    %p96 = scmp.eq.s32.totalorder %s9, 0
    %p97 = por %p95, %p96
    %p98 = scmp.ne.s32.totalorder %s87, %s90
    %p99 = scmp.eq.s32.totalorder %s14, 1
    %p100 = por %p98, %p99
    %p101 = scmp.ne.s32.totalorder %s90, %s91
    %p102 = scmp.eq.s32.totalorder %s14, 0
    %p103 = por %p101, %p102
    %p104 = scmp.ne.s32.totalorder %s90, %s91
    %p105 = scmp.eq.s32.totalorder %s15, 1
    %p106 = por %p104, %p105
    %p108 = scmp.ne.s32.totalorder %s91, %s107
    %p109 = scmp.eq.s32.totalorder %s15, 0
    %p110 = por %p108, %p109
    %p111 = scmp.le.s32.totalorder 1, %s9
    %p112 = scmp.lt.s32.totalorder %s9, 3
    %p113 = pnand %p111, %p112
    %p114 = pneg %p113
    // Predicated region
    $region9: #{cnn_q_function_forward.5} parent=5 // pred_check
      _
    $region10: #{cnn_q_function_forward.5} parent=5 // pred_check_branch
      %116 = sbr.rel (%p113) target = $region12
    $region11: #{cnn_q_function_forward.5} parent=5 // pred_region
      %s117 = ssub.s32 %s9, 1
      // Predicated region
      $region13: #{cnn_q_function_forward.5} parent=11 // pred_check
        %p118 = pneg %p56
      $region14: #{cnn_q_function_forward.5} parent=11 // pred_check_branch
        %120 = sbr.rel (%p118) target = $region16
      $region15: #{cnn_q_function_forward.5} parent=11 // pred_region
        _
      $region16: #{cnn_q_function_forward.5} parent=11 // pred_fallthru
        _
      // Predicated region
      $region17: #{cnn_q_function_forward.5} parent=11 // pred_check
        %p121 = pneg %p77
      $region18: #{cnn_q_function_forward.5} parent=11 // pred_check_branch
        %123 = sbr.rel (%p121) target = $region20
      $region19: #{cnn_q_function_forward.5} parent=11 // pred_region
        _
      $region20: #{cnn_q_function_forward.5} parent=11 // pred_fallthru
        _
    $region12: #{cnn_q_function_forward.5} parent=5 // pred_fallthru
      _
    %p124 = scmp.lt.s32.totalorder %s9, 2
    // Predicated region
    $region21: #{cnn_q_function_forward.5} parent=5 // pred_check
      %p125 = pneg %p124
    $region22: #{cnn_q_function_forward.5} parent=5 // pred_check_branch
      %127 = sbr.rel (%p125) target = $region24
    $region23: #{cnn_q_function_forward.5} parent=5 // pred_region
      // Predicated region
      $region25: #{cnn_q_function_forward.5} parent=23 // pred_check
        %p128 = pneg %p29
      $region26: #{cnn_q_function_forward.5} parent=23 // pred_check_branch
        %130 = sbr.rel (%p128) target = $region28
      $region27: #{cnn_q_function_forward.5} parent=23 // pred_region
        %p131 = scmp.lt.s32.totalorder %s9, 1
        %s132 = scalar_select %p131, %s9, 1
        %s133 = smul.addr %s132, 3
        %s134 = smul.addr %s133, 4
        %s135 = scalar_lea.vmem %s0, %s134
      $region28: #{cnn_q_function_forward.5} parent=23 // pred_fallthru
        _
    $region24: #{cnn_q_function_forward.5} parent=5 // pred_fallthru
      _
    %p136 = scmp.le.s32.totalorder 1, %s9
    %p137 = scmp.lt.s32.totalorder %s9, 3
    %p138 = pnand %p136, %p137
    %p139 = pneg %p138
    // Predicated region
    $region29: #{cnn_q_function_forward.5} parent=5 // pred_check
      _
    $region30: #{cnn_q_function_forward.5} parent=5 // pred_check_branch
      %141 = sbr.rel (%p138) target = $region32
    $region31: #{cnn_q_function_forward.5} parent=5 // pred_region
      %s142 = ssub.s32 %s9, 1
      %p143 = scmp.lt.s32.totalorder %s14, 1
      %s144 = scalar_select %p143, %s14, 1
      %s145 = smul.addr %s144, 3
      %s146 = smul.addr %s145, 4
      %s147 = scalar_lea.vmem %s0, %s146
      %p148 = pneg %p35
      %p149 = pneg %p32
      %p150 = pneg %p56
      %p151 = pneg %p53
      %p152 = pneg %p77
      %p153 = pneg %p74
      %p154 = pneg %p103
      %p155 = pneg %p100
      %p156 = scmp.lt.s32.totalorder %s14, 1
      %s157 = scalar_select %p156, %s14, 1
      %s158 = smul.addr %s157, 2
      %s159 = smul.addr %s158, 4
      %s160 = scalar_lea.vmem %s3, %s159
      %p161 = scmp.lt.s32.totalorder %s14, 1
      %s162 = scalar_select %p161, %s14, 1
      %s163 = smul.addr %s162, 3
      %s164 = smul.addr %s163, 4
      %s165 = scalar_lea.vmem %s0, %s164
      %p166 = scmp.lt.s32.totalorder %s14, 1
      %s167 = scalar_select %p166, %s14, 1
      %s168 = smul.addr %s167, 2
      %s169 = smul.addr %s168, 4
      %s170 = scalar_lea.vmem %s3, %s169
      %v172 = vld [vmem:[%s165] sm:$0xf]
      %v173 = vld [vmem:[%s165 + $0x4] sm:$0x3]
      %v174 = vld [vmem:[%s1] sm:$0xf]
      %v175 = vld [vmem:[%s1 + $0x4] sm:$0xf]
      %v176 = vld [vmem:[%s1 + $0x8] sm:$0xf]
      %v177 = vld [vmem:[%s1 + $0xc] sm:$0xf]
      %v178 = vld [vmem:[%s1 + $0x10] sm:$0xf]
      %v179 = vld [vmem:[%s1 + $0x14] sm:$0xf]
      %v180 = vld [vmem:[%s1 + $0x18] sm:$0xf]
      %v181 = vld [vmem:[%s1 + $0x1c] sm:$0xf]
      %v182 = vld [vmem:[%s1 + $0x20] sm:$0xf]
      %v183 = vld [vmem:[%s1 + $0x24] sm:$0xf]
      %v184 = vld [vmem:[%s1 + $0x28] sm:$0xf]
      %v185 = vld [vmem:[%s1 + $0x2c] sm:$0xf]
      %v186 = vld [vmem:[%s1 + $0x30] sm:$0xf]
      %v187 = vld [vmem:[%s1 + $0x34] sm:$0xf]
      %v188 = vld [vmem:[%s1 + $0x38] sm:$0xf]
      %v189 = vld [vmem:[%s1 + $0x3c] sm:$0xf]
      %v192 = vunpack.c.l.b16 %v172
      %v193 = vunpack.c.l.b16 %v173
      %v194 = vpack.c.b16 %v193, %v192
      %v212 = vunpack.c.l.b16 %v174
      %v213 = vunpack.c.l.b16 %v175
      %v214 = vunpack.c.l.b16 %v176
      %v215 = vunpack.c.l.b16 %v177
      %v216 = vunpack.c.l.b16 %v178
      %v217 = vunpack.c.l.b16 %v179
      %v218 = vunpack.c.l.b16 %v180
      %v219 = vunpack.c.l.b16 %v181
      %v220 = vunpack.c.l.b16 %v182
      %v221 = vunpack.c.l.b16 %v183
      %v222 = vunpack.c.l.b16 %v184
      %v223 = vunpack.c.l.b16 %v185
      %v224 = vunpack.c.l.b16 %v186
      %v225 = vunpack.c.l.b16 %v187
      %v226 = vunpack.c.l.b16 %v188
      %v227 = vunpack.c.l.b16 %v189
      %v228 = vpack.c.b16 %v213, %v212
      %v229 = vpack.c.b16 %v215, %v214
      %v230 = vpack.c.b16 %v217, %v216
      %v231 = vpack.c.b16 %v219, %v218
      %v232 = vpack.c.b16 %v221, %v220
      %v233 = vpack.c.b16 %v223, %v222
      %v234 = vpack.c.b16 %v225, %v224
      %v235 = vpack.c.b16 %v227, %v226
      %244 = vmatprep.subr.bf16.mxu0 0
      %245 = vmatpush1.bf16.msra.mxu0 %v235
      %246 = vmatprep.subr.bf16.mxu0 0
      %247 = vmatpush1.bf16.msra.mxu0 %v234
      %248 = vmatprep.subr.bf16.mxu0 0
      %249 = vmatpush1.bf16.msra.mxu0 %v233
      %250 = vmatprep.subr.bf16.mxu0 0
      %251 = vmatpush1.bf16.msra.mxu0 %v232
      %252 = vmatprep.subr.bf16.mxu0 0
      %253 = vmatpush1.bf16.msra.mxu0 %v231
      %254 = vmatprep.subr.bf16.mxu0 0
      %255 = vmatpush1.bf16.msra.mxu0 %v230
      %256 = vmatprep.subr.bf16.mxu0 0
      %257 = vmatpush1.bf16.msra.mxu0 %v229
      %258 = vmatprep.subr.bf16.mxu0 0
      %259 = vmatpush1.bf16.msra.mxu0 %v228
      %260 = vmatprep.subr.bf16.mxu0 0
      %261 = vmatpush2.bf16.msra.mxu0 0
      %262 = vmatprep.subr.bf16.mxu0 0
      %263 = vmatpush2.bf16.msra.mxu0 0
      %264 = vmatprep.subr.bf16.mxu0 0
      %265 = vmatpush2.bf16.msra.mxu0 0
      %266 = vmatprep.subr.bf16.mxu0 0
      %267 = vmatpush2.bf16.msra.mxu0 0
      %268 = vmatprep.subr.bf16.mxu0 0
      %269 = vmatpush2.bf16.msra.mxu0 0
      %270 = vmatprep.subr.bf16.mxu0 0
      %271 = vmatpush2.bf16.msra.mxu0 0
      %272 = vmatprep.subr.bf16.mxu0 0
      %273 = vmatpush2.bf16.msra.mxu0 0
      %274 = vmatprep.subr.bf16.mxu0 0
      %275 = vmatpush2.bf16.msra.mxu0 0
      %276 = vmatprep.mubr.bf16.mxu0 0
      %277 = vmatmul.mubr.bf16.gmra.mxu0 %v194
      %v278 = vpop.f32.mrf.mxu0
      %v279 = vadd.f32 0.0, %v278
      %v280 = vpop.f32.mrf.mxu0
      %v281 = vpop.f32.mrf.mxu0
      %v282 = vadd.f32 0.0, %v281
      %v283 = vpop.f32.mrf.mxu0
      %284 = vdwg.mxu0
      %vm285 = vcmask 523264
      %286 = vst.msk [vmem:[#allocation2] sm:$0xff] %vm285, %v279
      %vm287 = vcmask 519168
      %288 = vst.msk [vmem:[#allocation2 + $0x8] sm:$0xf] %vm287, %v282
      %v289 = vld [vmem:[%s165] sm:$0xf]
      %v290 = vld [vmem:[%s165 + $0x4] sm:$0x7]
      %s291 = scalar_lea.vmem %s1, 64
      %v292 = vld [vmem:[%s291] sm:$0xf]
      %v293 = vld [vmem:[%s291 + $0x4] sm:$0xf]
      %v294 = vld [vmem:[%s291 + $0x8] sm:$0xf]
      %v295 = vld [vmem:[%s291 + $0xc] sm:$0xf]
      %v296 = vld [vmem:[%s291 + $0x10] sm:$0xf]
      %v297 = vld [vmem:[%s291 + $0x14] sm:$0xf]
      %v298 = vld [vmem:[%s291 + $0x18] sm:$0xf]
      %v299 = vld [vmem:[%s291 + $0x1c] sm:$0xf]
      %v300 = vld [vmem:[%s291 + $0x20] sm:$0xf]
      %v301 = vld [vmem:[%s291 + $0x24] sm:$0xf]
      %v302 = vld [vmem:[%s291 + $0x28] sm:$0xf]
      %v303 = vld [vmem:[%s291 + $0x2c] sm:$0xf]
      %v304 = vld [vmem:[%s291 + $0x30] sm:$0xf]
      %v305 = vld [vmem:[%s291 + $0x34] sm:$0xf]
      %v306 = vld [vmem:[%s291 + $0x38] sm:$0xf]
      %v307 = vld [vmem:[%s291 + $0x3c] sm:$0xf]
      %v310 = vunpack.c.l.b16 %v289
      %v311 = vunpack.c.l.b16 %v290
      %v312 = vpack.c.b16 %v311, %v310
      %v314 = vshrl.u32 %v312, 16
      %v316 = vshll.u32 %v312, 16
      %v318 = vrot.slane %v316, 1
      %v319 = vor.u32 %v314, %v318
      %v337 = vunpack.c.l.b16 %v292
      %v338 = vunpack.c.l.b16 %v293
      %v339 = vunpack.c.l.b16 %v294
      %v340 = vunpack.c.l.b16 %v295
      %v341 = vunpack.c.l.b16 %v296
      %v342 = vunpack.c.l.b16 %v297
      %v343 = vunpack.c.l.b16 %v298
      %v344 = vunpack.c.l.b16 %v299
      %v345 = vunpack.c.l.b16 %v300
      %v346 = vunpack.c.l.b16 %v301
      %v347 = vunpack.c.l.b16 %v302
      %v348 = vunpack.c.l.b16 %v303
      %v349 = vunpack.c.l.b16 %v304
      %v350 = vunpack.c.l.b16 %v305
      %v351 = vunpack.c.l.b16 %v306
      %v352 = vunpack.c.l.b16 %v307
      %v353 = vpack.c.b16 %v338, %v337
      %v354 = vpack.c.b16 %v340, %v339
      %v355 = vpack.c.b16 %v342, %v341
      %v356 = vpack.c.b16 %v344, %v343
      %v357 = vpack.c.b16 %v346, %v345
      %v358 = vpack.c.b16 %v348, %v347
      %v359 = vpack.c.b16 %v350, %v349
      %v360 = vpack.c.b16 %v352, %v351
      %369 = vmatprep.subr.bf16.mxu0 0
      %370 = vmatpush1.bf16.msra.mxu0 %v360
      %371 = vmatprep.subr.bf16.mxu0 0
      %372 = vmatpush1.bf16.msra.mxu0 %v359
      %373 = vmatprep.subr.bf16.mxu0 0
      %374 = vmatpush1.bf16.msra.mxu0 %v358
      %375 = vmatprep.subr.bf16.mxu0 0
      %376 = vmatpush1.bf16.msra.mxu0 %v357
      %377 = vmatprep.subr.bf16.mxu0 0
      %378 = vmatpush1.bf16.msra.mxu0 %v356
      %379 = vmatprep.subr.bf16.mxu0 0
      %380 = vmatpush1.bf16.msra.mxu0 %v355
      %381 = vmatprep.subr.bf16.mxu0 0
      %382 = vmatpush1.bf16.msra.mxu0 %v354
      %383 = vmatprep.subr.bf16.mxu0 0
      %384 = vmatpush1.bf16.msra.mxu0 %v353
      %385 = vmatprep.subr.bf16.mxu0 0
      %386 = vmatpush2.bf16.msra.mxu0 0
      %387 = vmatprep.subr.bf16.mxu0 0
      %388 = vmatpush2.bf16.msra.mxu0 0
      %389 = vmatprep.subr.bf16.mxu0 0
      %390 = vmatpush2.bf16.msra.mxu0 0
      %391 = vmatprep.subr.bf16.mxu0 0
      %392 = vmatpush2.bf16.msra.mxu0 0
      %393 = vmatprep.subr.bf16.mxu0 0
      %394 = vmatpush2.bf16.msra.mxu0 0
      %395 = vmatprep.subr.bf16.mxu0 0
      %396 = vmatpush2.bf16.msra.mxu0 0
      %397 = vmatprep.subr.bf16.mxu0 0
      %398 = vmatpush2.bf16.msra.mxu0 0
      %399 = vmatprep.subr.bf16.mxu0 0
      %400 = vmatpush2.bf16.msra.mxu0 0
      %401 = vmatprep.mubr.bf16.mxu0 0
      %402 = vmatmul.mubr.bf16.gmra.mxu0 %v319
      %v403 = vpop.f32.mrf.mxu0
      %v404 = vadd.f32 0.0, %v403
      %v405 = vpop.f32.mrf.mxu0
      %v406 = vpop.f32.mrf.mxu0
      %v407 = vadd.f32 0.0, %v406
      %v408 = vpop.f32.mrf.mxu0
      %409 = vdwg.mxu0
      %v410 = vld [vmem:[#allocation2] sm:$0xff]
      %v411 = vld [vmem:[#allocation2 + $0x8] sm:$0xf]
      %v412 = vadd.f32 %v410, %v404
      %v413 = vadd.f32 %v411, %v407
      %414 = vst.msk [vmem:[#allocation2] sm:$0xff] %vm285, %v412
      %415 = vst.msk [vmem:[#allocation2 + $0x8] sm:$0xf] %vm287, %v413
      %v416 = vld [vmem:[%s165] sm:$0xc]
      %v417 = vld [vmem:[%s165 + $0x4] sm:$0xf]
      %s418 = scalar_lea.vmem %s1, 128
      %v419 = vld [vmem:[%s418] sm:$0xf]
      %v420 = vld [vmem:[%s418 + $0x4] sm:$0xf]
      %v421 = vld [vmem:[%s418 + $0x8] sm:$0xf]
      %v422 = vld [vmem:[%s418 + $0xc] sm:$0xf]
      %v423 = vld [vmem:[%s418 + $0x10] sm:$0xf]
      %v424 = vld [vmem:[%s418 + $0x14] sm:$0xf]
      %v425 = vld [vmem:[%s418 + $0x18] sm:$0xf]
      %v426 = vld [vmem:[%s418 + $0x1c] sm:$0xf]
      %v427 = vld [vmem:[%s418 + $0x20] sm:$0xf]
      %v428 = vld [vmem:[%s418 + $0x24] sm:$0xf]
      %v429 = vld [vmem:[%s418 + $0x28] sm:$0xf]
      %v430 = vld [vmem:[%s418 + $0x2c] sm:$0xf]
      %v431 = vld [vmem:[%s418 + $0x30] sm:$0xf]
      %v432 = vld [vmem:[%s418 + $0x34] sm:$0xf]
      %v433 = vld [vmem:[%s418 + $0x38] sm:$0xf]
      %v434 = vld [vmem:[%s418 + $0x3c] sm:$0xf]
      %v437 = vunpack.c.l.b16 %v416
      %v438 = vunpack.c.l.b16 %v417
      %v439 = vpack.c.b16 %v438, %v437
      %v440 = vrot.slane %v439, 2
      %v458 = vunpack.c.l.b16 %v419
      %v459 = vunpack.c.l.b16 %v420
      %v460 = vunpack.c.l.b16 %v421
      %v461 = vunpack.c.l.b16 %v422
      %v462 = vunpack.c.l.b16 %v423
      %v463 = vunpack.c.l.b16 %v424
      %v464 = vunpack.c.l.b16 %v425
      %v465 = vunpack.c.l.b16 %v426
      %v466 = vunpack.c.l.b16 %v427
      %v467 = vunpack.c.l.b16 %v428
      %v468 = vunpack.c.l.b16 %v429
      %v469 = vunpack.c.l.b16 %v430
      %v470 = vunpack.c.l.b16 %v431
      %v471 = vunpack.c.l.b16 %v432
      %v472 = vunpack.c.l.b16 %v433
      %v473 = vunpack.c.l.b16 %v434
      %v474 = vpack.c.b16 %v459, %v458
      %v475 = vpack.c.b16 %v461, %v460
      %v476 = vpack.c.b16 %v463, %v462
      %v477 = vpack.c.b16 %v465, %v464
      %v478 = vpack.c.b16 %v467, %v466
      %v479 = vpack.c.b16 %v469, %v468
      %v480 = vpack.c.b16 %v471, %v470
      %v481 = vpack.c.b16 %v473, %v472
      %490 = vmatprep.subr.bf16.mxu0 0
      %491 = vmatpush1.bf16.msra.mxu0 %v481
      %492 = vmatprep.subr.bf16.mxu0 0
      %493 = vmatpush1.bf16.msra.mxu0 %v480
      %494 = vmatprep.subr.bf16.mxu0 0
      %495 = vmatpush1.bf16.msra.mxu0 %v479
      %496 = vmatprep.subr.bf16.mxu0 0
      %497 = vmatpush1.bf16.msra.mxu0 %v478
      %498 = vmatprep.subr.bf16.mxu0 0
      %499 = vmatpush1.bf16.msra.mxu0 %v477
      %500 = vmatprep.subr.bf16.mxu0 0
      %501 = vmatpush1.bf16.msra.mxu0 %v476
      %502 = vmatprep.subr.bf16.mxu0 0
      %503 = vmatpush1.bf16.msra.mxu0 %v475
      %504 = vmatprep.subr.bf16.mxu0 0
      %505 = vmatpush1.bf16.msra.mxu0 %v474
      %506 = vmatprep.subr.bf16.mxu0 0
      %507 = vmatpush2.bf16.msra.mxu0 0
      %508 = vmatprep.subr.bf16.mxu0 0
      %509 = vmatpush2.bf16.msra.mxu0 0
      %510 = vmatprep.subr.bf16.mxu0 0
      %511 = vmatpush2.bf16.msra.mxu0 0
      %512 = vmatprep.subr.bf16.mxu0 0
      %513 = vmatpush2.bf16.msra.mxu0 0
      %514 = vmatprep.subr.bf16.mxu0 0
      %515 = vmatpush2.bf16.msra.mxu0 0
      %516 = vmatprep.subr.bf16.mxu0 0
      %517 = vmatpush2.bf16.msra.mxu0 0
      %518 = vmatprep.subr.bf16.mxu0 0
      %519 = vmatpush2.bf16.msra.mxu0 0
      %520 = vmatprep.subr.bf16.mxu0 0
      %521 = vmatpush2.bf16.msra.mxu0 0
      %522 = vmatprep.mubr.bf16.mxu0 0
      %523 = vmatmul.mubr.bf16.gmra.mxu0 %v440
      %v524 = vpop.f32.mrf.mxu0
      %v525 = vadd.f32 0.0, %v524
      %v526 = vpop.f32.mrf.mxu0
      %v527 = vpop.f32.mrf.mxu0
      %v528 = vadd.f32 0.0, %v527
      %v529 = vpop.f32.mrf.mxu0
      %530 = vdwg.mxu0
      %v531 = vld [vmem:[#allocation2] sm:$0xff]
      %v532 = vld [vmem:[#allocation2 + $0x8] sm:$0xf]
      %v533 = vadd.f32 %v531, %v525
      %v534 = vadd.f32 %v532, %v528
      %535 = vst.msk [vmem:[#allocation2] sm:$0xff] %vm285, %v533
      %536 = vst.msk [vmem:[#allocation2 + $0x8] sm:$0xf] %vm287, %v534
      %v537 = vld [vmem:[%s165] sm:$0xc]
      %v538 = vld [vmem:[%s165 + $0x4] sm:$0xf]
      %v539 = vld [vmem:[%s165 + $0x8] sm:$0x1]
      %s540 = scalar_lea.vmem %s1, 192
      %v541 = vld [vmem:[%s540] sm:$0xf]
      %v542 = vld [vmem:[%s540 + $0x4] sm:$0xf]
      %v543 = vld [vmem:[%s540 + $0x8] sm:$0xf]
      %v544 = vld [vmem:[%s540 + $0xc] sm:$0xf]
      %v545 = vld [vmem:[%s540 + $0x10] sm:$0xf]
      %v546 = vld [vmem:[%s540 + $0x14] sm:$0xf]
      %v547 = vld [vmem:[%s540 + $0x18] sm:$0xf]
      %v548 = vld [vmem:[%s540 + $0x1c] sm:$0xf]
      %v549 = vld [vmem:[%s540 + $0x20] sm:$0xf]
      %v550 = vld [vmem:[%s540 + $0x24] sm:$0xf]
      %v551 = vld [vmem:[%s540 + $0x28] sm:$0xf]
      %v552 = vld [vmem:[%s540 + $0x2c] sm:$0xf]
      %v553 = vld [vmem:[%s540 + $0x30] sm:$0xf]
      %v554 = vld [vmem:[%s540 + $0x34] sm:$0xf]
      %v555 = vld [vmem:[%s540 + $0x38] sm:$0xf]
      %v556 = vld [vmem:[%s540 + $0x3c] sm:$0xf]
      %v560 = vunpack.c.l.b16 %v537
      %v561 = vunpack.c.l.b16 %v538
      %v562 = vunpack.c.l.b16 %v539
      %v563 = vpack.c.b16 %v561, %v560
      %v564 = vpack.c.b16 %v562, %v562
      %vm565 = vsmask.f32 5376
      %v567 = vshrl.u32 %v563, 16
      %v569 = vrot.slane %v567, 2
      %v570 = vshll.u32 %v563, 16
      %v572 = vrot.slane %v570, 3
      %v573 = vor.u32 %v569, %v572
      %v575 = vshll.u32 %v564, 16
      %v577 = vrot.slane %v575, 3
      %v578 = vsel %vm565, %v573, %v577
      %v596 = vunpack.c.l.b16 %v541
      %v597 = vunpack.c.l.b16 %v542
      %v598 = vunpack.c.l.b16 %v543
      %v599 = vunpack.c.l.b16 %v544
      %v600 = vunpack.c.l.b16 %v545
      %v601 = vunpack.c.l.b16 %v546
      %v602 = vunpack.c.l.b16 %v547
      %v603 = vunpack.c.l.b16 %v548
      %v604 = vunpack.c.l.b16 %v549
      %v605 = vunpack.c.l.b16 %v550
      %v606 = vunpack.c.l.b16 %v551
      %v607 = vunpack.c.l.b16 %v552
      %v608 = vunpack.c.l.b16 %v553
      %v609 = vunpack.c.l.b16 %v554
      %v610 = vunpack.c.l.b16 %v555
      %v611 = vunpack.c.l.b16 %v556
      %v612 = vpack.c.b16 %v597, %v596
      %v613 = vpack.c.b16 %v599, %v598
      %v614 = vpack.c.b16 %v601, %v600
      %v615 = vpack.c.b16 %v603, %v602
      %v616 = vpack.c.b16 %v605, %v604
      %v617 = vpack.c.b16 %v607, %v606
      %v618 = vpack.c.b16 %v609, %v608
      %v619 = vpack.c.b16 %v611, %v610
      %628 = vmatprep.subr.bf16.mxu0 0
      %629 = vmatpush1.bf16.msra.mxu0 %v619
      %630 = vmatprep.subr.bf16.mxu0 0
      %631 = vmatpush1.bf16.msra.mxu0 %v618
      %632 = vmatprep.subr.bf16.mxu0 0
      %633 = vmatpush1.bf16.msra.mxu0 %v617
      %634 = vmatprep.subr.bf16.mxu0 0
      %635 = vmatpush1.bf16.msra.mxu0 %v616
      %636 = vmatprep.subr.bf16.mxu0 0
      %637 = vmatpush1.bf16.msra.mxu0 %v615
      %638 = vmatprep.subr.bf16.mxu0 0
      %639 = vmatpush1.bf16.msra.mxu0 %v614
      %640 = vmatprep.subr.bf16.mxu0 0
      %641 = vmatpush1.bf16.msra.mxu0 %v613
      %642 = vmatprep.subr.bf16.mxu0 0
      %643 = vmatpush1.bf16.msra.mxu0 %v612
      %644 = vmatprep.subr.bf16.mxu0 0
      %645 = vmatpush2.bf16.msra.mxu0 0
      %646 = vmatprep.subr.bf16.mxu0 0
      %647 = vmatpush2.bf16.msra.mxu0 0
      %648 = vmatprep.subr.bf16.mxu0 0
      %649 = vmatpush2.bf16.msra.mxu0 0
      %650 = vmatprep.subr.bf16.mxu0 0
      %651 = vmatpush2.bf16.msra.mxu0 0
      %652 = vmatprep.subr.bf16.mxu0 0
      %653 = vmatpush2.bf16.msra.mxu0 0
      %654 = vmatprep.subr.bf16.mxu0 0
      %655 = vmatpush2.bf16.msra.mxu0 0
      %656 = vmatprep.subr.bf16.mxu0 0
      %657 = vmatpush2.bf16.msra.mxu0 0
      %658 = vmatprep.subr.bf16.mxu0 0
      %659 = vmatpush2.bf16.msra.mxu0 0
      %660 = vmatprep.mubr.bf16.mxu0 0
      %661 = vmatmul.mubr.bf16.gmra.mxu0 %v578
      %v662 = vpop.f32.mrf.mxu0
      %v663 = vadd.f32 0.0, %v662
      %v664 = vpop.f32.mrf.mxu0
      %v665 = vpop.f32.mrf.mxu0
      %v666 = vadd.f32 0.0, %v665
      %v667 = vpop.f32.mrf.mxu0
      %668 = vdwg.mxu0
      %v669 = vld [vmem:[#allocation2] sm:$0xff]
      %v670 = vld [vmem:[#allocation2 + $0x8] sm:$0xf]
      %v671 = vadd.f32 %v669, %v663
      %v672 = vadd.f32 %v670, %v666
      %673 = vst.msk [vmem:[#allocation2] sm:$0xff] %vm285, %v671
      %674 = vst.msk [vmem:[#allocation2 + $0x8] sm:$0xf] %vm287, %v672
      %v675 = vld [vmem:[#allocation2] sm:$0xff]
      %v676 = vld [vmem:[#allocation2 + $0x8] sm:$0xf]
      %v677 = vld [vmem:[%s2] sm:$0x1]
      %v679 = vlaneseq
      %v680 = vshrl.u32 %v679, 7
      %v681 = vsub.s32 0, %v680
      %v682 = vrot.slane %v677, %v681
      %v684 = vadd.f32 %v675, %v682
      %v685 = vadd.f32 %v676, %v682
      %v686 = vmax.f32 %v684, 0.0
      %v687 = vmax.f32 %v685, 0.0
      %v688 = vpack.c.bf16 %v687, %v686
      %v690 = vunpack.c.l.b16 %v688
      %v691 = vunpack.c.h.b16 %v688
      %v692 = vpack.c.b16 %v690, %v690
      %v693 = vpack.c.b16 %v691, %v691
      %696 = vst.msk [vmem:[%s170] sm:$0xf] %vm287, %v692
      %vm697 = vcmask 517120
      %698 = vst.msk [vmem:[%s170 + $0x4] sm:$0x3] %vm697, %v693
      %p699 = scmp.lt.s32.totalorder %s14, 1
      %s700 = scalar_select %p699, %s14, 1
      %s701 = smul.addr %s700, 2
      %s702 = smul.addr %s701, 4
      %s703 = scalar_lea.vmem %s3, %s702
      // Predicated region
      $region33: #{cnn_q_function_forward.5} parent=31 // pred_check
        %p704 = pneg %p100
      $region34: #{cnn_q_function_forward.5} parent=31 // pred_check_branch
        %706 = sbr.rel (%p704) target = $region36
      $region35: #{cnn_q_function_forward.5} parent=31 // pred_region
        _
      $region36: #{cnn_q_function_forward.5} parent=31 // pred_fallthru
        _
    $region32: #{cnn_q_function_forward.5} parent=5 // pred_fallthru
      _
    %p707 = scmp.le.s32.totalorder 2, %s9
    // Predicated region
    $region37: #{cnn_q_function_forward.5} parent=5 // pred_check
      %p708 = pneg %p707
    $region38: #{cnn_q_function_forward.5} parent=5 // pred_check_branch
      %710 = sbr.rel (%p708) target = $region40
    $region39: #{cnn_q_function_forward.5} parent=5 // pred_region
      %s711 = ssub.s32 %s9, 2
      // Predicated region
      $region41: #{cnn_q_function_forward.5} parent=39 // pred_check
        %p712 = pneg %p106
      $region42: #{cnn_q_function_forward.5} parent=39 // pred_check_branch
        %714 = sbr.rel (%p712) target = $region44
      $region43: #{cnn_q_function_forward.5} parent=39 // pred_region
        %p715 = scmp.lt.s32.totalorder %s15, 1
        %s716 = scalar_select %p715, %s15, 1
        %s717 = smul.addr %s716, 2
        %s718 = smul.addr %s717, 4
        %s719 = scalar_lea.vmem %s3, %s718
      $region44: #{cnn_q_function_forward.5} parent=39 // pred_fallthru
        _
    $region40: #{cnn_q_function_forward.5} parent=5 // pred_fallthru
      _
  $region6: #{cnn_q_function_forward.5} parent=0 // loop_footer
    %s13 = sadd.s32 1, %s9
  $region7: #{cnn_q_function_forward.5} parent=0 // loop_footer_branch
    %8 = sbr.rel target = $region3
  $region8: #{cnn_q_function_forward.5} parent=0 // loop_exit
    _

// kernel: cnn_q_function_forward.7
$region0: #{cnn_q_function_forward.7}
  #allocation0 [shape = 'u32[]', space=smem, size = 0x4, offset = 0x4, fixed_abs, tag = 'smem constant byte address 0x4 - core index']
  #allocation1 [shape = 'u32[144,128]{1,0:T(1,128)}', space=vmem, size = 0x12000, scoped, tag = 'internal scratch']
  %s0 = inlined_call_operand.vmem [shape: bf16[2,64], index: 0, kind: input, shape index: {}]
  %s1 = inlined_call_operand.vmem [shape: bf16[64,32], index: 1, kind: input, shape index: {}]
  %s2 = inlined_call_operand.vmem [shape: f32[1,32], index: 2, kind: input, shape index: {}]
  %s3 = inlined_call_operand.vmem [shape: bf16[32,32], index: 3, kind: input, shape index: {}]
  %s4 = inlined_call_operand.vmem [shape: f32[1,32], index: 4, kind: input, shape index: {}]
  %s5 = inlined_call_operand.vmem [shape: bf16[32,6], index: 5, kind: input, shape index: {}]
  %s6 = inlined_call_operand.vmem [shape: f32[1,6], index: 6, kind: input, shape index: {}]
  %s7 = inlined_call_operand.hbm [shape: f32[2,6], index: 7, kind: output, shape index: {}]
  %s8 = sld [smem:[#allocation0]]
  $region38: #{cnn_q_function_forward.7} parent=0
    _
  %s10 = ssub.s32 1, %s8
  %s11 = scalar_select 0, %s10, %s8
  $region1: #{cnn_q_function_forward.7} parent=0
    #allocation2 [shape = 'u8[1024]{0}', space=vmem, size = 0x400, scoped, tag = 'output window, operand 0, single buffered']
    #allocation3 [shape = 's32[1]{0}', space=sflag, size = 0x4, scoped, tag = 'scoped memory for cnn_q_function_forward.7']
    %12 = vsyncpa [#allocation3], 0
    // Predicated region
    $region2: #{cnn_q_function_forward.7} parent=1 // pred_check
      _
    $region3: #{cnn_q_function_forward.7} parent=1 // pred_check_branch
      %14 = sbr.rel (0) target = $region5
    $region4: #{cnn_q_function_forward.7} parent=1 // pred_region
      _
    $region5: #{cnn_q_function_forward.7} parent=1 // pred_fallthru
      _
    // Predicated region
    $region6: #{cnn_q_function_forward.7} parent=1 // pred_check
      _
    $region7: #{cnn_q_function_forward.7} parent=1 // pred_check_branch
      %16 = sbr.rel (0) target = $region9
    $region8: #{cnn_q_function_forward.7} parent=1 // pred_region
      _
    $region9: #{cnn_q_function_forward.7} parent=1 // pred_fallthru
      _
    // Predicated region
    $region10: #{cnn_q_function_forward.7} parent=1 // pred_check
      _
    $region11: #{cnn_q_function_forward.7} parent=1 // pred_check_branch
      %18 = sbr.rel (0) target = $region13
    $region12: #{cnn_q_function_forward.7} parent=1 // pred_region
      _
    $region13: #{cnn_q_function_forward.7} parent=1 // pred_fallthru
      _
    // Predicated region
    $region14: #{cnn_q_function_forward.7} parent=1 // pred_check
      _
    $region15: #{cnn_q_function_forward.7} parent=1 // pred_check_branch
      %20 = sbr.rel (0) target = $region17
    $region16: #{cnn_q_function_forward.7} parent=1 // pred_region
      _
    $region17: #{cnn_q_function_forward.7} parent=1 // pred_fallthru
      _
    // Predicated region
    $region18: #{cnn_q_function_forward.7} parent=1 // pred_check
      _
    $region19: #{cnn_q_function_forward.7} parent=1 // pred_check_branch
      %22 = sbr.rel (0) target = $region21
    $region20: #{cnn_q_function_forward.7} parent=1 // pred_region
      _
    $region21: #{cnn_q_function_forward.7} parent=1 // pred_fallthru
      _
    // Predicated region
    $region22: #{cnn_q_function_forward.7} parent=1 // pred_check
      _
    $region23: #{cnn_q_function_forward.7} parent=1 // pred_check_branch
      %24 = sbr.rel (0) target = $region25
    $region24: #{cnn_q_function_forward.7} parent=1 // pred_region
      _
    $region25: #{cnn_q_function_forward.7} parent=1 // pred_fallthru
      _
    // Predicated region
    $region26: #{cnn_q_function_forward.7} parent=1 // pred_check
      _
    $region27: #{cnn_q_function_forward.7} parent=1 // pred_check_branch
      %26 = sbr.rel (0) target = $region29
    $region28: #{cnn_q_function_forward.7} parent=1 // pred_region
      _
    $region29: #{cnn_q_function_forward.7} parent=1 // pred_fallthru
      _
    %v28 = vld [vmem:[%s0] sm:$0x1]
    %v29 = vld [vmem:[%s1] sm:$0xf]
    %v30 = vld [vmem:[%s1 + $0x4] sm:$0xf]
    %v31 = vld [vmem:[%s1 + $0x8] sm:$0xf]
    %v32 = vld [vmem:[%s1 + $0xc] sm:$0xf]
    %v33 = vld [vmem:[%s1 + $0x10] sm:$0xf]
    %v34 = vld [vmem:[%s1 + $0x14] sm:$0xf]
    %v35 = vld [vmem:[%s1 + $0x18] sm:$0xf]
    %v36 = vld [vmem:[%s1 + $0x1c] sm:$0xf]
    %v37 = vld [vmem:[%s2] sm:$0x1]
    %v39 = vlaneseq
    %v40 = vshrl.u32 %v39, 7
    %v41 = vsub.s32 0, %v40
    %v42 = vrot.slane %v37, %v41
    %v52 = vunpack.c.l.b16 %v29
    %v53 = vunpack.c.l.b16 %v30
    %v54 = vunpack.c.l.b16 %v31
    %v55 = vunpack.c.l.b16 %v32
    %v56 = vunpack.c.l.b16 %v33
    %v57 = vunpack.c.l.b16 %v34
    %v58 = vunpack.c.l.b16 %v35
    %v59 = vunpack.c.l.b16 %v36
    %v60 = vpack.c.b16 %v53, %v52
    %v61 = vpack.c.b16 %v55, %v54
    %v62 = vpack.c.b16 %v57, %v56
    %v63 = vpack.c.b16 %v59, %v58
    %vm68 = vcmask 523264
    %v70 = vsel %vm68, %v28, 0
    %72 = vmatprep.subr.bf16.mxu0 0
    %73 = vmatpush1.bf16.msra.mxu0 0
    %74 = vmatprep.subr.bf16.mxu0 0
    %75 = vmatpush1.bf16.msra.mxu0 0
    %76 = vmatprep.subr.bf16.mxu0 0
    %77 = vmatpush1.bf16.msra.mxu0 0
    %78 = vmatprep.subr.bf16.mxu0 0
    %79 = vmatpush1.bf16.msra.mxu0 0
    %80 = vmatprep.subr.bf16.mxu0 0
    %81 = vmatpush1.bf16.msra.mxu0 %v63
    %82 = vmatprep.subr.bf16.mxu0 0
    %83 = vmatpush1.bf16.msra.mxu0 %v62
    %84 = vmatprep.subr.bf16.mxu0 0
    %85 = vmatpush1.bf16.msra.mxu0 %v61
    %86 = vmatprep.subr.bf16.mxu0 0
    %87 = vmatpush1.bf16.msra.mxu0 %v60
    %88 = vmatprep.subr.bf16.mxu0 0
    %89 = vmatpush2.bf16.msra.mxu0 0
    %90 = vmatprep.subr.bf16.mxu0 0
    %91 = vmatpush2.bf16.msra.mxu0 0
    %92 = vmatprep.subr.bf16.mxu0 0
    %93 = vmatpush2.bf16.msra.mxu0 0
    %94 = vmatprep.subr.bf16.mxu0 0
    %95 = vmatpush2.bf16.msra.mxu0 0
    %96 = vmatprep.subr.bf16.mxu0 0
    %97 = vmatpush2.bf16.msra.mxu0 0
    %98 = vmatprep.subr.bf16.mxu0 0
    %99 = vmatpush2.bf16.msra.mxu0 0
    %100 = vmatprep.subr.bf16.mxu0 0
    %101 = vmatpush2.bf16.msra.mxu0 0
    %102 = vmatprep.subr.bf16.mxu0 0
    %103 = vmatpush2.bf16.msra.mxu0 0
    %104 = vmatprep.mubr.bf16.mxu0 0
    %105 = vmatmul.mubr.bf16.gmra.mxu0 %v70
    %v106 = vpop.f32.mrf.mxu0
    %v107 = vadd.f32 %v42, %v106
    %v108 = vpop.f32.mrf.mxu0
    %v109 = vpop.f32.mrf.mxu0
    %v110 = vpop.f32.mrf.mxu0
    %111 = vdwg.mxu0
    %v112 = vmax.f32 %v107, 0.0
    %v113 = vpack.c.bf16 %v112, %v112
    %v114 = vld [vmem:[%s3] sm:$0xf]
    %v115 = vld [vmem:[%s3 + $0x4] sm:$0xf]
    %v116 = vld [vmem:[%s3 + $0x8] sm:$0xf]
    %v117 = vld [vmem:[%s3 + $0xc] sm:$0xf]
    %v118 = vld [vmem:[%s4] sm:$0x1]
    %v120 = vlaneseq
    %v121 = vshrl.u32 %v120, 7
    %v122 = vsub.s32 0, %v121
    %v123 = vrot.slane %v118, %v122
    %v129 = vunpack.c.l.b16 %v114
    %v130 = vunpack.c.l.b16 %v115
    %v131 = vunpack.c.l.b16 %v116
    %v132 = vunpack.c.l.b16 %v117
    %v133 = vpack.c.b16 %v130, %v129
    %v134 = vpack.c.b16 %v132, %v131
    %vm137 = vcmask 261120
    %v139 = vsel %vm137, %v113, 0
    %141 = vmatprep.subr.bf16.mxu0 0
    %142 = vmatpush1.bf16.msra.mxu0 0
    %143 = vmatprep.subr.bf16.mxu0 0
    %144 = vmatpush1.bf16.msra.mxu0 0
    %145 = vmatprep.subr.bf16.mxu0 0
    %146 = vmatpush1.bf16.msra.mxu0 0
    %147 = vmatprep.subr.bf16.mxu0 0
    %148 = vmatpush1.bf16.msra.mxu0 0
    %149 = vmatprep.subr.bf16.mxu0 0
    %150 = vmatpush1.bf16.msra.mxu0 0
    %151 = vmatprep.subr.bf16.mxu0 0
    %152 = vmatpush1.bf16.msra.mxu0 0
    %153 = vmatprep.subr.bf16.mxu0 0
    %154 = vmatpush1.bf16.msra.mxu0 %v134
    %155 = vmatprep.subr.bf16.mxu0 0
    %156 = vmatpush1.bf16.msra.mxu0 %v133
    %157 = vmatprep.subr.bf16.mxu0 0
    %158 = vmatpush2.bf16.msra.mxu0 0
    %159 = vmatprep.subr.bf16.mxu0 0
    %160 = vmatpush2.bf16.msra.mxu0 0
    %161 = vmatprep.subr.bf16.mxu0 0
    %162 = vmatpush2.bf16.msra.mxu0 0
    %163 = vmatprep.subr.bf16.mxu0 0
    %164 = vmatpush2.bf16.msra.mxu0 0
    %165 = vmatprep.subr.bf16.mxu0 0
    %166 = vmatpush2.bf16.msra.mxu0 0
    %167 = vmatprep.subr.bf16.mxu0 0
    %168 = vmatpush2.bf16.msra.mxu0 0
    %169 = vmatprep.subr.bf16.mxu0 0
    %170 = vmatpush2.bf16.msra.mxu0 0
    %171 = vmatprep.subr.bf16.mxu0 0
    %172 = vmatpush2.bf16.msra.mxu0 0
    %173 = vmatprep.mubr.bf16.mxu0 0
    %174 = vmatmul.mubr.bf16.gmra.mxu0 %v139
    %v175 = vpop.f32.mrf.mxu0
    %v176 = vadd.f32 %v123, %v175
    %v177 = vpop.f32.mrf.mxu0
    %v178 = vpop.f32.mrf.mxu0
    %v179 = vpop.f32.mrf.mxu0
    %180 = vdwg.mxu0
    %v181 = vmax.f32 %v176, 0.0
    %v182 = vpack.c.bf16 %v181, %v181
    %v183 = vld [vmem:[%s5] sm:$0xf]
    %v184 = vld [vmem:[%s5 + $0x4] sm:$0xf]
    %v185 = vld [vmem:[%s5 + $0x8] sm:$0xf]
    %v186 = vld [vmem:[%s5 + $0xc] sm:$0xf]
    %v187 = vld [vmem:[%s6] sm:$0x1]
    %v189 = vlaneseq
    %v190 = vshrl.u32 %v189, 7
    %v191 = vsub.s32 0, %v190
    %v192 = vrot.slane %v187, %v191
    %v198 = vunpack.c.l.b16 %v183
    %v199 = vunpack.c.l.b16 %v184
    %v200 = vunpack.c.l.b16 %v185
    %v201 = vunpack.c.l.b16 %v186
    %v202 = vpack.c.b16 %v199, %v198
    %v203 = vpack.c.b16 %v201, %v200
    %v207 = vsel %vm137, %v182, 0
    %209 = vmatprep.subr.bf16.mxu0 0
    %210 = vmatpush1.bf16.msra.mxu0 0
    %211 = vmatprep.subr.bf16.mxu0 0
    %212 = vmatpush1.bf16.msra.mxu0 0
    %213 = vmatprep.subr.bf16.mxu0 0
    %214 = vmatpush1.bf16.msra.mxu0 0
    %215 = vmatprep.subr.bf16.mxu0 0
    %216 = vmatpush1.bf16.msra.mxu0 0
    %217 = vmatprep.subr.bf16.mxu0 0
    %218 = vmatpush1.bf16.msra.mxu0 0
    %219 = vmatprep.subr.bf16.mxu0 0
    %220 = vmatpush1.bf16.msra.mxu0 0
    %221 = vmatprep.subr.bf16.mxu0 0
    %222 = vmatpush1.bf16.msra.mxu0 %v203
    %223 = vmatprep.subr.bf16.mxu0 0
    %224 = vmatpush1.bf16.msra.mxu0 %v202
    %225 = vmatprep.subr.bf16.mxu0 0
    %226 = vmatpush2.bf16.msra.mxu0 0
    %227 = vmatprep.subr.bf16.mxu0 0
    %228 = vmatpush2.bf16.msra.mxu0 0
    %229 = vmatprep.subr.bf16.mxu0 0
    %230 = vmatpush2.bf16.msra.mxu0 0
    %231 = vmatprep.subr.bf16.mxu0 0
    %232 = vmatpush2.bf16.msra.mxu0 0
    %233 = vmatprep.subr.bf16.mxu0 0
    %234 = vmatpush2.bf16.msra.mxu0 0
    %235 = vmatprep.subr.bf16.mxu0 0
    %236 = vmatpush2.bf16.msra.mxu0 0
    %237 = vmatprep.subr.bf16.mxu0 0
    %238 = vmatpush2.bf16.msra.mxu0 0
    %239 = vmatprep.subr.bf16.mxu0 0
    %240 = vmatpush2.bf16.msra.mxu0 0
    %241 = vmatprep.mubr.bf16.mxu0 0
    %242 = vmatmul.mubr.bf16.gmra.mxu0 %v207
    %v243 = vpop.f32.mrf.mxu0
    %v244 = vadd.f32 %v192, %v243
    %v245 = vpop.f32.mrf.mxu0
    %v246 = vpop.f32.mrf.mxu0
    %v247 = vpop.f32.mrf.mxu0
    %248 = vdwg.mxu0
    %vm249 = vcmask 41984
    %250 = vst.msk [vmem:[#allocation2] sm:$0x3] %vm249, %v244
    // Predicated region
    $region30: #{cnn_q_function_forward.7} parent=1 // pred_check
      _
    $region31: #{cnn_q_function_forward.7} parent=1 // pred_check_branch
      %252 = sbr.rel (0) target = $region33
    $region32: #{cnn_q_function_forward.7} parent=1 // pred_region
      %s254 = ssub.s32 32, 32
      %255 = vsyncadd [#allocation3], %s254
      %s257 = sshll.u32 [#allocation2], 4
      %s258 = int_to_ptr.vmem [resolvable:$true] %s257
      %260 = dma.vmem_to_hbm [thread:$0]  %s258, 32, %s7, [#allocation3]
    $region33: #{cnn_q_function_forward.7} parent=1 // pred_fallthru
      _
    // Predicated region
    $region34: #{cnn_q_function_forward.7} parent=1 // pred_check
      _
    $region35: #{cnn_q_function_forward.7} parent=1 // pred_check_branch
      %262 = sbr.rel (0) target = $region37
    $region36: #{cnn_q_function_forward.7} parent=1 // pred_region
      %263 = dma.done [#allocation3], 32
    $region37: #{cnn_q_function_forward.7} parent=1 // pred_fallthru
      _
    %264 = vsyncpa [#allocation3], 1

// kernel: cnn_q_function_forward.6
$region0: #{cnn_q_function_forward.6}
  #allocation0 [shape = 'u32[]', space=smem, size = 0x4, offset = 0x4, fixed_abs, tag = 'smem constant byte address 0x4 - core index']
  #allocation1 [shape = 'u32[144,128]{1,0:T(1,128)}', space=vmem, size = 0x12000, scoped, tag = 'internal scratch']
  #allocation2 [shape = 'f32[3,64]{1,0:T(4,128)}', space=vmem, size = 0x800, scoped, tag = 'scratch operand']
  %s0 = inlined_call_operand.vmem [shape: bf16[2,11,64], index: 0, kind: input, shape index: {}]
  %s1 = inlined_call_operand.vmem [shape: bf16[9,64,64], index: 1, kind: input, shape index: {}]
  %s2 = inlined_call_operand.vmem [shape: f32[1,64], index: 2, kind: input, shape index: {}]
  %s3 = inlined_call_operand.vmem [shape: bf16[2,3,64], index: 3, kind: output, shape index: {}]
  %s4 = sld [smem:[#allocation0]]
  $region45: #{cnn_q_function_forward.6} parent=0
    _
  %s6 = ssub.s32 1, %s4
  %s7 = scalar_select 0, %s6, %s4
  loop: start=0, step=1, limit=4
  $region2: #{cnn_q_function_forward.6} parent=0 // loop_pre_header
    _
  $region3: #{cnn_q_function_forward.6} parent=0 // loop_header
    %s9 = sphi 0, %s13
    %p10 = scmp.ge.s32.totalorder %s9, 4
    %s19 = sphi 0, %s21
    %s22 = sphi 0, %s19
    %s23 = sphi 0, %s22
    %s39 = sphi 0, %s23
    %s43 = sphi 0, %s43
    %s45 = sphi 0, %s43
    %s46 = sphi 0, %s45
    %s60 = sphi 0, %s46
    %s64 = sphi 0, %s64
    %s66 = sphi 0, %s64
    %s67 = sphi 0, %s66
    %s81 = sphi 0, %s67
    %s87 = sphi 0, %s89
    %s90 = sphi 0, %s87
    %s91 = sphi 0, %s90
    %s107 = sphi 0, %s91
  $region4: #{cnn_q_function_forward.6} parent=0 // loop_header_branch
    %12 = sbr.rel (%p10) target = $region8
  $region5: #{cnn_q_function_forward.6} parent=0 // loop_body
    %s14 = ssub.s32 %s9, 1
    %s15 = ssub.s32 %s9, 2
    %s16 = sadd.s32 %s9, 1
    %s17 = ssub.s32 %s9, %s16
    %p18 = scmp.eq.s32.totalorder %s17, 0
    %s20 = sadd.s32 %s19, 1
    %s21 = scalar_select %p18, %s19, %s20
    %p24 = pneg %p18
    %p25 = scmp.eq.s32.totalorder %s9, 1
    %p26 = por %p24, %p25
    %p27 = scmp.ne.s32.totalorder %s19, %s22
    %p28 = scmp.eq.s32.totalorder %s9, 0
    %p29 = por %p27, %p28
    %p30 = scmp.ne.s32.totalorder %s19, %s22
    %p31 = scmp.eq.s32.totalorder %s14, 1
    %p32 = por %p30, %p31
    %p33 = scmp.ne.s32.totalorder %s22, %s23
    %p34 = scmp.eq.s32.totalorder %s14, 0
    %p35 = por %p33, %p34
    %p36 = scmp.ne.s32.totalorder %s22, %s23
    %p37 = scmp.eq.s32.totalorder %s15, 1
    %p38 = por %p36, %p37
    %p40 = scmp.ne.s32.totalorder %s23, %s39
    %p41 = scmp.eq.s32.totalorder %s15, 0
    %p42 = por %p40, %p41
    %s44 = sadd.s32 %s43, 1
    %p47 = scmp.eq.s32.totalorder %s9, 1
    %p48 = scmp.ne.s32.totalorder %s43, %s45
    %p49 = scmp.eq.s32.totalorder %s9, 0
    %p50 = por %p48, %p49
    %p51 = scmp.ne.s32.totalorder %s43, %s45
    %p52 = scmp.eq.s32.totalorder %s14, 1
    %p53 = por %p51, %p52
    %p54 = scmp.ne.s32.totalorder %s45, %s46
    %p55 = scmp.eq.s32.totalorder %s14, 0
    %p56 = por %p54, %p55
    %p57 = scmp.ne.s32.totalorder %s45, %s46
    %p58 = scmp.eq.s32.totalorder %s15, 1
    %p59 = por %p57, %p58
    %p61 = scmp.ne.s32.totalorder %s46, %s60
    %p62 = scmp.eq.s32.totalorder %s15, 0
    %p63 = por %p61, %p62
    %s65 = sadd.s32 %s64, 1
    %p68 = scmp.eq.s32.totalorder %s9, 1
    %p69 = scmp.ne.s32.totalorder %s64, %s66
    %p70 = scmp.eq.s32.totalorder %s9, 0
    %p71 = por %p69, %p70
    %p72 = scmp.ne.s32.totalorder %s64, %s66
    %p73 = scmp.eq.s32.totalorder %s14, 1
    %p74 = por %p72, %p73
    %p75 = scmp.ne.s32.totalorder %s66, %s67
    %p76 = scmp.eq.s32.totalorder %s14, 0
    %p77 = por %p75, %p76
    %p78 = scmp.ne.s32.totalorder %s66, %s67
    %p79 = scmp.eq.s32.totalorder %s15, 1
    %p80 = por %p78, %p79
    %p82 = scmp.ne.s32.totalorder %s67, %s81
    %p83 = scmp.eq.s32.totalorder %s15, 0
    %p84 = por %p82, %p83
    %s85 = ssub.s32 %s9, %s16
    %p86 = scmp.eq.s32.totalorder %s85, 0
    %s88 = sadd.s32 %s87, 1
    %s89 = scalar_select %p86, %s87, %s88
    %p92 = pneg %p86
    %p93 = scmp.eq.s32.totalorder %s9, 1
    %p94 = por %p92, %p93
    %p95 = scmp.ne.s32.totalorder %s87, %s90
    %p96 = scmp.eq.s32.totalorder %s9, 0
    %p97 = por %p95, %p96
    %p98 = scmp.ne.s32.totalorder %s87, %s90
    %p99 = scmp.eq.s32.totalorder %s14, 1
    %p100 = por %p98, %p99
    %p101 = scmp.ne.s32.totalorder %s90, %s91
    %p102 = scmp.eq.s32.totalorder %s14, 0
    %p103 = por %p101, %p102
    %p104 = scmp.ne.s32.totalorder %s90, %s91
    %p105 = scmp.eq.s32.totalorder %s15, 1
    %p106 = por %p104, %p105
    %p108 = scmp.ne.s32.totalorder %s91, %s107
    %p109 = scmp.eq.s32.totalorder %s15, 0
    %p110 = por %p108, %p109
    %p111 = scmp.le.s32.totalorder 1, %s9
    %p112 = scmp.lt.s32.totalorder %s9, 3
    %p113 = pnand %p111, %p112
    %p114 = pneg %p113
    // Predicated region
    $region9: #{cnn_q_function_forward.6} parent=5 // pred_check
      _
    $region10: #{cnn_q_function_forward.6} parent=5 // pred_check_branch
      %116 = sbr.rel (%p113) target = $region12
    $region11: #{cnn_q_function_forward.6} parent=5 // pred_region
      %s117 = ssub.s32 %s9, 1
      // Predicated region
      $region13: #{cnn_q_function_forward.6} parent=11 // pred_check
        %p118 = pneg %p56
      $region14: #{cnn_q_function_forward.6} parent=11 // pred_check_branch
        %120 = sbr.rel (%p118) target = $region16
      $region15: #{cnn_q_function_forward.6} parent=11 // pred_region
        _
      $region16: #{cnn_q_function_forward.6} parent=11 // pred_fallthru
        _
      // Predicated region
      $region17: #{cnn_q_function_forward.6} parent=11 // pred_check
        %p121 = pneg %p77
      $region18: #{cnn_q_function_forward.6} parent=11 // pred_check_branch
        %123 = sbr.rel (%p121) target = $region20
      $region19: #{cnn_q_function_forward.6} parent=11 // pred_region
        _
      $region20: #{cnn_q_function_forward.6} parent=11 // pred_fallthru
        _
    $region12: #{cnn_q_function_forward.6} parent=5 // pred_fallthru
      _
    %p124 = scmp.lt.s32.totalorder %s9, 2
    // Predicated region
    $region21: #{cnn_q_function_forward.6} parent=5 // pred_check
      %p125 = pneg %p124
    $region22: #{cnn_q_function_forward.6} parent=5 // pred_check_branch
      %127 = sbr.rel (%p125) target = $region24
    $region23: #{cnn_q_function_forward.6} parent=5 // pred_region
      // Predicated region
      $region25: #{cnn_q_function_forward.6} parent=23 // pred_check
        %p128 = pneg %p29
      $region26: #{cnn_q_function_forward.6} parent=23 // pred_check_branch
        %130 = sbr.rel (%p128) target = $region28
      $region27: #{cnn_q_function_forward.6} parent=23 // pred_region
        %p131 = scmp.lt.s32.totalorder %s9, 1
        %s132 = scalar_select %p131, %s9, 1
        %s133 = smul.addr %s132, 2
        %s134 = smul.addr %s133, 4
        %s135 = scalar_lea.vmem %s0, %s134
      $region28: #{cnn_q_function_forward.6} parent=23 // pred_fallthru
        _
    $region24: #{cnn_q_function_forward.6} parent=5 // pred_fallthru
      _
    %p136 = scmp.le.s32.totalorder 1, %s9
    %p137 = scmp.lt.s32.totalorder %s9, 3
    %p138 = pnand %p136, %p137
    %p139 = pneg %p138
    // Predicated region
    $region29: #{cnn_q_function_forward.6} parent=5 // pred_check
      _
    $region30: #{cnn_q_function_forward.6} parent=5 // pred_check_branch
      %141 = sbr.rel (%p138) target = $region32
    $region31: #{cnn_q_function_forward.6} parent=5 // pred_region
      %s142 = ssub.s32 %s9, 1
      %p143 = scmp.lt.s32.totalorder %s14, 1
      %s144 = scalar_select %p143, %s14, 1
      %s145 = smul.addr %s144, 2
      %s146 = smul.addr %s145, 4
      %s147 = scalar_lea.vmem %s0, %s146
      %p148 = pneg %p35
      %p149 = pneg %p32
      %p150 = pneg %p56
      %p151 = pneg %p53
      %p152 = pneg %p77
      %p153 = pneg %p74
      %p154 = pneg %p103
      %p155 = pneg %p100
      %p156 = scmp.lt.s32.totalorder %s14, 1
      %s157 = scalar_select %p156, %s14, 1
      %s158 = smul.addr %s157, 2
      %s159 = scalar_lea.vmem %s3, %s158
      %p160 = scmp.lt.s32.totalorder %s14, 1
      %s161 = scalar_select %p160, %s14, 1
      %s162 = smul.addr %s161, 2
      %s163 = smul.addr %s162, 4
      %s164 = scalar_lea.vmem %s0, %s163
      %p165 = scmp.lt.s32.totalorder %s14, 1
      %s166 = scalar_select %p165, %s14, 1
      %s167 = smul.addr %s166, 2
      %s168 = scalar_lea.vmem %s3, %s167
      %v170 = vld [vmem:[%s164] sm:$0x3]
      %v171 = vld [vmem:[%s1] sm:$0xf]
      %v172 = vld [vmem:[%s1 + $0x4] sm:$0xf]
      %v173 = vld [vmem:[%s1 + $0x8] sm:$0xf]
      %v174 = vld [vmem:[%s1 + $0xc] sm:$0xf]
      %v175 = vld [vmem:[%s1 + $0x10] sm:$0xf]
      %v176 = vld [vmem:[%s1 + $0x14] sm:$0xf]
      %v177 = vld [vmem:[%s1 + $0x18] sm:$0xf]
      %v178 = vld [vmem:[%s1 + $0x1c] sm:$0xf]
      %v187 = vunpack.c.l.b16 %v171
      %v188 = vunpack.c.l.b16 %v172
      %v189 = vunpack.c.l.b16 %v173
      %v190 = vunpack.c.l.b16 %v174
      %v191 = vunpack.c.l.b16 %v175
      %v192 = vunpack.c.l.b16 %v176
      %v193 = vunpack.c.l.b16 %v177
      %v194 = vunpack.c.l.b16 %v178
      %v195 = vpack.c.b16 %v188, %v187
      %v196 = vpack.c.b16 %v190, %v189
      %v197 = vpack.c.b16 %v192, %v191
      %v198 = vpack.c.b16 %v194, %v193
      %vm203 = vcmask 523264
      %v205 = vsel %vm203, %v170, 0
      %207 = vmatprep.subr.bf16.mxu0 0
      %208 = vmatpush1.bf16.msra.mxu0 0
      %209 = vmatprep.subr.bf16.mxu0 0
      %210 = vmatpush1.bf16.msra.mxu0 0
      %211 = vmatprep.subr.bf16.mxu0 0
      %212 = vmatpush1.bf16.msra.mxu0 0
      %213 = vmatprep.subr.bf16.mxu0 0
      %214 = vmatpush1.bf16.msra.mxu0 0
      %215 = vmatprep.subr.bf16.mxu0 0
      %216 = vmatpush1.bf16.msra.mxu0 %v198
      %217 = vmatprep.subr.bf16.mxu0 0
      %218 = vmatpush1.bf16.msra.mxu0 %v197
      %219 = vmatprep.subr.bf16.mxu0 0
      %220 = vmatpush1.bf16.msra.mxu0 %v196
      %221 = vmatprep.subr.bf16.mxu0 0
      %222 = vmatpush1.bf16.msra.mxu0 %v195
      %223 = vmatprep.subr.bf16.mxu0 0
      %224 = vmatpush2.bf16.msra.mxu0 0
      %225 = vmatprep.subr.bf16.mxu0 0
      %226 = vmatpush2.bf16.msra.mxu0 0
      %227 = vmatprep.subr.bf16.mxu0 0
      %228 = vmatpush2.bf16.msra.mxu0 0
      %229 = vmatprep.subr.bf16.mxu0 0
      %230 = vmatpush2.bf16.msra.mxu0 0
      %231 = vmatprep.subr.bf16.mxu0 0
      %232 = vmatpush2.bf16.msra.mxu0 0
      %233 = vmatprep.subr.bf16.mxu0 0
      %234 = vmatpush2.bf16.msra.mxu0 0
      %235 = vmatprep.subr.bf16.mxu0 0
      %236 = vmatpush2.bf16.msra.mxu0 0
      %237 = vmatprep.subr.bf16.mxu0 0
      %238 = vmatpush2.bf16.msra.mxu0 0
      %239 = vmatprep.mubr.bf16.mxu0 0
      %240 = vmatmul.mubr.bf16.gmra.mxu0 %v205
      %v241 = vpop.f32.mrf.mxu0
      %v242 = vadd.f32 0.0, %v241
      %v243 = vpop.f32.mrf.mxu0
      %v244 = vpop.f32.mrf.mxu0
      %v245 = vpop.f32.mrf.mxu0
      %246 = vdwg.mxu0
      %vm247 = vcmask 518144
      %248 = vst.msk [vmem:[#allocation2] sm:$0x7] %vm247, %v242
      %v249 = vld [vmem:[%s164] sm:$0x3]
      %s250 = scalar_lea.vmem %s1, 32
      %v251 = vld [vmem:[%s250] sm:$0xf]
      %v252 = vld [vmem:[%s250 + $0x4] sm:$0xf]
      %v253 = vld [vmem:[%s250 + $0x8] sm:$0xf]
      %v254 = vld [vmem:[%s250 + $0xc] sm:$0xf]
      %v255 = vld [vmem:[%s250 + $0x10] sm:$0xf]
      %v256 = vld [vmem:[%s250 + $0x14] sm:$0xf]
      %v257 = vld [vmem:[%s250 + $0x18] sm:$0xf]
      %v258 = vld [vmem:[%s250 + $0x1c] sm:$0xf]
      %v260 = vunpack.c.l.b16 %v249
      %v261 = vpack.c.b16 %v260, %v260
      %v263 = vshrl.u32 %v261, 16
      %v265 = vshll.u32 %v261, 16
      %v267 = vrot.slane %v265, 1
      %v268 = vor.u32 %v263, %v267
      %v277 = vunpack.c.l.b16 %v251
      %v278 = vunpack.c.l.b16 %v252
      %v279 = vunpack.c.l.b16 %v253
      %v280 = vunpack.c.l.b16 %v254
      %v281 = vunpack.c.l.b16 %v255
      %v282 = vunpack.c.l.b16 %v256
      %v283 = vunpack.c.l.b16 %v257
      %v284 = vunpack.c.l.b16 %v258
      %v285 = vpack.c.b16 %v278, %v277
      %v286 = vpack.c.b16 %v280, %v279
      %v287 = vpack.c.b16 %v282, %v281
      %v288 = vpack.c.b16 %v284, %v283
      %v294 = vsel %vm203, %v268, 0
      %296 = vmatprep.subr.bf16.mxu0 0
      %297 = vmatpush1.bf16.msra.mxu0 0
      %298 = vmatprep.subr.bf16.mxu0 0
      %299 = vmatpush1.bf16.msra.mxu0 0
      %300 = vmatprep.subr.bf16.mxu0 0
      %301 = vmatpush1.bf16.msra.mxu0 0
      %302 = vmatprep.subr.bf16.mxu0 0
      %303 = vmatpush1.bf16.msra.mxu0 0
      %304 = vmatprep.subr.bf16.mxu0 0
      %305 = vmatpush1.bf16.msra.mxu0 %v288
      %306 = vmatprep.subr.bf16.mxu0 0
      %307 = vmatpush1.bf16.msra.mxu0 %v287
      %308 = vmatprep.subr.bf16.mxu0 0
      %309 = vmatpush1.bf16.msra.mxu0 %v286
      %310 = vmatprep.subr.bf16.mxu0 0
      %311 = vmatpush1.bf16.msra.mxu0 %v285
      %312 = vmatprep.subr.bf16.mxu0 0
      %313 = vmatpush2.bf16.msra.mxu0 0
      %314 = vmatprep.subr.bf16.mxu0 0
      %315 = vmatpush2.bf16.msra.mxu0 0
      %316 = vmatprep.subr.bf16.mxu0 0
      %317 = vmatpush2.bf16.msra.mxu0 0
      %318 = vmatprep.subr.bf16.mxu0 0
      %319 = vmatpush2.bf16.msra.mxu0 0
      %320 = vmatprep.subr.bf16.mxu0 0
      %321 = vmatpush2.bf16.msra.mxu0 0
      %322 = vmatprep.subr.bf16.mxu0 0
      %323 = vmatpush2.bf16.msra.mxu0 0
      %324 = vmatprep.subr.bf16.mxu0 0
      %325 = vmatpush2.bf16.msra.mxu0 0
      %326 = vmatprep.subr.bf16.mxu0 0
      %327 = vmatpush2.bf16.msra.mxu0 0
      %328 = vmatprep.mubr.bf16.mxu0 0
      %329 = vmatmul.mubr.bf16.gmra.mxu0 %v294
      %v330 = vpop.f32.mrf.mxu0
      %v331 = vadd.f32 0.0, %v330
      %v332 = vpop.f32.mrf.mxu0
      %v333 = vpop.f32.mrf.mxu0
      %v334 = vpop.f32.mrf.mxu0
      %335 = vdwg.mxu0
      %v336 = vld [vmem:[#allocation2] sm:$0x7]
      %v337 = vadd.f32 %v336, %v331
      %338 = vst.msk [vmem:[#allocation2] sm:$0x7] %vm247, %v337
      %v339 = vld [vmem:[%s164] sm:$0x6]
      %s340 = scalar_lea.vmem %s1, 64
      %v341 = vld [vmem:[%s340] sm:$0xf]
      %v342 = vld [vmem:[%s340 + $0x4] sm:$0xf]
      %v343 = vld [vmem:[%s340 + $0x8] sm:$0xf]
      %v344 = vld [vmem:[%s340 + $0xc] sm:$0xf]
      %v345 = vld [vmem:[%s340 + $0x10] sm:$0xf]
      %v346 = vld [vmem:[%s340 + $0x14] sm:$0xf]
      %v347 = vld [vmem:[%s340 + $0x18] sm:$0xf]
      %v348 = vld [vmem:[%s340 + $0x1c] sm:$0xf]
      %v350 = vunpack.c.l.b16 %v339
      %v351 = vpack.c.b16 %v350, %v350
      %v352 = vrot.slane %v351, 1
      %v361 = vunpack.c.l.b16 %v341
      %v362 = vunpack.c.l.b16 %v342
      %v363 = vunpack.c.l.b16 %v343
      %v364 = vunpack.c.l.b16 %v344
      %v365 = vunpack.c.l.b16 %v345
      %v366 = vunpack.c.l.b16 %v346
      %v367 = vunpack.c.l.b16 %v347
      %v368 = vunpack.c.l.b16 %v348
      %v369 = vpack.c.b16 %v362, %v361
      %v370 = vpack.c.b16 %v364, %v363
      %v371 = vpack.c.b16 %v366, %v365
      %v372 = vpack.c.b16 %v368, %v367
      %v378 = vsel %vm203, %v352, 0
      %380 = vmatprep.subr.bf16.mxu0 0
      %381 = vmatpush1.bf16.msra.mxu0 0
      %382 = vmatprep.subr.bf16.mxu0 0
      %383 = vmatpush1.bf16.msra.mxu0 0
      %384 = vmatprep.subr.bf16.mxu0 0
      %385 = vmatpush1.bf16.msra.mxu0 0
      %386 = vmatprep.subr.bf16.mxu0 0
      %387 = vmatpush1.bf16.msra.mxu0 0
      %388 = vmatprep.subr.bf16.mxu0 0
      %389 = vmatpush1.bf16.msra.mxu0 %v372
      %390 = vmatprep.subr.bf16.mxu0 0
      %391 = vmatpush1.bf16.msra.mxu0 %v371
      %392 = vmatprep.subr.bf16.mxu0 0
      %393 = vmatpush1.bf16.msra.mxu0 %v370
      %394 = vmatprep.subr.bf16.mxu0 0
      %395 = vmatpush1.bf16.msra.mxu0 %v369
      %396 = vmatprep.subr.bf16.mxu0 0
      %397 = vmatpush2.bf16.msra.mxu0 0
      %398 = vmatprep.subr.bf16.mxu0 0
      %399 = vmatpush2.bf16.msra.mxu0 0
      %400 = vmatprep.subr.bf16.mxu0 0
      %401 = vmatpush2.bf16.msra.mxu0 0
      %402 = vmatprep.subr.bf16.mxu0 0
      %403 = vmatpush2.bf16.msra.mxu0 0
      %404 = vmatprep.subr.bf16.mxu0 0
      %405 = vmatpush2.bf16.msra.mxu0 0
      %406 = vmatprep.subr.bf16.mxu0 0
      %407 = vmatpush2.bf16.msra.mxu0 0
      %408 = vmatprep.subr.bf16.mxu0 0
      %409 = vmatpush2.bf16.msra.mxu0 0
      %410 = vmatprep.subr.bf16.mxu0 0
      %411 = vmatpush2.bf16.msra.mxu0 0
      %412 = vmatprep.mubr.bf16.mxu0 0
      %413 = vmatmul.mubr.bf16.gmra.mxu0 %v378
      %v414 = vpop.f32.mrf.mxu0
      %v415 = vadd.f32 0.0, %v414
      %v416 = vpop.f32.mrf.mxu0
      %v417 = vpop.f32.mrf.mxu0
      %v418 = vpop.f32.mrf.mxu0
      %419 = vdwg.mxu0
      %v420 = vld [vmem:[#allocation2] sm:$0x7]
      %v421 = vadd.f32 %v420, %v415
      %422 = vst.msk [vmem:[#allocation2] sm:$0x7] %vm247, %v421
      %v423 = vld [vmem:[%s164] sm:$0x6]
      %s424 = scalar_lea.vmem %s1, 96
      %v425 = vld [vmem:[%s424] sm:$0xf]
      %v426 = vld [vmem:[%s424 + $0x4] sm:$0xf]
      %v427 = vld [vmem:[%s424 + $0x8] sm:$0xf]
      %v428 = vld [vmem:[%s424 + $0xc] sm:$0xf]
      %v429 = vld [vmem:[%s424 + $0x10] sm:$0xf]
      %v430 = vld [vmem:[%s424 + $0x14] sm:$0xf]
      %v431 = vld [vmem:[%s424 + $0x18] sm:$0xf]
      %v432 = vld [vmem:[%s424 + $0x1c] sm:$0xf]
      %v434 = vunpack.c.l.b16 %v423
      %v435 = vpack.c.b16 %v434, %v434
      %v437 = vshrl.u32 %v435, 16
      %v439 = vrot.slane %v437, 1
      %v440 = vshll.u32 %v435, 16
      %v442 = vrot.slane %v440, 2
      %v443 = vor.u32 %v439, %v442
      %v452 = vunpack.c.l.b16 %v425
      %v453 = vunpack.c.l.b16 %v426
      %v454 = vunpack.c.l.b16 %v427
      %v455 = vunpack.c.l.b16 %v428
      %v456 = vunpack.c.l.b16 %v429
      %v457 = vunpack.c.l.b16 %v430
      %v458 = vunpack.c.l.b16 %v431
      %v459 = vunpack.c.l.b16 %v432
      %v460 = vpack.c.b16 %v453, %v452
      %v461 = vpack.c.b16 %v455, %v454
      %v462 = vpack.c.b16 %v457, %v456
      %v463 = vpack.c.b16 %v459, %v458
      %v469 = vsel %vm203, %v443, 0
      %471 = vmatprep.subr.bf16.mxu0 0
      %472 = vmatpush1.bf16.msra.mxu0 0
      %473 = vmatprep.subr.bf16.mxu0 0
      %474 = vmatpush1.bf16.msra.mxu0 0
      %475 = vmatprep.subr.bf16.mxu0 0
      %476 = vmatpush1.bf16.msra.mxu0 0
      %477 = vmatprep.subr.bf16.mxu0 0
      %478 = vmatpush1.bf16.msra.mxu0 0
      %479 = vmatprep.subr.bf16.mxu0 0
      %480 = vmatpush1.bf16.msra.mxu0 %v463
      %481 = vmatprep.subr.bf16.mxu0 0
      %482 = vmatpush1.bf16.msra.mxu0 %v462
      %483 = vmatprep.subr.bf16.mxu0 0
      %484 = vmatpush1.bf16.msra.mxu0 %v461
      %485 = vmatprep.subr.bf16.mxu0 0
      %486 = vmatpush1.bf16.msra.mxu0 %v460
      %487 = vmatprep.subr.bf16.mxu0 0
      %488 = vmatpush2.bf16.msra.mxu0 0
      %489 = vmatprep.subr.bf16.mxu0 0
      %490 = vmatpush2.bf16.msra.mxu0 0
      %491 = vmatprep.subr.bf16.mxu0 0
      %492 = vmatpush2.bf16.msra.mxu0 0
      %493 = vmatprep.subr.bf16.mxu0 0
      %494 = vmatpush2.bf16.msra.mxu0 0
      %495 = vmatprep.subr.bf16.mxu0 0
      %496 = vmatpush2.bf16.msra.mxu0 0
      %497 = vmatprep.subr.bf16.mxu0 0
      %498 = vmatpush2.bf16.msra.mxu0 0
      %499 = vmatprep.subr.bf16.mxu0 0
      %500 = vmatpush2.bf16.msra.mxu0 0
      %501 = vmatprep.subr.bf16.mxu0 0
      %502 = vmatpush2.bf16.msra.mxu0 0
      %503 = vmatprep.mubr.bf16.mxu0 0
      %504 = vmatmul.mubr.bf16.gmra.mxu0 %v469
      %v505 = vpop.f32.mrf.mxu0
      %v506 = vadd.f32 0.0, %v505
      %v507 = vpop.f32.mrf.mxu0
      %v508 = vpop.f32.mrf.mxu0
      %v509 = vpop.f32.mrf.mxu0
      %510 = vdwg.mxu0
      %v511 = vld [vmem:[#allocation2] sm:$0x7]
      %v512 = vadd.f32 %v511, %v506
      %513 = vst.msk [vmem:[#allocation2] sm:$0x7] %vm247, %v512
      %v514 = vld [vmem:[%s164] sm:$0xc]
      %s515 = scalar_lea.vmem %s1, 128
      %v516 = vld [vmem:[%s515] sm:$0xf]
      %v517 = vld [vmem:[%s515 + $0x4] sm:$0xf]
      %v518 = vld [vmem:[%s515 + $0x8] sm:$0xf]
      %v519 = vld [vmem:[%s515 + $0xc] sm:$0xf]
      %v520 = vld [vmem:[%s515 + $0x10] sm:$0xf]
      %v521 = vld [vmem:[%s515 + $0x14] sm:$0xf]
      %v522 = vld [vmem:[%s515 + $0x18] sm:$0xf]
      %v523 = vld [vmem:[%s515 + $0x1c] sm:$0xf]
      %v525 = vunpack.c.l.b16 %v514
      %v526 = vpack.c.b16 %v525, %v525
      %v527 = vrot.slane %v526, 2
      %v536 = vunpack.c.l.b16 %v516
      %v537 = vunpack.c.l.b16 %v517
      %v538 = vunpack.c.l.b16 %v518
      %v539 = vunpack.c.l.b16 %v519
      %v540 = vunpack.c.l.b16 %v520
      %v541 = vunpack.c.l.b16 %v521
      %v542 = vunpack.c.l.b16 %v522
      %v543 = vunpack.c.l.b16 %v523
      %v544 = vpack.c.b16 %v537, %v536
      %v545 = vpack.c.b16 %v539, %v538
      %v546 = vpack.c.b16 %v541, %v540
      %v547 = vpack.c.b16 %v543, %v542
      %v553 = vsel %vm203, %v527, 0
      %555 = vmatprep.subr.bf16.mxu0 0
      %556 = vmatpush1.bf16.msra.mxu0 0
      %557 = vmatprep.subr.bf16.mxu0 0
      %558 = vmatpush1.bf16.msra.mxu0 0
      %559 = vmatprep.subr.bf16.mxu0 0
      %560 = vmatpush1.bf16.msra.mxu0 0
      %561 = vmatprep.subr.bf16.mxu0 0
      %562 = vmatpush1.bf16.msra.mxu0 0
      %563 = vmatprep.subr.bf16.mxu0 0
      %564 = vmatpush1.bf16.msra.mxu0 %v547
      %565 = vmatprep.subr.bf16.mxu0 0
      %566 = vmatpush1.bf16.msra.mxu0 %v546
      %567 = vmatprep.subr.bf16.mxu0 0
      %568 = vmatpush1.bf16.msra.mxu0 %v545
      %569 = vmatprep.subr.bf16.mxu0 0
      %570 = vmatpush1.bf16.msra.mxu0 %v544
      %571 = vmatprep.subr.bf16.mxu0 0
      %572 = vmatpush2.bf16.msra.mxu0 0
      %573 = vmatprep.subr.bf16.mxu0 0
      %574 = vmatpush2.bf16.msra.mxu0 0
      %575 = vmatprep.subr.bf16.mxu0 0
      %576 = vmatpush2.bf16.msra.mxu0 0
      %577 = vmatprep.subr.bf16.mxu0 0
      %578 = vmatpush2.bf16.msra.mxu0 0
      %579 = vmatprep.subr.bf16.mxu0 0
      %580 = vmatpush2.bf16.msra.mxu0 0
      %581 = vmatprep.subr.bf16.mxu0 0
      %582 = vmatpush2.bf16.msra.mxu0 0
      %583 = vmatprep.subr.bf16.mxu0 0
      %584 = vmatpush2.bf16.msra.mxu0 0
      %585 = vmatprep.subr.bf16.mxu0 0
      %586 = vmatpush2.bf16.msra.mxu0 0
      %587 = vmatprep.mubr.bf16.mxu0 0
      %588 = vmatmul.mubr.bf16.gmra.mxu0 %v553
      %v589 = vpop.f32.mrf.mxu0
      %v590 = vadd.f32 0.0, %v589
      %v591 = vpop.f32.mrf.mxu0
      %v592 = vpop.f32.mrf.mxu0
      %v593 = vpop.f32.mrf.mxu0
      %594 = vdwg.mxu0
      %v595 = vld [vmem:[#allocation2] sm:$0x7]
      %v596 = vadd.f32 %v595, %v590
      %597 = vst.msk [vmem:[#allocation2] sm:$0x7] %vm247, %v596
      %v598 = vld [vmem:[%s164] sm:$0xc]
      %s599 = scalar_lea.vmem %s1, 160
      %v600 = vld [vmem:[%s599] sm:$0xf]
      %v601 = vld [vmem:[%s599 + $0x4] sm:$0xf]
      %v602 = vld [vmem:[%s599 + $0x8] sm:$0xf]
      %v603 = vld [vmem:[%s599 + $0xc] sm:$0xf]
      %v604 = vld [vmem:[%s599 + $0x10] sm:$0xf]
      %v605 = vld [vmem:[%s599 + $0x14] sm:$0xf]
      %v606 = vld [vmem:[%s599 + $0x18] sm:$0xf]
      %v607 = vld [vmem:[%s599 + $0x1c] sm:$0xf]
      %v609 = vunpack.c.l.b16 %v598
      %v610 = vpack.c.b16 %v609, %v609
      %v612 = vshrl.u32 %v610, 16
      %v614 = vrot.slane %v612, 2
      %v615 = vshll.u32 %v610, 16
      %v617 = vrot.slane %v615, 3
      %v618 = vor.u32 %v614, %v617
      %v627 = vunpack.c.l.b16 %v600
      %v628 = vunpack.c.l.b16 %v601
      %v629 = vunpack.c.l.b16 %v602
      %v630 = vunpack.c.l.b16 %v603
      %v631 = vunpack.c.l.b16 %v604
      %v632 = vunpack.c.l.b16 %v605
      %v633 = vunpack.c.l.b16 %v606
      %v634 = vunpack.c.l.b16 %v607
      %v635 = vpack.c.b16 %v628, %v627
      %v636 = vpack.c.b16 %v630, %v629
      %v637 = vpack.c.b16 %v632, %v631
      %v638 = vpack.c.b16 %v634, %v633
      %v644 = vsel %vm203, %v618, 0
      %646 = vmatprep.subr.bf16.mxu0 0
      %647 = vmatpush1.bf16.msra.mxu0 0
      %648 = vmatprep.subr.bf16.mxu0 0
      %649 = vmatpush1.bf16.msra.mxu0 0
      %650 = vmatprep.subr.bf16.mxu0 0
      %651 = vmatpush1.bf16.msra.mxu0 0
      %652 = vmatprep.subr.bf16.mxu0 0
      %653 = vmatpush1.bf16.msra.mxu0 0
      %654 = vmatprep.subr.bf16.mxu0 0
      %655 = vmatpush1.bf16.msra.mxu0 %v638
      %656 = vmatprep.subr.bf16.mxu0 0
      %657 = vmatpush1.bf16.msra.mxu0 %v637
      %658 = vmatprep.subr.bf16.mxu0 0
      %659 = vmatpush1.bf16.msra.mxu0 %v636
      %660 = vmatprep.subr.bf16.mxu0 0
      %661 = vmatpush1.bf16.msra.mxu0 %v635
      %662 = vmatprep.subr.bf16.mxu0 0
      %663 = vmatpush2.bf16.msra.mxu0 0
      %664 = vmatprep.subr.bf16.mxu0 0
      %665 = vmatpush2.bf16.msra.mxu0 0
      %666 = vmatprep.subr.bf16.mxu0 0
      %667 = vmatpush2.bf16.msra.mxu0 0
      %668 = vmatprep.subr.bf16.mxu0 0
      %669 = vmatpush2.bf16.msra.mxu0 0
      %670 = vmatprep.subr.bf16.mxu0 0
      %671 = vmatpush2.bf16.msra.mxu0 0
      %672 = vmatprep.subr.bf16.mxu0 0
      %673 = vmatpush2.bf16.msra.mxu0 0
      %674 = vmatprep.subr.bf16.mxu0 0
      %675 = vmatpush2.bf16.msra.mxu0 0
      %676 = vmatprep.subr.bf16.mxu0 0
      %677 = vmatpush2.bf16.msra.mxu0 0
      %678 = vmatprep.mubr.bf16.mxu0 0
      %679 = vmatmul.mubr.bf16.gmra.mxu0 %v644
      %v680 = vpop.f32.mrf.mxu0
      %v681 = vadd.f32 0.0, %v680
      %v682 = vpop.f32.mrf.mxu0
      %v683 = vpop.f32.mrf.mxu0
      %v684 = vpop.f32.mrf.mxu0
      %685 = vdwg.mxu0
      %v686 = vld [vmem:[#allocation2] sm:$0x7]
      %v687 = vadd.f32 %v686, %v681
      %688 = vst.msk [vmem:[#allocation2] sm:$0x7] %vm247, %v687
      %v689 = vld [vmem:[%s164] sm:$0x8]
      %v690 = vld [vmem:[%s164 + $0x4] sm:$0x1]
      %s691 = scalar_lea.vmem %s1, 192
      %v692 = vld [vmem:[%s691] sm:$0xf]
      %v693 = vld [vmem:[%s691 + $0x4] sm:$0xf]
      %v694 = vld [vmem:[%s691 + $0x8] sm:$0xf]
      %v695 = vld [vmem:[%s691 + $0xc] sm:$0xf]
      %v696 = vld [vmem:[%s691 + $0x10] sm:$0xf]
      %v697 = vld [vmem:[%s691 + $0x14] sm:$0xf]
      %v698 = vld [vmem:[%s691 + $0x18] sm:$0xf]
      %v699 = vld [vmem:[%s691 + $0x1c] sm:$0xf]
      %v702 = vunpack.c.l.b16 %v689
      %v703 = vunpack.c.l.b16 %v690
      %v704 = vpack.c.b16 %v703, %v702
      %v705 = vrot.slane %v704, 3
      %v714 = vunpack.c.l.b16 %v692
      %v715 = vunpack.c.l.b16 %v693
      %v716 = vunpack.c.l.b16 %v694
      %v717 = vunpack.c.l.b16 %v695
      %v718 = vunpack.c.l.b16 %v696
      %v719 = vunpack.c.l.b16 %v697
      %v720 = vunpack.c.l.b16 %v698
      %v721 = vunpack.c.l.b16 %v699
      %v722 = vpack.c.b16 %v715, %v714
      %v723 = vpack.c.b16 %v717, %v716
      %v724 = vpack.c.b16 %v719, %v718
      %v725 = vpack.c.b16 %v721, %v720
      %v731 = vsel %vm203, %v705, 0
      %733 = vmatprep.subr.bf16.mxu0 0
      %734 = vmatpush1.bf16.msra.mxu0 0
      %735 = vmatprep.subr.bf16.mxu0 0
      %736 = vmatpush1.bf16.msra.mxu0 0
      %737 = vmatprep.subr.bf16.mxu0 0
      %738 = vmatpush1.bf16.msra.mxu0 0
      %739 = vmatprep.subr.bf16.mxu0 0
      %740 = vmatpush1.bf16.msra.mxu0 0
      %741 = vmatprep.subr.bf16.mxu0 0
      %742 = vmatpush1.bf16.msra.mxu0 %v725
      %743 = vmatprep.subr.bf16.mxu0 0
      %744 = vmatpush1.bf16.msra.mxu0 %v724
      %745 = vmatprep.subr.bf16.mxu0 0
      %746 = vmatpush1.bf16.msra.mxu0 %v723
      %747 = vmatprep.subr.bf16.mxu0 0
      %748 = vmatpush1.bf16.msra.mxu0 %v722
      %749 = vmatprep.subr.bf16.mxu0 0
      %750 = vmatpush2.bf16.msra.mxu0 0
      %751 = vmatprep.subr.bf16.mxu0 0
      %752 = vmatpush2.bf16.msra.mxu0 0
      %753 = vmatprep.subr.bf16.mxu0 0
      %754 = vmatpush2.bf16.msra.mxu0 0
      %755 = vmatprep.subr.bf16.mxu0 0
      %756 = vmatpush2.bf16.msra.mxu0 0
      %757 = vmatprep.subr.bf16.mxu0 0
      %758 = vmatpush2.bf16.msra.mxu0 0
      %759 = vmatprep.subr.bf16.mxu0 0
      %760 = vmatpush2.bf16.msra.mxu0 0
      %761 = vmatprep.subr.bf16.mxu0 0
      %762 = vmatpush2.bf16.msra.mxu0 0
      %763 = vmatprep.subr.bf16.mxu0 0
      %764 = vmatpush2.bf16.msra.mxu0 0
      %765 = vmatprep.mubr.bf16.mxu0 0
      %766 = vmatmul.mubr.bf16.gmra.mxu0 %v731
      %v767 = vpop.f32.mrf.mxu0
      %v768 = vadd.f32 0.0, %v767
      %v769 = vpop.f32.mrf.mxu0
      %v770 = vpop.f32.mrf.mxu0
      %v771 = vpop.f32.mrf.mxu0
      %772 = vdwg.mxu0
      %v773 = vld [vmem:[#allocation2] sm:$0x7]
      %v774 = vadd.f32 %v773, %v768
      %775 = vst.msk [vmem:[#allocation2] sm:$0x7] %vm247, %v774
      %v776 = vld [vmem:[%s164] sm:$0x8]
      %v777 = vld [vmem:[%s164 + $0x4] sm:$0x1]
      %s778 = scalar_lea.vmem %s1, 224
      %v779 = vld [vmem:[%s778] sm:$0xf]
      %v780 = vld [vmem:[%s778 + $0x4] sm:$0xf]
      %v781 = vld [vmem:[%s778 + $0x8] sm:$0xf]
      %v782 = vld [vmem:[%s778 + $0xc] sm:$0xf]
      %v783 = vld [vmem:[%s778 + $0x10] sm:$0xf]
      %v784 = vld [vmem:[%s778 + $0x14] sm:$0xf]
      %v785 = vld [vmem:[%s778 + $0x18] sm:$0xf]
      %v786 = vld [vmem:[%s778 + $0x1c] sm:$0xf]
      %v789 = vunpack.c.l.b16 %v776
      %v790 = vunpack.c.l.b16 %v777
      %v791 = vpack.c.b16 %v790, %v789
      %v793 = vshrl.u32 %v791, 16
      %v795 = vrot.slane %v793, 3
      %v796 = vshll.u32 %v791, 16
      %v798 = vrot.slane %v796, 4
      %v799 = vor.u32 %v795, %v798
      %v808 = vunpack.c.l.b16 %v779
      %v809 = vunpack.c.l.b16 %v780
      %v810 = vunpack.c.l.b16 %v781
      %v811 = vunpack.c.l.b16 %v782
      %v812 = vunpack.c.l.b16 %v783
      %v813 = vunpack.c.l.b16 %v784
      %v814 = vunpack.c.l.b16 %v785
      %v815 = vunpack.c.l.b16 %v786
      %v816 = vpack.c.b16 %v809, %v808
      %v817 = vpack.c.b16 %v811, %v810
      %v818 = vpack.c.b16 %v813, %v812
      %v819 = vpack.c.b16 %v815, %v814
      %v825 = vsel %vm203, %v799, 0
      %827 = vmatprep.subr.bf16.mxu0 0
      %828 = vmatpush1.bf16.msra.mxu0 0
      %829 = vmatprep.subr.bf16.mxu0 0
      %830 = vmatpush1.bf16.msra.mxu0 0
      %831 = vmatprep.subr.bf16.mxu0 0
      %832 = vmatpush1.bf16.msra.mxu0 0
      %833 = vmatprep.subr.bf16.mxu0 0
      %834 = vmatpush1.bf16.msra.mxu0 0
      %835 = vmatprep.subr.bf16.mxu0 0
      %836 = vmatpush1.bf16.msra.mxu0 %v819
      %837 = vmatprep.subr.bf16.mxu0 0
      %838 = vmatpush1.bf16.msra.mxu0 %v818
      %839 = vmatprep.subr.bf16.mxu0 0
      %840 = vmatpush1.bf16.msra.mxu0 %v817
      %841 = vmatprep.subr.bf16.mxu0 0
      %842 = vmatpush1.bf16.msra.mxu0 %v816
      %843 = vmatprep.subr.bf16.mxu0 0
      %844 = vmatpush2.bf16.msra.mxu0 0
      %845 = vmatprep.subr.bf16.mxu0 0
      %846 = vmatpush2.bf16.msra.mxu0 0
      %847 = vmatprep.subr.bf16.mxu0 0
      %848 = vmatpush2.bf16.msra.mxu0 0
      %849 = vmatprep.subr.bf16.mxu0 0
      %850 = vmatpush2.bf16.msra.mxu0 0
      %851 = vmatprep.subr.bf16.mxu0 0
      %852 = vmatpush2.bf16.msra.mxu0 0
      %853 = vmatprep.subr.bf16.mxu0 0
      %854 = vmatpush2.bf16.msra.mxu0 0
      %855 = vmatprep.subr.bf16.mxu0 0
      %856 = vmatpush2.bf16.msra.mxu0 0
      %857 = vmatprep.subr.bf16.mxu0 0
      %858 = vmatpush2.bf16.msra.mxu0 0
      %859 = vmatprep.mubr.bf16.mxu0 0
      %860 = vmatmul.mubr.bf16.gmra.mxu0 %v825
      %v861 = vpop.f32.mrf.mxu0
      %v862 = vadd.f32 0.0, %v861
      %v863 = vpop.f32.mrf.mxu0
      %v864 = vpop.f32.mrf.mxu0
      %v865 = vpop.f32.mrf.mxu0
      %866 = vdwg.mxu0
      %v867 = vld [vmem:[#allocation2] sm:$0x7]
      %v868 = vadd.f32 %v867, %v862
      %869 = vst.msk [vmem:[#allocation2] sm:$0x7] %vm247, %v868
      %v870 = vld [vmem:[%s164 + $0x4] sm:$0x3]
      %s871 = scalar_lea.vmem %s1, 256
      %v872 = vld [vmem:[%s871] sm:$0xf]
      %v873 = vld [vmem:[%s871 + $0x4] sm:$0xf]
      %v874 = vld [vmem:[%s871 + $0x8] sm:$0xf]
      %v875 = vld [vmem:[%s871 + $0xc] sm:$0xf]
      %v876 = vld [vmem:[%s871 + $0x10] sm:$0xf]
      %v877 = vld [vmem:[%s871 + $0x14] sm:$0xf]
      %v878 = vld [vmem:[%s871 + $0x18] sm:$0xf]
      %v879 = vld [vmem:[%s871 + $0x1c] sm:$0xf]
      %v888 = vunpack.c.l.b16 %v872
      %v889 = vunpack.c.l.b16 %v873
      %v890 = vunpack.c.l.b16 %v874
      %v891 = vunpack.c.l.b16 %v875
      %v892 = vunpack.c.l.b16 %v876
      %v893 = vunpack.c.l.b16 %v877
      %v894 = vunpack.c.l.b16 %v878
      %v895 = vunpack.c.l.b16 %v879
      %v896 = vpack.c.b16 %v889, %v888
      %v897 = vpack.c.b16 %v891, %v890
      %v898 = vpack.c.b16 %v893, %v892
      %v899 = vpack.c.b16 %v895, %v894
      %v905 = vsel %vm203, %v870, 0
      %907 = vmatprep.subr.bf16.mxu0 0
      %908 = vmatpush1.bf16.msra.mxu0 0
      %909 = vmatprep.subr.bf16.mxu0 0
      %910 = vmatpush1.bf16.msra.mxu0 0
      %911 = vmatprep.subr.bf16.mxu0 0
      %912 = vmatpush1.bf16.msra.mxu0 0
      %913 = vmatprep.subr.bf16.mxu0 0
      %914 = vmatpush1.bf16.msra.mxu0 0
      %915 = vmatprep.subr.bf16.mxu0 0
      %916 = vmatpush1.bf16.msra.mxu0 %v899
      %917 = vmatprep.subr.bf16.mxu0 0
      %918 = vmatpush1.bf16.msra.mxu0 %v898
      %919 = vmatprep.subr.bf16.mxu0 0
      %920 = vmatpush1.bf16.msra.mxu0 %v897
      %921 = vmatprep.subr.bf16.mxu0 0
      %922 = vmatpush1.bf16.msra.mxu0 %v896
      %923 = vmatprep.subr.bf16.mxu0 0
      %924 = vmatpush2.bf16.msra.mxu0 0
      %925 = vmatprep.subr.bf16.mxu0 0
      %926 = vmatpush2.bf16.msra.mxu0 0
      %927 = vmatprep.subr.bf16.mxu0 0
      %928 = vmatpush2.bf16.msra.mxu0 0
      %929 = vmatprep.subr.bf16.mxu0 0
      %930 = vmatpush2.bf16.msra.mxu0 0
      %931 = vmatprep.subr.bf16.mxu0 0
      %932 = vmatpush2.bf16.msra.mxu0 0
      %933 = vmatprep.subr.bf16.mxu0 0
      %934 = vmatpush2.bf16.msra.mxu0 0
      %935 = vmatprep.subr.bf16.mxu0 0
      %936 = vmatpush2.bf16.msra.mxu0 0
      %937 = vmatprep.subr.bf16.mxu0 0
      %938 = vmatpush2.bf16.msra.mxu0 0
      %939 = vmatprep.mubr.bf16.mxu0 0
      %940 = vmatmul.mubr.bf16.gmra.mxu0 %v905
      %v941 = vpop.f32.mrf.mxu0
      %v942 = vadd.f32 0.0, %v941
      %v943 = vpop.f32.mrf.mxu0
      %v944 = vpop.f32.mrf.mxu0
      %v945 = vpop.f32.mrf.mxu0
      %946 = vdwg.mxu0
      %v947 = vld [vmem:[#allocation2] sm:$0x7]
      %v948 = vadd.f32 %v947, %v942
      %949 = vst.msk [vmem:[#allocation2] sm:$0x7] %vm247, %v948
      %v950 = vld [vmem:[#allocation2] sm:$0x7]
      %v951 = vld [vmem:[%s2] sm:$0x1]
      %v953 = vlaneseq
      %v954 = vshrl.u32 %v953, 7
      %v955 = vsub.s32 0, %v954
      %v956 = vrot.slane %v951, %v955
      %v958 = vadd.f32 %v950, %v956
      %v959 = vmax.f32 %v958, 0.0
      %v960 = vpack.c.bf16 %v959, %v959
      %vm961 = vcmask 517120
      %vm962 = vsmask.f32 1280
      %vm963 = vmand %vm961, %vm962
      %v964 = vld [vmem:[%s168] sm:$0x3]
      %v965 = vsel %vm963, %v960, %v964
      %966 = vst [vmem:[%s168] sm:$0x3] %v965
      %p967 = scmp.lt.s32.totalorder %s14, 1
      %s968 = scalar_select %p967, %s14, 1
      %s969 = smul.addr %s968, 2
      %s970 = scalar_lea.vmem %s3, %s969
      // Predicated region
      $region33: #{cnn_q_function_forward.6} parent=31 // pred_check
        %p971 = pneg %p100
      $region34: #{cnn_q_function_forward.6} parent=31 // pred_check_branch
        %973 = sbr.rel (%p971) target = $region36
      $region35: #{cnn_q_function_forward.6} parent=31 // pred_region
        _
      $region36: #{cnn_q_function_forward.6} parent=31 // pred_fallthru
        _
    $region32: #{cnn_q_function_forward.6} parent=5 // pred_fallthru
      _
    %p974 = scmp.le.s32.totalorder 2, %s9
    // Predicated region
    $region37: #{cnn_q_function_forward.6} parent=5 // pred_check
      %p975 = pneg %p974
    $region38: #{cnn_q_function_forward.6} parent=5 // pred_check_branch
      %977 = sbr.rel (%p975) target = $region40
    $region39: #{cnn_q_function_forward.6} parent=5 // pred_region
      %s978 = ssub.s32 %s9, 2
      // Predicated region
      $region41: #{cnn_q_function_forward.6} parent=39 // pred_check
        %p979 = pneg %p106
      $region42: #{cnn_q_function_forward.6} parent=39 // pred_check_branch
        %981 = sbr.rel (%p979) target = $region44
      $region43: #{cnn_q_function_forward.6} parent=39 // pred_region
        %p982 = scmp.lt.s32.totalorder %s15, 1
        %s983 = scalar_select %p982, %s15, 1
        %s984 = smul.addr %s983, 2
        %s985 = scalar_lea.vmem %s3, %s984
      $region44: #{cnn_q_function_forward.6} parent=39 // pred_fallthru
        _
    $region40: #{cnn_q_function_forward.6} parent=5 // pred_fallthru
      _
  $region6: #{cnn_q_function_forward.6} parent=0 // loop_footer
    %s13 = sadd.s32 1, %s9
  $region7: #{cnn_q_function_forward.6} parent=0 // loop_footer_branch
    %8 = sbr.rel target = $region3
  $region8: #{cnn_q_function_forward.6} parent=0 // loop_exit
    _

</llo_original>
